<compile_context>
chip_gen: v7x
topology: tpu7x:2x2x1
jax: 0.10.0
libtpu: 0.0.40
codegen_flags: <defaults>
</compile_context>

<pallas_src>
import functools

import jax
import jax.numpy as jnp
from jax import lax
from jax.experimental import pallas as pl
from jax.experimental.pallas import tpu as pltpu

FEATURE_SIZE = 512     # resnet18 baseline
HIDDEN = 128
NUM_LAYERS = 2
N_STEP = 11
N_EXP = 2
N_RSD = 1
N_HEADS = N_STEP + N_EXP + N_RSD        # 14 real output columns
HEADS_PAD = 128                         # lane-dense padded output width
_FULL_UNROLL_LIMIT = 64                 # fully unroll the recurrence if T <= this


# -----------------------------------------------------------------------------
# Serial LSTM recurrence with register-carried state.
# -----------------------------------------------------------------------------
def _lstm_recurrence(T, H, xproj_ref, w_hh_bf16, y_ref):
    """Run the LSTM recurrence; h/c live in vregs, only h is stored per step.

    xproj_ref : VMEM ref (T, 4H) f32, precomputed x @ W_ih + (b_ih + b_hh).
    w_hh_bf16 : (H, 4H) bf16 value (hoisted out of the loop).
    y_ref     : VMEM ref (T, H) f32; hidden state per timestep written here.
    """

    def step(t, carry):
        h, c = carry
        gates = xproj_ref[pl.ds(t, 1), :] + jnp.dot(
            h.astype(jnp.bfloat16), w_hh_bf16,
            preferred_element_type=jnp.float32)          # (1, 4H), [i, f, g, o]
        i_g = jax.nn.sigmoid(gates[:, 0:H])
        f_g = jax.nn.sigmoid(gates[:, H:2 * H])
        g_g = jnp.tanh(gates[:, 2 * H:3 * H])
        o_g = jax.nn.sigmoid(gates[:, 3 * H:4 * H])
        c_new = f_g * c + i_g * g_g                      # f32 cell state
        h_new = o_g * jnp.tanh(c_new)
        y_ref[pl.ds(t, 1), :] = h_new
        return h_new, c_new

    h = jnp.zeros((1, H), jnp.float32)
    c = jnp.zeros((1, H), jnp.float32)
    if T <= _FULL_UNROLL_LIMIT:
        # Static T: full unroll -> static slice indices, register-carried h/c.
        for t in range(T):
            h, c = step(t, (h, c))
    else:
        lax.fori_loop(0, T, step, (h, c), unroll=8)


# -----------------------------------------------------------------------------
# Fused kernel: LSTM layer 1 -> LSTM layer 2 -> padded linear heads.
# -----------------------------------------------------------------------------
def _fused_rnn_kernel(x_ref, wih1_ref, whh1_ref, b1_ref,
                      wih2_ref, whh2_ref, b2_ref,
                      wh_ref, bh_ref, out_ref,
                      xp_sc, y1_sc, y2_sc):
    T = x_ref.shape[0]
    H = whh1_ref.shape[0]

    # ---- LSTM layer 1: batched input projection (one MXU call), then recur.
    xp_sc[...] = jnp.dot(x_ref[...].astype(jnp.bfloat16), wih1_ref[...],
                         preferred_element_type=jnp.float32) + b1_ref[...]
    _lstm_recurrence(T, H, xp_sc, whh1_ref[...], y1_sc)

    # ---- LSTM layer 2 (xp_sc scratch reused).
    xp_sc[...] = jnp.dot(y1_sc[...].astype(jnp.bfloat16), wih2_ref[...],
                         preferred_element_type=jnp.float32) + b2_ref[...]
    _lstm_recurrence(T, H, xp_sc, whh2_ref[...], y2_sc)

    # ---- Fused heads, lane-dense (T, 128) output (cols >= 14 are zero pad).
    out_ref[...] = jnp.dot(y2_sc[...].astype(jnp.bfloat16), wh_ref[...],
                           preferred_element_type=jnp.float32) + bh_ref[...]


def fused_rnn_forward(x, params):
    """x: (T, F) f32. Returns (T, HEADS_PAD) f32 = [step | exp | rsd | 0-pad]."""
    T = x.shape[0]
    H = HIDDEN
    (wih1, whh1, b1), (wih2, whh2, b2) = params["lstm"]
    vmem = pl.BlockSpec(memory_space=pltpu.MemorySpace.VMEM)
    return pl.pallas_call(
        _fused_rnn_kernel,
        out_shape=jax.ShapeDtypeStruct((T, HEADS_PAD), jnp.float32),
        in_specs=[vmem] * 9,
        out_specs=vmem,
        scratch_shapes=[
            pltpu.VMEM((T, 4 * H), jnp.float32),   # x-projection (reused per layer)
            pltpu.VMEM((T, H), jnp.float32),       # layer-1 hidden sequence
            pltpu.VMEM((T, H), jnp.float32),       # layer-2 hidden sequence
        ],
    )(x, wih1, whh1, b1, wih2, whh2, b2, params["w_heads"], params["b_heads"])


# -----------------------------------------------------------------------------
# Parameter init (deterministic, torch-like uniform(-1/sqrt(H), 1/sqrt(H)))
# -----------------------------------------------------------------------------
def init_params(key):
    params = {}
    bound = 1.0 / jnp.sqrt(jnp.float32(HIDDEN))
    keys = jax.random.split(key, 4 * NUM_LAYERS + 6)
    k_iter = iter(keys)

    def unif(k, shape):
        return jax.random.uniform(k, shape, jnp.float32, -bound, bound)

    lstm = []
    in_size = FEATURE_SIZE
    for _ in range(NUM_LAYERS):
        w_ih = unif(next(k_iter), (in_size, 4 * HIDDEN))           # pre-transposed
        w_hh = unif(next(k_iter), (HIDDEN, 4 * HIDDEN))            # pre-transposed
        b_ih = unif(next(k_iter), (1, 4 * HIDDEN))
        b_hh = unif(next(k_iter), (1, 4 * HIDDEN))
        lstm.append((w_ih.astype(jnp.bfloat16),                    # bf16 MXU operands
                     w_hh.astype(jnp.bfloat16),
                     (b_ih + b_hh)))                               # fused bias, f32
        in_size = HIDDEN
    params["lstm"] = lstm

    # fc1 (11), fc2 (2), fc3 (1) concatenated, then zero-padded to 128 columns
    w1 = unif(next(k_iter), (HIDDEN, N_STEP))
    b1 = unif(next(k_iter), (N_STEP,))
    w2 = unif(next(k_iter), (HIDDEN, N_EXP))
    b2 = unif(next(k_iter), (N_EXP,))
    w3 = unif(next(k_iter), (HIDDEN, N_RSD))
    b3 = unif(next(k_iter), (N_RSD,))
    w_heads = jnp.concatenate([w1, w2, w3], axis=1)                # (H, 14)
    b_heads = jnp.concatenate([b1, b2, b3])                        # (14,)
    w_heads = jnp.pad(w_heads, ((0, 0), (0, HEADS_PAD - N_HEADS)))
    b_heads = jnp.pad(b_heads, (0, HEADS_PAD - N_HEADS))
    params["w_heads"] = w_heads.astype(jnp.bfloat16)               # (H, 128)
    params["b_heads"] = b_heads[None, :]                           # (1, 128) f32
    return params


# -----------------------------------------------------------------------------
# Forward pass (skip_features path): X is (1, T, feature_size)
# -----------------------------------------------------------------------------
@functools.partial(jax.jit, static_argnames=())
def rnn_model_forward(X, params):
    x = jnp.squeeze(X, axis=0).astype(jnp.float32)                 # (T, F)
    out = fused_rnn_forward(x, params)                             # (T, 128)
    step_pred = out[:, :N_STEP]
    exp_pred = out[:, N_STEP:N_STEP + N_EXP]
    rsd_pred = out[:, N_STEP + N_EXP:N_HEADS]
    return step_pred, exp_pred, rsd_pred


if __name__ == "__main__":
    key = jax.random.PRNGKey(0)
    k_param, k_x = jax.random.split(key)
    params = init_params(k_param)

    T = 8
    X = jax.random.normal(k_x, (1, T, FEATURE_SIZE), jnp.float32)

    step_pred, exp_pred, rsd_pred = rnn_model_forward(X, params)
    jax.block_until_ready((step_pred, exp_pred, rsd_pred))

    assert step_pred.shape == (T, N_STEP)
    assert exp_pred.shape == (T, N_EXP)
    assert rsd_pred.shape == (T, N_RSD)
    assert bool(jnp.all(jnp.isfinite(step_pred)))
    assert bool(jnp.all(jnp.isfinite(exp_pred)))
    assert bool(jnp.all(jnp.isfinite(rsd_pred)))
    print("KERNEL_OK")
</pallas_src>

<mosaic_0001>
module attributes {stable_mosaic.version = 11 : i64} {
  func.func @_fused_rnn_kernel(%arg0: memref<8x512xf32, #tpu.memory_space<vmem>>, %arg1: memref<512x512xbf16, #tpu.memory_space<vmem>>, %arg2: memref<128x512xbf16, #tpu.memory_space<vmem>>, %arg3: memref<1x512xf32, #tpu.memory_space<vmem>>, %arg4: memref<128x512xbf16, #tpu.memory_space<vmem>>, %arg5: memref<128x512xbf16, #tpu.memory_space<vmem>>, %arg6: memref<1x512xf32, #tpu.memory_space<vmem>>, %arg7: memref<128x128xbf16, #tpu.memory_space<vmem>>, %arg8: memref<1x128xf32, #tpu.memory_space<vmem>>, %arg9: memref<8x128xf32, #tpu.memory_space<vmem>>, %arg10: memref<8x512xf32, #tpu.memory_space<vmem>>, %arg11: memref<8x128xf32, #tpu.memory_space<vmem>>, %arg12: memref<8x128xf32, #tpu.memory_space<vmem>>) attributes {dimension_semantics = [], scalar_prefetch = 0 : i64, scratch_operands = 3 : i64, tpu.core_type = #tpu.core_type<tc>} {
    %c0 = arith.constant 0 : index
    %c0_0 = arith.constant 0 : index
    %0 = vector.load %arg0[%c0, %c0_0] : memref<8x512xf32, #tpu.memory_space<vmem>>, vector<8x512xf32>
    %1 = arith.truncf %0 : vector<8x512xf32> to vector<8x512xbf16>
    %c0_1 = arith.constant 0 : index
    %c0_2 = arith.constant 0 : index
    %2 = vector.load %arg1[%c0_1, %c0_2] : memref<512x512xbf16, #tpu.memory_space<vmem>>, vector<512x512xbf16>
    %cst = arith.constant dense<0.000000e+00> : vector<8x512xf32>
    %3 = tpu.matmul %1, %2, %cst {dimension_numbers = #tpu.dot_dimension_numbers<[1], [0], [0], [1], [0, 0, 1, 1], [], []>} : vector<8x512xbf16>, vector<512x512xbf16>, vector<8x512xf32> -> vector<8x512xf32>
    %c0_3 = arith.constant 0 : index
    %c0_4 = arith.constant 0 : index
    %4 = vector.load %arg3[%c0_3, %c0_4] : memref<1x512xf32, #tpu.memory_space<vmem>>, vector<1x512xf32>
    %5 = vector.broadcast %4 : vector<1x512xf32> to vector<8x512xf32>
    %6 = arith.addf %3, %5 : vector<8x512xf32>
    %c0_5 = arith.constant 0 : index
    %c0_6 = arith.constant 0 : index
    %7 = vector.load %arg10[%c0_5, %c0_6] : memref<8x512xf32, #tpu.memory_space<vmem>>, vector<8x512xf32>
    tpu.vector_store %arg10[%c0_5, %c0_6], %6 {strides = array<i32>} : memref<8x512xf32, #tpu.memory_space<vmem>>, vector<8x512xf32>,
    %c0_7 = arith.constant 0 : index
    %c0_8 = arith.constant 0 : index
    %8 = vector.load %arg2[%c0_7, %c0_8] : memref<128x512xbf16, #tpu.memory_space<vmem>>, vector<128x512xbf16>
    %cst_9 = arith.constant 0.000000e+00 : f32
    %9 = vector.broadcast %cst_9 : f32 to vector<1x128xf32>
    %cst_10 = arith.constant 0.000000e+00 : f32
    %10 = vector.broadcast %cst_10 : f32 to vector<1x128xf32>
    %c0_11 = arith.constant 0 : index
    %c0_12 = arith.constant 0 : index
    %11 = vector.load %arg10[%c0_11, %c0_12] : memref<8x512xf32, #tpu.memory_space<vmem>>, vector<1x512xf32>
    %12 = arith.truncf %9 : vector<1x128xf32> to vector<1x128xbf16>
    %cst_13 = arith.constant dense<0.000000e+00> : vector<1x512xf32>
    %13 = tpu.matmul %12, %8, %cst_13 {dimension_numbers = #tpu.dot_dimension_numbers<[1], [0], [0], [1], [0, 0, 1, 1], [], []>} : vector<1x128xbf16>, vector<128x512xbf16>, vector<1x512xf32> -> vector<1x512xf32>
    %14 = arith.addf %11, %13 : vector<1x512xf32>
    %15 = vector.extract_strided_slice %14 {offsets = [0, 0], sizes = [1, 128], strides = [1, 1]} : vector<1x512xf32> to vector<1x128xf32>
    %16 = arith.negf %15 : vector<1x128xf32>
    %17 = math.exp %16 : vector<1x128xf32>
    %cst_14 = arith.constant 1.000000e+00 : f32
    %18 = vector.broadcast %cst_14 : f32 to vector<1x128xf32>
    %19 = arith.addf %18, %17 : vector<1x128xf32>
    %20 = arith.divf %18, %19 : vector<1x128xf32>
    %21 = vector.extract_strided_slice %14 {offsets = [0, 128], sizes = [1, 128], strides = [1, 1]} : vector<1x512xf32> to vector<1x128xf32>
    %22 = arith.negf %21 : vector<1x128xf32>
    %23 = math.exp %22 : vector<1x128xf32>
    %cst_15 = arith.constant 1.000000e+00 : f32
    %24 = vector.broadcast %cst_15 : f32 to vector<1x128xf32>
    %25 = arith.addf %24, %23 : vector<1x128xf32>
    %26 = arith.divf %24, %25 : vector<1x128xf32>
    %27 = vector.extract_strided_slice %14 {offsets = [0, 256], sizes = [1, 128], strides = [1, 1]} : vector<1x512xf32> to vector<1x128xf32>
    %28 = math.tanh %27 : vector<1x128xf32>
    %29 = vector.extract_strided_slice %14 {offsets = [0, 384], sizes = [1, 128], strides = [1, 1]} : vector<1x512xf32> to vector<1x128xf32>
    %30 = arith.negf %29 : vector<1x128xf32>
    %31 = math.exp %30 : vector<1x128xf32>
    %cst_16 = arith.constant 1.000000e+00 : f32
    %32 = vector.broadcast %cst_16 : f32 to vector<1x128xf32>
    %33 = arith.addf %32, %31 : vector<1x128xf32>
    %34 = arith.divf %32, %33 : vector<1x128xf32>
    %35 = arith.mulf %26, %10 : vector<1x128xf32>
    %36 = arith.mulf %20, %28 : vector<1x128xf32>
    %37 = arith.addf %35, %36 : vector<1x128xf32>
    %38 = math.tanh %37 : vector<1x128xf32>
    %39 = arith.mulf %34, %38 : vector<1x128xf32>
    %c0_17 = arith.constant 0 : index
    %c0_18 = arith.constant 0 : index
    %40 = vector.load %arg11[%c0_17, %c0_18] : memref<8x128xf32, #tpu.memory_space<vmem>>, vector<1x128xf32>
    tpu.vector_store %arg11[%c0_17, %c0_18], %39 {strides = array<i32>} : memref<8x128xf32, #tpu.memory_space<vmem>>, vector<1x128xf32>,
    %c1 = arith.constant 1 : index
    %c0_19 = arith.constant 0 : index
    %41 = vector.load %arg10[%c1, %c0_19] : memref<8x512xf32, #tpu.memory_space<vmem>>, vector<1x512xf32>
    %42 = arith.truncf %39 : vector<1x128xf32> to vector<1x128xbf16>
    %cst_20 = arith.constant dense<0.000000e+00> : vector<1x512xf32>
    %43 = tpu.matmul %42, %8, %cst_20 {dimension_numbers = #tpu.dot_dimension_numbers<[1], [0], [0], [1], [0, 0, 1, 1], [], []>} : vector<1x128xbf16>, vector<128x512xbf16>, vector<1x512xf32> -> vector<1x512xf32>
    %44 = arith.addf %41, %43 : vector<1x512xf32>
    %45 = vector.extract_strided_slice %44 {offsets = [0, 0], sizes = [1, 128], strides = [1, 1]} : vector<1x512xf32> to vector<1x128xf32>
    %46 = arith.negf %45 : vector<1x128xf32>
    %47 = math.exp %46 : vector<1x128xf32>
    %cst_21 = arith.constant 1.000000e+00 : f32
    %48 = vector.broadcast %cst_21 : f32 to vector<1x128xf32>
    %49 = arith.addf %48, %47 : vector<1x128xf32>
    %50 = arith.divf %48, %49 : vector<1x128xf32>
    %51 = vector.extract_strided_slice %44 {offsets = [0, 128], sizes = [1, 128], strides = [1, 1]} : vector<1x512xf32> to vector<1x128xf32>
    %52 = arith.negf %51 : vector<1x128xf32>
    %53 = math.exp %52 : vector<1x128xf32>
    %cst_22 = arith.constant 1.000000e+00 : f32
    %54 = vector.broadcast %cst_22 : f32 to vector<1x128xf32>
    %55 = arith.addf %54, %53 : vector<1x128xf32>
    %56 = arith.divf %54, %55 : vector<1x128xf32>
    %57 = vector.extract_strided_slice %44 {offsets = [0, 256], sizes = [1, 128], strides = [1, 1]} : vector<1x512xf32> to vector<1x128xf32>
    %58 = math.tanh %57 : vector<1x128xf32>
    %59 = vector.extract_strided_slice %44 {offsets = [0, 384], sizes = [1, 128], strides = [1, 1]} : vector<1x512xf32> to vector<1x128xf32>
    %60 = arith.negf %59 : vector<1x128xf32>
    %61 = math.exp %60 : vector<1x128xf32>
    %cst_23 = arith.constant 1.000000e+00 : f32
    %62 = vector.broadcast %cst_23 : f32 to vector<1x128xf32>
    %63 = arith.addf %62, %61 : vector<1x128xf32>
    %64 = arith.divf %62, %63 : vector<1x128xf32>
    %65 = arith.mulf %56, %37 : vector<1x128xf32>
    %66 = arith.mulf %50, %58 : vector<1x128xf32>
    %67 = arith.addf %65, %66 : vector<1x128xf32>
    %68 = math.tanh %67 : vector<1x128xf32>
    %69 = arith.mulf %64, %68 : vector<1x128xf32>
    %c1_24 = arith.constant 1 : index
    %c0_25 = arith.constant 0 : index
    %70 = vector.load %arg11[%c1_24, %c0_25] : memref<8x128xf32, #tpu.memory_space<vmem>>, vector<1x128xf32>
    tpu.vector_store %arg11[%c1_24, %c0_25], %69 {strides = array<i32>} : memref<8x128xf32, #tpu.memory_space<vmem>>, vector<1x128xf32>,
    %c2 = arith.constant 2 : index
    %c0_26 = arith.constant 0 : index
    %71 = vector.load %arg10[%c2, %c0_26] : memref<8x512xf32, #tpu.memory_space<vmem>>, vector<1x512xf32>
    %72 = arith.truncf %69 : vector<1x128xf32> to vector<1x128xbf16>
    %cst_27 = arith.constant dense<0.000000e+00> : vector<1x512xf32>
    %73 = tpu.matmul %72, %8, %cst_27 {dimension_numbers = #tpu.dot_dimension_numbers<[1], [0], [0], [1], [0, 0, 1, 1], [], []>} : vector<1x128xbf16>, vector<128x512xbf16>, vector<1x512xf32> -> vector<1x512xf32>
    %74 = arith.addf %71, %73 : vector<1x512xf32>
    %75 = vector.extract_strided_slice %74 {offsets = [0, 0], sizes = [1, 128], strides = [1, 1]} : vector<1x512xf32> to vector<1x128xf32>
    %76 = arith.negf %75 : vector<1x128xf32>
    %77 = math.exp %76 : vector<1x128xf32>
    %cst_28 = arith.constant 1.000000e+00 : f32
    %78 = vector.broadcast %cst_28 : f32 to vector<1x128xf32>
    %79 = arith.addf %78, %77 : vector<1x128xf32>
    %80 = arith.divf %78, %79 : vector<1x128xf32>
    %81 = vector.extract_strided_slice %74 {offsets = [0, 128], sizes = [1, 128], strides = [1, 1]} : vector<1x512xf32> to vector<1x128xf32>
    %82 = arith.negf %81 : vector<1x128xf32>
    %83 = math.exp %82 : vector<1x128xf32>
    %cst_29 = arith.constant 1.000000e+00 : f32
    %84 = vector.broadcast %cst_29 : f32 to vector<1x128xf32>
    %85 = arith.addf %84, %83 : vector<1x128xf32>
    %86 = arith.divf %84, %85 : vector<1x128xf32>
    %87 = vector.extract_strided_slice %74 {offsets = [0, 256], sizes = [1, 128], strides = [1, 1]} : vector<1x512xf32> to vector<1x128xf32>
    %88 = math.tanh %87 : vector<1x128xf32>
    %89 = vector.extract_strided_slice %74 {offsets = [0, 384], sizes = [1, 128], strides = [1, 1]} : vector<1x512xf32> to vector<1x128xf32>
    %90 = arith.negf %89 : vector<1x128xf32>
    %91 = math.exp %90 : vector<1x128xf32>
    %cst_30 = arith.constant 1.000000e+00 : f32
    %92 = vector.broadcast %cst_30 : f32 to vector<1x128xf32>
    %93 = arith.addf %92, %91 : vector<1x128xf32>
    %94 = arith.divf %92, %93 : vector<1x128xf32>
    %95 = arith.mulf %86, %67 : vector<1x128xf32>
    %96 = arith.mulf %80, %88 : vector<1x128xf32>
    %97 = arith.addf %95, %96 : vector<1x128xf32>
    %98 = math.tanh %97 : vector<1x128xf32>
    %99 = arith.mulf %94, %98 : vector<1x128xf32>
    %c2_31 = arith.constant 2 : index
    %c0_32 = arith.constant 0 : index
    %100 = vector.load %arg11[%c2_31, %c0_32] : memref<8x128xf32, #tpu.memory_space<vmem>>, vector<1x128xf32>
    tpu.vector_store %arg11[%c2_31, %c0_32], %99 {strides = array<i32>} : memref<8x128xf32, #tpu.memory_space<vmem>>, vector<1x128xf32>,
    %c3 = arith.constant 3 : index
    %c0_33 = arith.constant 0 : index
    %101 = vector.load %arg10[%c3, %c0_33] : memref<8x512xf32, #tpu.memory_space<vmem>>, vector<1x512xf32>
    %102 = arith.truncf %99 : vector<1x128xf32> to vector<1x128xbf16>
    %cst_34 = arith.constant dense<0.000000e+00> : vector<1x512xf32>
    %103 = tpu.matmul %102, %8, %cst_34 {dimension_numbers = #tpu.dot_dimension_numbers<[1], [0], [0], [1], [0, 0, 1, 1], [], []>} : vector<1x128xbf16>, vector<128x512xbf16>, vector<1x512xf32> -> vector<1x512xf32>
    %104 = arith.addf %101, %103 : vector<1x512xf32>
    %105 = vector.extract_strided_slice %104 {offsets = [0, 0], sizes = [1, 128], strides = [1, 1]} : vector<1x512xf32> to vector<1x128xf32>
    %106 = arith.negf %105 : vector<1x128xf32>
    %107 = math.exp %106 : vector<1x128xf32>
    %cst_35 = arith.constant 1.000000e+00 : f32
    %108 = vector.broadcast %cst_35 : f32 to vector<1x128xf32>
    %109 = arith.addf %108, %107 : vector<1x128xf32>
    %110 = arith.divf %108, %109 : vector<1x128xf32>
    %111 = vector.extract_strided_slice %104 {offsets = [0, 128], sizes = [1, 128], strides = [1, 1]} : vector<1x512xf32> to vector<1x128xf32>
    %112 = arith.negf %111 : vector<1x128xf32>
    %113 = math.exp %112 : vector<1x128xf32>
    %cst_36 = arith.constant 1.000000e+00 : f32
    %114 = vector.broadcast %cst_36 : f32 to vector<1x128xf32>
    %115 = arith.addf %114, %113 : vector<1x128xf32>
    %116 = arith.divf %114, %115 : vector<1x128xf32>
    %117 = vector.extract_strided_slice %104 {offsets = [0, 256], sizes = [1, 128], strides = [1, 1]} : vector<1x512xf32> to vector<1x128xf32>
    %118 = math.tanh %117 : vector<1x128xf32>
    %119 = vector.extract_strided_slice %104 {offsets = [0, 384], sizes = [1, 128], strides = [1, 1]} : vector<1x512xf32> to vector<1x128xf32>
    %120 = arith.negf %119 : vector<1x128xf32>
    %121 = math.exp %120 : vector<1x128xf32>
    %cst_37 = arith.constant 1.000000e+00 : f32
    %122 = vector.broadcast %cst_37 : f32 to vector<1x128xf32>
    %123 = arith.addf %122, %121 : vector<1x128xf32>
    %124 = arith.divf %122, %123 : vector<1x128xf32>
    %125 = arith.mulf %116, %97 : vector<1x128xf32>
    %126 = arith.mulf %110, %118 : vector<1x128xf32>
    %127 = arith.addf %125, %126 : vector<1x128xf32>
    %128 = math.tanh %127 : vector<1x128xf32>
    %129 = arith.mulf %124, %128 : vector<1x128xf32>
    %c3_38 = arith.constant 3 : index
    %c0_39 = arith.constant 0 : index
    %130 = vector.load %arg11[%c3_38, %c0_39] : memref<8x128xf32, #tpu.memory_space<vmem>>, vector<1x128xf32>
    tpu.vector_store %arg11[%c3_38, %c0_39], %129 {strides = array<i32>} : memref<8x128xf32, #tpu.memory_space<vmem>>, vector<1x128xf32>,
    %c4 = arith.constant 4 : index
    %c0_40 = arith.constant 0 : index
    %131 = vector.load %arg10[%c4, %c0_40] : memref<8x512xf32, #tpu.memory_space<vmem>>, vector<1x512xf32>
    %132 = arith.truncf %129 : vector<1x128xf32> to vector<1x128xbf16>
    %cst_41 = arith.constant dense<0.000000e+00> : vector<1x512xf32>
    %133 = tpu.matmul %132, %8, %cst_41 {dimension_numbers = #tpu.dot_dimension_numbers<[1], [0], [0], [1], [0, 0, 1, 1], [], []>} : vector<1x128xbf16>, vector<128x512xbf16>, vector<1x512xf32> -> vector<1x512xf32>
    %134 = arith.addf %131, %133 : vector<1x512xf32>
    %135 = vector.extract_strided_slice %134 {offsets = [0, 0], sizes = [1, 128], strides = [1, 1]} : vector<1x512xf32> to vector<1x128xf32>
    %136 = arith.negf %135 : vector<1x128xf32>
    %137 = math.exp %136 : vector<1x128xf32>
    %cst_42 = arith.constant 1.000000e+00 : f32
    %138 = vector.broadcast %cst_42 : f32 to vector<1x128xf32>
    %139 = arith.addf %138, %137 : vector<1x128xf32>
    %140 = arith.divf %138, %139 : vector<1x128xf32>
    %141 = vector.extract_strided_slice %134 {offsets = [0, 128], sizes = [1, 128], strides = [1, 1]} : vector<1x512xf32> to vector<1x128xf32>
    %142 = arith.negf %141 : vector<1x128xf32>
    %143 = math.exp %142 : vector<1x128xf32>
    %cst_43 = arith.constant 1.000000e+00 : f32
    %144 = vector.broadcast %cst_43 : f32 to vector<1x128xf32>
    %145 = arith.addf %144, %143 : vector<1x128xf32>
    %146 = arith.divf %144, %145 : vector<1x128xf32>
    %147 = vector.extract_strided_slice %134 {offsets = [0, 256], sizes = [1, 128], strides = [1, 1]} : vector<1x512xf32> to vector<1x128xf32>
    %148 = math.tanh %147 : vector<1x128xf32>
    %149 = vector.extract_strided_slice %134 {offsets = [0, 384], sizes = [1, 128], strides = [1, 1]} : vector<1x512xf32> to vector<1x128xf32>
    %150 = arith.negf %149 : vector<1x128xf32>
    %151 = math.exp %150 : vector<1x128xf32>
    %cst_44 = arith.constant 1.000000e+00 : f32
    %152 = vector.broadcast %cst_44 : f32 to vector<1x128xf32>
    %153 = arith.addf %152, %151 : vector<1x128xf32>
    %154 = arith.divf %152, %153 : vector<1x128xf32>
    %155 = arith.mulf %146, %127 : vector<1x128xf32>
    %156 = arith.mulf %140, %148 : vector<1x128xf32>
    %157 = arith.addf %155, %156 : vector<1x128xf32>
    %158 = math.tanh %157 : vector<1x128xf32>
    %159 = arith.mulf %154, %158 : vector<1x128xf32>
    %c4_45 = arith.constant 4 : index
    %c0_46 = arith.constant 0 : index
    %160 = vector.load %arg11[%c4_45, %c0_46] : memref<8x128xf32, #tpu.memory_space<vmem>>, vector<1x128xf32>
    tpu.vector_store %arg11[%c4_45, %c0_46], %159 {strides = array<i32>} : memref<8x128xf32, #tpu.memory_space<vmem>>, vector<1x128xf32>,
    %c5 = arith.constant 5 : index
    %c0_47 = arith.constant 0 : index
    %161 = vector.load %arg10[%c5, %c0_47] : memref<8x512xf32, #tpu.memory_space<vmem>>, vector<1x512xf32>
    %162 = arith.truncf %159 : vector<1x128xf32> to vector<1x128xbf16>
    %cst_48 = arith.constant dense<0.000000e+00> : vector<1x512xf32>
    %163 = tpu.matmul %162, %8, %cst_48 {dimension_numbers = #tpu.dot_dimension_numbers<[1], [0], [0], [1], [0, 0, 1, 1], [], []>} : vector<1x128xbf16>, vector<128x512xbf16>, vector<1x512xf32> -> vector<1x512xf32>
    %164 = arith.addf %161, %163 : vector<1x512xf32>
    %165 = vector.extract_strided_slice %164 {offsets = [0, 0], sizes = [1, 128], strides = [1, 1]} : vector<1x512xf32> to vector<1x128xf32>
    %166 = arith.negf %165 : vector<1x128xf32>
    %167 = math.exp %166 : vector<1x128xf32>
    %cst_49 = arith.constant 1.000000e+00 : f32
    %168 = vector.broadcast %cst_49 : f32 to vector<1x128xf32>
    %169 = arith.addf %168, %167 : vector<1x128xf32>
    %170 = arith.divf %168, %169 : vector<1x128xf32>
    %171 = vector.extract_strided_slice %164 {offsets = [0, 128], sizes = [1, 128], strides = [1, 1]} : vector<1x512xf32> to vector<1x128xf32>
    %172 = arith.negf %171 : vector<1x128xf32>
    %173 = math.exp %172 : vector<1x128xf32>
    %cst_50 = arith.constant 1.000000e+00 : f32
    %174 = vector.broadcast %cst_50 : f32 to vector<1x128xf32>
    %175 = arith.addf %174, %173 : vector<1x128xf32>
    %176 = arith.divf %174, %175 : vector<1x128xf32>
    %177 = vector.extract_strided_slice %164 {offsets = [0, 256], sizes = [1, 128], strides = [1, 1]} : vector<1x512xf32> to vector<1x128xf32>
    %178 = math.tanh %177 : vector<1x128xf32>
    %179 = vector.extract_strided_slice %164 {offsets = [0, 384], sizes = [1, 128], strides = [1, 1]} : vector<1x512xf32> to vector<1x128xf32>
    %180 = arith.negf %179 : vector<1x128xf32>
    %181 = math.exp %180 : vector<1x128xf32>
    %cst_51 = arith.constant 1.000000e+00 : f32
    %182 = vector.broadcast %cst_51 : f32 to vector<1x128xf32>
    %183 = arith.addf %182, %181 : vector<1x128xf32>
    %184 = arith.divf %182, %183 : vector<1x128xf32>
    %185 = arith.mulf %176, %157 : vector<1x128xf32>
    %186 = arith.mulf %170, %178 : vector<1x128xf32>
    %187 = arith.addf %185, %186 : vector<1x128xf32>
    %188 = math.tanh %187 : vector<1x128xf32>
    %189 = arith.mulf %184, %188 : vector<1x128xf32>
    %c5_52 = arith.constant 5 : index
    %c0_53 = arith.constant 0 : index
    %190 = vector.load %arg11[%c5_52, %c0_53] : memref<8x128xf32, #tpu.memory_space<vmem>>, vector<1x128xf32>
    tpu.vector_store %arg11[%c5_52, %c0_53], %189 {strides = array<i32>} : memref<8x128xf32, #tpu.memory_space<vmem>>, vector<1x128xf32>,
    %c6 = arith.constant 6 : index
    %c0_54 = arith.constant 0 : index
    %191 = vector.load %arg10[%c6, %c0_54] : memref<8x512xf32, #tpu.memory_space<vmem>>, vector<1x512xf32>
    %192 = arith.truncf %189 : vector<1x128xf32> to vector<1x128xbf16>
    %cst_55 = arith.constant dense<0.000000e+00> : vector<1x512xf32>
    %193 = tpu.matmul %192, %8, %cst_55 {dimension_numbers = #tpu.dot_dimension_numbers<[1], [0], [0], [1], [0, 0, 1, 1], [], []>} : vector<1x128xbf16>, vector<128x512xbf16>, vector<1x512xf32> -> vector<1x512xf32>
    %194 = arith.addf %191, %193 : vector<1x512xf32>
    %195 = vector.extract_strided_slice %194 {offsets = [0, 0], sizes = [1, 128], strides = [1, 1]} : vector<1x512xf32> to vector<1x128xf32>
    %196 = arith.negf %195 : vector<1x128xf32>
    %197 = math.exp %196 : vector<1x128xf32>
    %cst_56 = arith.constant 1.000000e+00 : f32
    %198 = vector.broadcast %cst_56 : f32 to vector<1x128xf32>
    %199 = arith.addf %198, %197 : vector<1x128xf32>
    %200 = arith.divf %198, %199 : vector<1x128xf32>
    %201 = vector.extract_strided_slice %194 {offsets = [0, 128], sizes = [1, 128], strides = [1, 1]} : vector<1x512xf32> to vector<1x128xf32>
    %202 = arith.negf %201 : vector<1x128xf32>
    %203 = math.exp %202 : vector<1x128xf32>
    %cst_57 = arith.constant 1.000000e+00 : f32
    %204 = vector.broadcast %cst_57 : f32 to vector<1x128xf32>
    %205 = arith.addf %204, %203 : vector<1x128xf32>
    %206 = arith.divf %204, %205 : vector<1x128xf32>
    %207 = vector.extract_strided_slice %194 {offsets = [0, 256], sizes = [1, 128], strides = [1, 1]} : vector<1x512xf32> to vector<1x128xf32>
    %208 = math.tanh %207 : vector<1x128xf32>
    %209 = vector.extract_strided_slice %194 {offsets = [0, 384], sizes = [1, 128], strides = [1, 1]} : vector<1x512xf32> to vector<1x128xf32>
    %210 = arith.negf %209 : vector<1x128xf32>
    %211 = math.exp %210 : vector<1x128xf32>
    %cst_58 = arith.constant 1.000000e+00 : f32
    %212 = vector.broadcast %cst_58 : f32 to vector<1x128xf32>
    %213 = arith.addf %212, %211 : vector<1x128xf32>
    %214 = arith.divf %212, %213 : vector<1x128xf32>
    %215 = arith.mulf %206, %187 : vector<1x128xf32>
    %216 = arith.mulf %200, %208 : vector<1x128xf32>
    %217 = arith.addf %215, %216 : vector<1x128xf32>
    %218 = math.tanh %217 : vector<1x128xf32>
    %219 = arith.mulf %214, %218 : vector<1x128xf32>
    %c6_59 = arith.constant 6 : index
    %c0_60 = arith.constant 0 : index
    %220 = vector.load %arg11[%c6_59, %c0_60] : memref<8x128xf32, #tpu.memory_space<vmem>>, vector<1x128xf32>
    tpu.vector_store %arg11[%c6_59, %c0_60], %219 {strides = array<i32>} : memref<8x128xf32, #tpu.memory_space<vmem>>, vector<1x128xf32>,
    %c7 = arith.constant 7 : index
    %c0_61 = arith.constant 0 : index
    %221 = vector.load %arg10[%c7, %c0_61] : memref<8x512xf32, #tpu.memory_space<vmem>>, vector<1x512xf32>
    %222 = arith.truncf %219 : vector<1x128xf32> to vector<1x128xbf16>
    %cst_62 = arith.constant dense<0.000000e+00> : vector<1x512xf32>
    %223 = tpu.matmul %222, %8, %cst_62 {dimension_numbers = #tpu.dot_dimension_numbers<[1], [0], [0], [1], [0, 0, 1, 1], [], []>} : vector<1x128xbf16>, vector<128x512xbf16>, vector<1x512xf32> -> vector<1x512xf32>
    %224 = arith.addf %221, %223 : vector<1x512xf32>
    %225 = vector.extract_strided_slice %224 {offsets = [0, 0], sizes = [1, 128], strides = [1, 1]} : vector<1x512xf32> to vector<1x128xf32>
    %226 = arith.negf %225 : vector<1x128xf32>
    %227 = math.exp %226 : vector<1x128xf32>
    %cst_63 = arith.constant 1.000000e+00 : f32
    %228 = vector.broadcast %cst_63 : f32 to vector<1x128xf32>
    %229 = arith.addf %228, %227 : vector<1x128xf32>
    %230 = arith.divf %228, %229 : vector<1x128xf32>
    %231 = vector.extract_strided_slice %224 {offsets = [0, 128], sizes = [1, 128], strides = [1, 1]} : vector<1x512xf32> to vector<1x128xf32>
    %232 = arith.negf %231 : vector<1x128xf32>
    %233 = math.exp %232 : vector<1x128xf32>
    %cst_64 = arith.constant 1.000000e+00 : f32
    %234 = vector.broadcast %cst_64 : f32 to vector<1x128xf32>
    %235 = arith.addf %234, %233 : vector<1x128xf32>
    %236 = arith.divf %234, %235 : vector<1x128xf32>
    %237 = vector.extract_strided_slice %224 {offsets = [0, 256], sizes = [1, 128], strides = [1, 1]} : vector<1x512xf32> to vector<1x128xf32>
    %238 = math.tanh %237 : vector<1x128xf32>
    %239 = vector.extract_strided_slice %224 {offsets = [0, 384], sizes = [1, 128], strides = [1, 1]} : vector<1x512xf32> to vector<1x128xf32>
    %240 = arith.negf %239 : vector<1x128xf32>
    %241 = math.exp %240 : vector<1x128xf32>
    %cst_65 = arith.constant 1.000000e+00 : f32
    %242 = vector.broadcast %cst_65 : f32 to vector<1x128xf32>
    %243 = arith.addf %242, %241 : vector<1x128xf32>
    %244 = arith.divf %242, %243 : vector<1x128xf32>
    %245 = arith.mulf %236, %217 : vector<1x128xf32>
    %246 = arith.mulf %230, %238 : vector<1x128xf32>
    %247 = arith.addf %245, %246 : vector<1x128xf32>
    %248 = math.tanh %247 : vector<1x128xf32>
    %249 = arith.mulf %244, %248 : vector<1x128xf32>
    %c7_66 = arith.constant 7 : index
    %c0_67 = arith.constant 0 : index
    %250 = vector.load %arg11[%c7_66, %c0_67] : memref<8x128xf32, #tpu.memory_space<vmem>>, vector<1x128xf32>
    tpu.vector_store %arg11[%c7_66, %c0_67], %249 {strides = array<i32>} : memref<8x128xf32, #tpu.memory_space<vmem>>, vector<1x128xf32>,
    %c0_68 = arith.constant 0 : index
    %c0_69 = arith.constant 0 : index
    %251 = vector.load %arg11[%c0_68, %c0_69] : memref<8x128xf32, #tpu.memory_space<vmem>>, vector<8x128xf32>
    %252 = arith.truncf %251 : vector<8x128xf32> to vector<8x128xbf16>
    %c0_70 = arith.constant 0 : index
    %c0_71 = arith.constant 0 : index
    %253 = vector.load %arg4[%c0_70, %c0_71] : memref<128x512xbf16, #tpu.memory_space<vmem>>, vector<128x512xbf16>
    %cst_72 = arith.constant dense<0.000000e+00> : vector<8x512xf32>
    %254 = tpu.matmul %252, %253, %cst_72 {dimension_numbers = #tpu.dot_dimension_numbers<[1], [0], [0], [1], [0, 0, 1, 1], [], []>} : vector<8x128xbf16>, vector<128x512xbf16>, vector<8x512xf32> -> vector<8x512xf32>
    %c0_73 = arith.constant 0 : index
    %c0_74 = arith.constant 0 : index
    %255 = vector.load %arg6[%c0_73, %c0_74] : memref<1x512xf32, #tpu.memory_space<vmem>>, vector<1x512xf32>
    %256 = vector.broadcast %255 : vector<1x512xf32> to vector<8x512xf32>
    %257 = arith.addf %254, %256 : vector<8x512xf32>
    %c0_75 = arith.constant 0 : index
    %c0_76 = arith.constant 0 : index
    %258 = vector.load %arg10[%c0_75, %c0_76] : memref<8x512xf32, #tpu.memory_space<vmem>>, vector<8x512xf32>
    tpu.vector_store %arg10[%c0_75, %c0_76], %257 {strides = array<i32>} : memref<8x512xf32, #tpu.memory_space<vmem>>, vector<8x512xf32>,
    %c0_77 = arith.constant 0 : index
    %c0_78 = arith.constant 0 : index
    %259 = vector.load %arg5[%c0_77, %c0_78] : memref<128x512xbf16, #tpu.memory_space<vmem>>, vector<128x512xbf16>
    %cst_79 = arith.constant 0.000000e+00 : f32
    %260 = vector.broadcast %cst_79 : f32 to vector<1x128xf32>
    %cst_80 = arith.constant 0.000000e+00 : f32
    %261 = vector.broadcast %cst_80 : f32 to vector<1x128xf32>
    %c0_81 = arith.constant 0 : index
    %c0_82 = arith.constant 0 : index
    %262 = vector.load %arg10[%c0_81, %c0_82] : memref<8x512xf32, #tpu.memory_space<vmem>>, vector<1x512xf32>
    %263 = arith.truncf %260 : vector<1x128xf32> to vector<1x128xbf16>
    %cst_83 = arith.constant dense<0.000000e+00> : vector<1x512xf32>
    %264 = tpu.matmul %263, %259, %cst_83 {dimension_numbers = #tpu.dot_dimension_numbers<[1], [0], [0], [1], [0, 0, 1, 1], [], []>} : vector<1x128xbf16>, vector<128x512xbf16>, vector<1x512xf32> -> vector<1x512xf32>
    %265 = arith.addf %262, %264 : vector<1x512xf32>
    %266 = vector.extract_strided_slice %265 {offsets = [0, 0], sizes = [1, 128], strides = [1, 1]} : vector<1x512xf32> to vector<1x128xf32>
    %267 = arith.negf %266 : vector<1x128xf32>
    %268 = math.exp %267 : vector<1x128xf32>
    %cst_84 = arith.constant 1.000000e+00 : f32
    %269 = vector.broadcast %cst_84 : f32 to vector<1x128xf32>
    %270 = arith.addf %269, %268 : vector<1x128xf32>
    %271 = arith.divf %269, %270 : vector<1x128xf32>
    %272 = vector.extract_strided_slice %265 {offsets = [0, 128], sizes = [1, 128], strides = [1, 1]} : vector<1x512xf32> to vector<1x128xf32>
    %273 = arith.negf %272 : vector<1x128xf32>
    %274 = math.exp %273 : vector<1x128xf32>
    %cst_85 = arith.constant 1.000000e+00 : f32
    %275 = vector.broadcast %cst_85 : f32 to vector<1x128xf32>
    %276 = arith.addf %275, %274 : vector<1x128xf32>
    %277 = arith.divf %275, %276 : vector<1x128xf32>
    %278 = vector.extract_strided_slice %265 {offsets = [0, 256], sizes = [1, 128], strides = [1, 1]} : vector<1x512xf32> to vector<1x128xf32>
    %279 = math.tanh %278 : vector<1x128xf32>
    %280 = vector.extract_strided_slice %265 {offsets = [0, 384], sizes = [1, 128], strides = [1, 1]} : vector<1x512xf32> to vector<1x128xf32>
    %281 = arith.negf %280 : vector<1x128xf32>
    %282 = math.exp %281 : vector<1x128xf32>
    %cst_86 = arith.constant 1.000000e+00 : f32
    %283 = vector.broadcast %cst_86 : f32 to vector<1x128xf32>
    %284 = arith.addf %283, %282 : vector<1x128xf32>
    %285 = arith.divf %283, %284 : vector<1x128xf32>
    %286 = arith.mulf %277, %261 : vector<1x128xf32>
    %287 = arith.mulf %271, %279 : vector<1x128xf32>
    %288 = arith.addf %286, %287 : vector<1x128xf32>
    %289 = math.tanh %288 : vector<1x128xf32>
    %290 = arith.mulf %285, %289 : vector<1x128xf32>
    %c0_87 = arith.constant 0 : index
    %c0_88 = arith.constant 0 : index
    %291 = vector.load %arg12[%c0_87, %c0_88] : memref<8x128xf32, #tpu.memory_space<vmem>>, vector<1x128xf32>
    tpu.vector_store %arg12[%c0_87, %c0_88], %290 {strides = array<i32>} : memref<8x128xf32, #tpu.memory_space<vmem>>, vector<1x128xf32>,
    %c1_89 = arith.constant 1 : index
    %c0_90 = arith.constant 0 : index
    %292 = vector.load %arg10[%c1_89, %c0_90] : memref<8x512xf32, #tpu.memory_space<vmem>>, vector<1x512xf32>
    %293 = arith.truncf %290 : vector<1x128xf32> to vector<1x128xbf16>
    %cst_91 = arith.constant dense<0.000000e+00> : vector<1x512xf32>
    %294 = tpu.matmul %293, %259, %cst_91 {dimension_numbers = #tpu.dot_dimension_numbers<[1], [0], [0], [1], [0, 0, 1, 1], [], []>} : vector<1x128xbf16>, vector<128x512xbf16>, vector<1x512xf32> -> vector<1x512xf32>
    %295 = arith.addf %292, %294 : vector<1x512xf32>
    %296 = vector.extract_strided_slice %295 {offsets = [0, 0], sizes = [1, 128], strides = [1, 1]} : vector<1x512xf32> to vector<1x128xf32>
    %297 = arith.negf %296 : vector<1x128xf32>
    %298 = math.exp %297 : vector<1x128xf32>
    %cst_92 = arith.constant 1.000000e+00 : f32
    %299 = vector.broadcast %cst_92 : f32 to vector<1x128xf32>
    %300 = arith.addf %299, %298 : vector<1x128xf32>
    %301 = arith.divf %299, %300 : vector<1x128xf32>
    %302 = vector.extract_strided_slice %295 {offsets = [0, 128], sizes = [1, 128], strides = [1, 1]} : vector<1x512xf32> to vector<1x128xf32>
    %303 = arith.negf %302 : vector<1x128xf32>
    %304 = math.exp %303 : vector<1x128xf32>
    %cst_93 = arith.constant 1.000000e+00 : f32
    %305 = vector.broadcast %cst_93 : f32 to vector<1x128xf32>
    %306 = arith.addf %305, %304 : vector<1x128xf32>
    %307 = arith.divf %305, %306 : vector<1x128xf32>
    %308 = vector.extract_strided_slice %295 {offsets = [0, 256], sizes = [1, 128], strides = [1, 1]} : vector<1x512xf32> to vector<1x128xf32>
    %309 = math.tanh %308 : vector<1x128xf32>
    %310 = vector.extract_strided_slice %295 {offsets = [0, 384], sizes = [1, 128], strides = [1, 1]} : vector<1x512xf32> to vector<1x128xf32>
    %311 = arith.negf %310 : vector<1x128xf32>
    %312 = math.exp %311 : vector<1x128xf32>
    %cst_94 = arith.constant 1.000000e+00 : f32
    %313 = vector.broadcast %cst_94 : f32 to vector<1x128xf32>
    %314 = arith.addf %313, %312 : vector<1x128xf32>
    %315 = arith.divf %313, %314 : vector<1x128xf32>
    %316 = arith.mulf %307, %288 : vector<1x128xf32>
    %317 = arith.mulf %301, %309 : vector<1x128xf32>
    %318 = arith.addf %316, %317 : vector<1x128xf32>
    %319 = math.tanh %318 : vector<1x128xf32>
    %320 = arith.mulf %315, %319 : vector<1x128xf32>
    %c1_95 = arith.constant 1 : index
    %c0_96 = arith.constant 0 : index
    %321 = vector.load %arg12[%c1_95, %c0_96] : memref<8x128xf32, #tpu.memory_space<vmem>>, vector<1x128xf32>
    tpu.vector_store %arg12[%c1_95, %c0_96], %320 {strides = array<i32>} : memref<8x128xf32, #tpu.memory_space<vmem>>, vector<1x128xf32>,
    %c2_97 = arith.constant 2 : index
    %c0_98 = arith.constant 0 : index
    %322 = vector.load %arg10[%c2_97, %c0_98] : memref<8x512xf32, #tpu.memory_space<vmem>>, vector<1x512xf32>
    %323 = arith.truncf %320 : vector<1x128xf32> to vector<1x128xbf16>
    %cst_99 = arith.constant dense<0.000000e+00> : vector<1x512xf32>
    %324 = tpu.matmul %323, %259, %cst_99 {dimension_numbers = #tpu.dot_dimension_numbers<[1], [0], [0], [1], [0, 0, 1, 1], [], []>} : vector<1x128xbf16>, vector<128x512xbf16>, vector<1x512xf32> -> vector<1x512xf32>
    %325 = arith.addf %322, %324 : vector<1x512xf32>
    %326 = vector.extract_strided_slice %325 {offsets = [0, 0], sizes = [1, 128], strides = [1, 1]} : vector<1x512xf32> to vector<1x128xf32>
    %327 = arith.negf %326 : vector<1x128xf32>
    %328 = math.exp %327 : vector<1x128xf32>
    %cst_100 = arith.constant 1.000000e+00 : f32
    %329 = vector.broadcast %cst_100 : f32 to vector<1x128xf32>
    %330 = arith.addf %329, %328 : vector<1x128xf32>
    %331 = arith.divf %329, %330 : vector<1x128xf32>
    %332 = vector.extract_strided_slice %325 {offsets = [0, 128], sizes = [1, 128], strides = [1, 1]} : vector<1x512xf32> to vector<1x128xf32>
    %333 = arith.negf %332 : vector<1x128xf32>
    %334 = math.exp %333 : vector<1x128xf32>
    %cst_101 = arith.constant 1.000000e+00 : f32
    %335 = vector.broadcast %cst_101 : f32 to vector<1x128xf32>
    %336 = arith.addf %335, %334 : vector<1x128xf32>
    %337 = arith.divf %335, %336 : vector<1x128xf32>
    %338 = vector.extract_strided_slice %325 {offsets = [0, 256], sizes = [1, 128], strides = [1, 1]} : vector<1x512xf32> to vector<1x128xf32>
    %339 = math.tanh %338 : vector<1x128xf32>
    %340 = vector.extract_strided_slice %325 {offsets = [0, 384], sizes = [1, 128], strides = [1, 1]} : vector<1x512xf32> to vector<1x128xf32>
    %341 = arith.negf %340 : vector<1x128xf32>
    %342 = math.exp %341 : vector<1x128xf32>
    %cst_102 = arith.constant 1.000000e+00 : f32
    %343 = vector.broadcast %cst_102 : f32 to vector<1x128xf32>
    %344 = arith.addf %343, %342 : vector<1x128xf32>
    %345 = arith.divf %343, %344 : vector<1x128xf32>
    %346 = arith.mulf %337, %318 : vector<1x128xf32>
    %347 = arith.mulf %331, %339 : vector<1x128xf32>
    %348 = arith.addf %346, %347 : vector<1x128xf32>
    %349 = math.tanh %348 : vector<1x128xf32>
    %350 = arith.mulf %345, %349 : vector<1x128xf32>
    %c2_103 = arith.constant 2 : index
    %c0_104 = arith.constant 0 : index
    %351 = vector.load %arg12[%c2_103, %c0_104] : memref<8x128xf32, #tpu.memory_space<vmem>>, vector<1x128xf32>
    tpu.vector_store %arg12[%c2_103, %c0_104], %350 {strides = array<i32>} : memref<8x128xf32, #tpu.memory_space<vmem>>, vector<1x128xf32>,
    %c3_105 = arith.constant 3 : index
    %c0_106 = arith.constant 0 : index
    %352 = vector.load %arg10[%c3_105, %c0_106] : memref<8x512xf32, #tpu.memory_space<vmem>>, vector<1x512xf32>
    %353 = arith.truncf %350 : vector<1x128xf32> to vector<1x128xbf16>
    %cst_107 = arith.constant dense<0.000000e+00> : vector<1x512xf32>
    %354 = tpu.matmul %353, %259, %cst_107 {dimension_numbers = #tpu.dot_dimension_numbers<[1], [0], [0], [1], [0, 0, 1, 1], [], []>} : vector<1x128xbf16>, vector<128x512xbf16>, vector<1x512xf32> -> vector<1x512xf32>
    %355 = arith.addf %352, %354 : vector<1x512xf32>
    %356 = vector.extract_strided_slice %355 {offsets = [0, 0], sizes = [1, 128], strides = [1, 1]} : vector<1x512xf32> to vector<1x128xf32>
    %357 = arith.negf %356 : vector<1x128xf32>
    %358 = math.exp %357 : vector<1x128xf32>
    %cst_108 = arith.constant 1.000000e+00 : f32
    %359 = vector.broadcast %cst_108 : f32 to vector<1x128xf32>
    %360 = arith.addf %359, %358 : vector<1x128xf32>
    %361 = arith.divf %359, %360 : vector<1x128xf32>
    %362 = vector.extract_strided_slice %355 {offsets = [0, 128], sizes = [1, 128], strides = [1, 1]} : vector<1x512xf32> to vector<1x128xf32>
    %363 = arith.negf %362 : vector<1x128xf32>
    %364 = math.exp %363 : vector<1x128xf32>
    %cst_109 = arith.constant 1.000000e+00 : f32
    %365 = vector.broadcast %cst_109 : f32 to vector<1x128xf32>
    %366 = arith.addf %365, %364 : vector<1x128xf32>
    %367 = arith.divf %365, %366 : vector<1x128xf32>
    %368 = vector.extract_strided_slice %355 {offsets = [0, 256], sizes = [1, 128], strides = [1, 1]} : vector<1x512xf32> to vector<1x128xf32>
    %369 = math.tanh %368 : vector<1x128xf32>
    %370 = vector.extract_strided_slice %355 {offsets = [0, 384], sizes = [1, 128], strides = [1, 1]} : vector<1x512xf32> to vector<1x128xf32>
    %371 = arith.negf %370 : vector<1x128xf32>
    %372 = math.exp %371 : vector<1x128xf32>
    %cst_110 = arith.constant 1.000000e+00 : f32
    %373 = vector.broadcast %cst_110 : f32 to vector<1x128xf32>
    %374 = arith.addf %373, %372 : vector<1x128xf32>
    %375 = arith.divf %373, %374 : vector<1x128xf32>
    %376 = arith.mulf %367, %348 : vector<1x128xf32>
    %377 = arith.mulf %361, %369 : vector<1x128xf32>
    %378 = arith.addf %376, %377 : vector<1x128xf32>
    %379 = math.tanh %378 : vector<1x128xf32>
    %380 = arith.mulf %375, %379 : vector<1x128xf32>
    %c3_111 = arith.constant 3 : index
    %c0_112 = arith.constant 0 : index
    %381 = vector.load %arg12[%c3_111, %c0_112] : memref<8x128xf32, #tpu.memory_space<vmem>>, vector<1x128xf32>
    tpu.vector_store %arg12[%c3_111, %c0_112], %380 {strides = array<i32>} : memref<8x128xf32, #tpu.memory_space<vmem>>, vector<1x128xf32>,
    %c4_113 = arith.constant 4 : index
    %c0_114 = arith.constant 0 : index
    %382 = vector.load %arg10[%c4_113, %c0_114] : memref<8x512xf32, #tpu.memory_space<vmem>>, vector<1x512xf32>
    %383 = arith.truncf %380 : vector<1x128xf32> to vector<1x128xbf16>
    %cst_115 = arith.constant dense<0.000000e+00> : vector<1x512xf32>
    %384 = tpu.matmul %383, %259, %cst_115 {dimension_numbers = #tpu.dot_dimension_numbers<[1], [0], [0], [1], [0, 0, 1, 1], [], []>} : vector<1x128xbf16>, vector<128x512xbf16>, vector<1x512xf32> -> vector<1x512xf32>
    %385 = arith.addf %382, %384 : vector<1x512xf32>
    %386 = vector.extract_strided_slice %385 {offsets = [0, 0], sizes = [1, 128], strides = [1, 1]} : vector<1x512xf32> to vector<1x128xf32>
    %387 = arith.negf %386 : vector<1x128xf32>
    %388 = math.exp %387 : vector<1x128xf32>
    %cst_116 = arith.constant 1.000000e+00 : f32
    %389 = vector.broadcast %cst_116 : f32 to vector<1x128xf32>
    %390 = arith.addf %389, %388 : vector<1x128xf32>
    %391 = arith.divf %389, %390 : vector<1x128xf32>
    %392 = vector.extract_strided_slice %385 {offsets = [0, 128], sizes = [1, 128], strides = [1, 1]} : vector<1x512xf32> to vector<1x128xf32>
    %393 = arith.negf %392 : vector<1x128xf32>
    %394 = math.exp %393 : vector<1x128xf32>
    %cst_117 = arith.constant 1.000000e+00 : f32
    %395 = vector.broadcast %cst_117 : f32 to vector<1x128xf32>
    %396 = arith.addf %395, %394 : vector<1x128xf32>
    %397 = arith.divf %395, %396 : vector<1x128xf32>
    %398 = vector.extract_strided_slice %385 {offsets = [0, 256], sizes = [1, 128], strides = [1, 1]} : vector<1x512xf32> to vector<1x128xf32>
    %399 = math.tanh %398 : vector<1x128xf32>
    %400 = vector.extract_strided_slice %385 {offsets = [0, 384], sizes = [1, 128], strides = [1, 1]} : vector<1x512xf32> to vector<1x128xf32>
    %401 = arith.negf %400 : vector<1x128xf32>
    %402 = math.exp %401 : vector<1x128xf32>
    %cst_118 = arith.constant 1.000000e+00 : f32
    %403 = vector.broadcast %cst_118 : f32 to vector<1x128xf32>
    %404 = arith.addf %403, %402 : vector<1x128xf32>
    %405 = arith.divf %403, %404 : vector<1x128xf32>
    %406 = arith.mulf %397, %378 : vector<1x128xf32>
    %407 = arith.mulf %391, %399 : vector<1x128xf32>
    %408 = arith.addf %406, %407 : vector<1x128xf32>
    %409 = math.tanh %408 : vector<1x128xf32>
    %410 = arith.mulf %405, %409 : vector<1x128xf32>
    %c4_119 = arith.constant 4 : index
    %c0_120 = arith.constant 0 : index
    %411 = vector.load %arg12[%c4_119, %c0_120] : memref<8x128xf32, #tpu.memory_space<vmem>>, vector<1x128xf32>
    tpu.vector_store %arg12[%c4_119, %c0_120], %410 {strides = array<i32>} : memref<8x128xf32, #tpu.memory_space<vmem>>, vector<1x128xf32>,
    %c5_121 = arith.constant 5 : index
    %c0_122 = arith.constant 0 : index
    %412 = vector.load %arg10[%c5_121, %c0_122] : memref<8x512xf32, #tpu.memory_space<vmem>>, vector<1x512xf32>
    %413 = arith.truncf %410 : vector<1x128xf32> to vector<1x128xbf16>
    %cst_123 = arith.constant dense<0.000000e+00> : vector<1x512xf32>
    %414 = tpu.matmul %413, %259, %cst_123 {dimension_numbers = #tpu.dot_dimension_numbers<[1], [0], [0], [1], [0, 0, 1, 1], [], []>} : vector<1x128xbf16>, vector<128x512xbf16>, vector<1x512xf32> -> vector<1x512xf32>
    %415 = arith.addf %412, %414 : vector<1x512xf32>
    %416 = vector.extract_strided_slice %415 {offsets = [0, 0], sizes = [1, 128], strides = [1, 1]} : vector<1x512xf32> to vector<1x128xf32>
    %417 = arith.negf %416 : vector<1x128xf32>
    %418 = math.exp %417 : vector<1x128xf32>
    %cst_124 = arith.constant 1.000000e+00 : f32
    %419 = vector.broadcast %cst_124 : f32 to vector<1x128xf32>
    %420 = arith.addf %419, %418 : vector<1x128xf32>
    %421 = arith.divf %419, %420 : vector<1x128xf32>
    %422 = vector.extract_strided_slice %415 {offsets = [0, 128], sizes = [1, 128], strides = [1, 1]} : vector<1x512xf32> to vector<1x128xf32>
    %423 = arith.negf %422 : vector<1x128xf32>
    %424 = math.exp %423 : vector<1x128xf32>
    %cst_125 = arith.constant 1.000000e+00 : f32
    %425 = vector.broadcast %cst_125 : f32 to vector<1x128xf32>
    %426 = arith.addf %425, %424 : vector<1x128xf32>
    %427 = arith.divf %425, %426 : vector<1x128xf32>
    %428 = vector.extract_strided_slice %415 {offsets = [0, 256], sizes = [1, 128], strides = [1, 1]} : vector<1x512xf32> to vector<1x128xf32>
    %429 = math.tanh %428 : vector<1x128xf32>
    %430 = vector.extract_strided_slice %415 {offsets = [0, 384], sizes = [1, 128], strides = [1, 1]} : vector<1x512xf32> to vector<1x128xf32>
    %431 = arith.negf %430 : vector<1x128xf32>
    %432 = math.exp %431 : vector<1x128xf32>
    %cst_126 = arith.constant 1.000000e+00 : f32
    %433 = vector.broadcast %cst_126 : f32 to vector<1x128xf32>
    %434 = arith.addf %433, %432 : vector<1x128xf32>
    %435 = arith.divf %433, %434 : vector<1x128xf32>
    %436 = arith.mulf %427, %408 : vector<1x128xf32>
    %437 = arith.mulf %421, %429 : vector<1x128xf32>
    %438 = arith.addf %436, %437 : vector<1x128xf32>
    %439 = math.tanh %438 : vector<1x128xf32>
    %440 = arith.mulf %435, %439 : vector<1x128xf32>
    %c5_127 = arith.constant 5 : index
    %c0_128 = arith.constant 0 : index
    %441 = vector.load %arg12[%c5_127, %c0_128] : memref<8x128xf32, #tpu.memory_space<vmem>>, vector<1x128xf32>
    tpu.vector_store %arg12[%c5_127, %c0_128], %440 {strides = array<i32>} : memref<8x128xf32, #tpu.memory_space<vmem>>, vector<1x128xf32>,
    %c6_129 = arith.constant 6 : index
    %c0_130 = arith.constant 0 : index
    %442 = vector.load %arg10[%c6_129, %c0_130] : memref<8x512xf32, #tpu.memory_space<vmem>>, vector<1x512xf32>
    %443 = arith.truncf %440 : vector<1x128xf32> to vector<1x128xbf16>
    %cst_131 = arith.constant dense<0.000000e+00> : vector<1x512xf32>
    %444 = tpu.matmul %443, %259, %cst_131 {dimension_numbers = #tpu.dot_dimension_numbers<[1], [0], [0], [1], [0, 0, 1, 1], [], []>} : vector<1x128xbf16>, vector<128x512xbf16>, vector<1x512xf32> -> vector<1x512xf32>
    %445 = arith.addf %442, %444 : vector<1x512xf32>
    %446 = vector.extract_strided_slice %445 {offsets = [0, 0], sizes = [1, 128], strides = [1, 1]} : vector<1x512xf32> to vector<1x128xf32>
    %447 = arith.negf %446 : vector<1x128xf32>
    %448 = math.exp %447 : vector<1x128xf32>
    %cst_132 = arith.constant 1.000000e+00 : f32
    %449 = vector.broadcast %cst_132 : f32 to vector<1x128xf32>
    %450 = arith.addf %449, %448 : vector<1x128xf32>
    %451 = arith.divf %449, %450 : vector<1x128xf32>
    %452 = vector.extract_strided_slice %445 {offsets = [0, 128], sizes = [1, 128], strides = [1, 1]} : vector<1x512xf32> to vector<1x128xf32>
    %453 = arith.negf %452 : vector<1x128xf32>
    %454 = math.exp %453 : vector<1x128xf32>
    %cst_133 = arith.constant 1.000000e+00 : f32
    %455 = vector.broadcast %cst_133 : f32 to vector<1x128xf32>
    %456 = arith.addf %455, %454 : vector<1x128xf32>
    %457 = arith.divf %455, %456 : vector<1x128xf32>
    %458 = vector.extract_strided_slice %445 {offsets = [0, 256], sizes = [1, 128], strides = [1, 1]} : vector<1x512xf32> to vector<1x128xf32>
    %459 = math.tanh %458 : vector<1x128xf32>
    %460 = vector.extract_strided_slice %445 {offsets = [0, 384], sizes = [1, 128], strides = [1, 1]} : vector<1x512xf32> to vector<1x128xf32>
    %461 = arith.negf %460 : vector<1x128xf32>
    %462 = math.exp %461 : vector<1x128xf32>
    %cst_134 = arith.constant 1.000000e+00 : f32
    %463 = vector.broadcast %cst_134 : f32 to vector<1x128xf32>
    %464 = arith.addf %463, %462 : vector<1x128xf32>
    %465 = arith.divf %463, %464 : vector<1x128xf32>
    %466 = arith.mulf %457, %438 : vector<1x128xf32>
    %467 = arith.mulf %451, %459 : vector<1x128xf32>
    %468 = arith.addf %466, %467 : vector<1x128xf32>
    %469 = math.tanh %468 : vector<1x128xf32>
    %470 = arith.mulf %465, %469 : vector<1x128xf32>
    %c6_135 = arith.constant 6 : index
    %c0_136 = arith.constant 0 : index
    %471 = vector.load %arg12[%c6_135, %c0_136] : memref<8x128xf32, #tpu.memory_space<vmem>>, vector<1x128xf32>
    tpu.vector_store %arg12[%c6_135, %c0_136], %470 {strides = array<i32>} : memref<8x128xf32, #tpu.memory_space<vmem>>, vector<1x128xf32>,
    %c7_137 = arith.constant 7 : index
    %c0_138 = arith.constant 0 : index
    %472 = vector.load %arg10[%c7_137, %c0_138] : memref<8x512xf32, #tpu.memory_space<vmem>>, vector<1x512xf32>
    %473 = arith.truncf %470 : vector<1x128xf32> to vector<1x128xbf16>
    %cst_139 = arith.constant dense<0.000000e+00> : vector<1x512xf32>
    %474 = tpu.matmul %473, %259, %cst_139 {dimension_numbers = #tpu.dot_dimension_numbers<[1], [0], [0], [1], [0, 0, 1, 1], [], []>} : vector<1x128xbf16>, vector<128x512xbf16>, vector<1x512xf32> -> vector<1x512xf32>
    %475 = arith.addf %472, %474 : vector<1x512xf32>
    %476 = vector.extract_strided_slice %475 {offsets = [0, 0], sizes = [1, 128], strides = [1, 1]} : vector<1x512xf32> to vector<1x128xf32>
    %477 = arith.negf %476 : vector<1x128xf32>
    %478 = math.exp %477 : vector<1x128xf32>
    %cst_140 = arith.constant 1.000000e+00 : f32
    %479 = vector.broadcast %cst_140 : f32 to vector<1x128xf32>
    %480 = arith.addf %479, %478 : vector<1x128xf32>
    %481 = arith.divf %479, %480 : vector<1x128xf32>
    %482 = vector.extract_strided_slice %475 {offsets = [0, 128], sizes = [1, 128], strides = [1, 1]} : vector<1x512xf32> to vector<1x128xf32>
    %483 = arith.negf %482 : vector<1x128xf32>
    %484 = math.exp %483 : vector<1x128xf32>
    %cst_141 = arith.constant 1.000000e+00 : f32
    %485 = vector.broadcast %cst_141 : f32 to vector<1x128xf32>
    %486 = arith.addf %485, %484 : vector<1x128xf32>
    %487 = arith.divf %485, %486 : vector<1x128xf32>
    %488 = vector.extract_strided_slice %475 {offsets = [0, 256], sizes = [1, 128], strides = [1, 1]} : vector<1x512xf32> to vector<1x128xf32>
    %489 = math.tanh %488 : vector<1x128xf32>
    %490 = vector.extract_strided_slice %475 {offsets = [0, 384], sizes = [1, 128], strides = [1, 1]} : vector<1x512xf32> to vector<1x128xf32>
    %491 = arith.negf %490 : vector<1x128xf32>
    %492 = math.exp %491 : vector<1x128xf32>
    %cst_142 = arith.constant 1.000000e+00 : f32
    %493 = vector.broadcast %cst_142 : f32 to vector<1x128xf32>
    %494 = arith.addf %493, %492 : vector<1x128xf32>
    %495 = arith.divf %493, %494 : vector<1x128xf32>
    %496 = arith.mulf %487, %468 : vector<1x128xf32>
    %497 = arith.mulf %481, %489 : vector<1x128xf32>
    %498 = arith.addf %496, %497 : vector<1x128xf32>
    %499 = math.tanh %498 : vector<1x128xf32>
    %500 = arith.mulf %495, %499 : vector<1x128xf32>
    %c7_143 = arith.constant 7 : index
    %c0_144 = arith.constant 0 : index
    %501 = vector.load %arg12[%c7_143, %c0_144] : memref<8x128xf32, #tpu.memory_space<vmem>>, vector<1x128xf32>
    tpu.vector_store %arg12[%c7_143, %c0_144], %500 {strides = array<i32>} : memref<8x128xf32, #tpu.memory_space<vmem>>, vector<1x128xf32>,
    %c0_145 = arith.constant 0 : index
    %c0_146 = arith.constant 0 : index
    %502 = vector.load %arg12[%c0_145, %c0_146] : memref<8x128xf32, #tpu.memory_space<vmem>>, vector<8x128xf32>
    %503 = arith.truncf %502 : vector<8x128xf32> to vector<8x128xbf16>
    %c0_147 = arith.constant 0 : index
    %c0_148 = arith.constant 0 : index
    %504 = vector.load %arg7[%c0_147, %c0_148] : memref<128x128xbf16, #tpu.memory_space<vmem>>, vector<128x128xbf16>
    %cst_149 = arith.constant dense<0.000000e+00> : vector<8x128xf32>
    %505 = tpu.matmul %503, %504, %cst_149 {dimension_numbers = #tpu.dot_dimension_numbers<[1], [0], [0], [1], [0, 0, 1, 1], [], []>} : vector<8x128xbf16>, vector<128x128xbf16>, vector<8x128xf32> -> vector<8x128xf32>
    %c0_150 = arith.constant 0 : index
    %c0_151 = arith.constant 0 : index
    %506 = vector.load %arg8[%c0_150, %c0_151] : memref<1x128xf32, #tpu.memory_space<vmem>>, vector<1x128xf32>
    %507 = vector.broadcast %506 : vector<1x128xf32> to vector<8x128xf32>
    %508 = arith.addf %505, %507 : vector<8x128xf32>
    %c0_152 = arith.constant 0 : index
    %c0_153 = arith.constant 0 : index
    %509 = vector.load %arg9[%c0_152, %c0_153] : memref<8x128xf32, #tpu.memory_space<vmem>>, vector<8x128xf32>
    tpu.vector_store %arg9[%c0_152, %c0_153], %508 {strides = array<i32>} : memref<8x128xf32, #tpu.memory_space<vmem>>, vector<8x128xf32>,
    return
  }
}

</mosaic_0001>

<llo_original>
// kernel: rnn_model_forward.1
$region0: #{rnn_model_forward.1}
  #allocation0 [shape = 'u32[]', space=smem, size = 0x4, offset = 0x4, fixed_abs, tag = 'smem constant byte address 0x4 - core index']
  #allocation1 [shape = 'u32[144,128]{1,0:T(1,128)}', space=vmem, size = 0x12000, scoped, tag = 'internal scratch']
  #allocation2 [shape = 'f32[8,512]{1,0:T(8,128)}', space=vmem, size = 0x4000, scoped, tag = 'scratch operand']
  #allocation3 [shape = 'f32[8,128]{1,0:T(8,128)}', space=vmem, size = 0x1000, scoped, tag = 'scratch operand']
  #allocation4 [shape = 'f32[8,128]{1,0:T(8,128)}', space=vmem, size = 0x1000, scoped, tag = 'scratch operand']
  %s0 = inlined_call_operand.hbm [shape: f32[8,512], index: 0, kind: input, shape index: {}]
  %s1 = inlined_call_operand.hbm [shape: bf16[512,512], index: 1, kind: input, shape index: {}]
  %s2 = inlined_call_operand.hbm [shape: bf16[128,512], index: 2, kind: input, shape index: {}]
  %s3 = inlined_call_operand.vmem [shape: f32[1,512], index: 3, kind: input, shape index: {}]
  %s4 = inlined_call_operand.hbm [shape: bf16[128,512], index: 4, kind: input, shape index: {}]
  %s5 = inlined_call_operand.hbm [shape: bf16[128,512], index: 5, kind: input, shape index: {}]
  %s6 = inlined_call_operand.vmem [shape: f32[1,512], index: 6, kind: input, shape index: {}]
  %s7 = inlined_call_operand.hbm [shape: bf16[128,128], index: 7, kind: input, shape index: {}]
  %s8 = inlined_call_operand.vmem [shape: f32[1,128], index: 8, kind: input, shape index: {}]
  %s9 = inlined_call_operand.vmem [shape: f32[8,128], index: 9, kind: output, shape index: {}]
  %s10 = sld [smem:[#allocation0]]
  $region70: #{rnn_model_forward.1} parent=0
    _
  %s12 = ssub.s32 1, %s10
  %s13 = scalar_select 0, %s12, %s10
  $region1: #{rnn_model_forward.1} parent=0
    #allocation5 [shape = 'u8[16384]{0}', space=vmem, size = 0x4000, scoped, tag = 'input window, operand 0, single buffered']
    #allocation6 [shape = 's32[1]{0}', space=sflag, size = 0x4, scoped, tag = 'scoped memory for rnn_model_forward.1']
    #allocation7 [shape = 'u8[524288]{0}', space=vmem, size = 0x80000, scoped, tag = 'input window, operand 1, single buffered']
    #allocation8 [shape = 's32[1]{0}', space=sflag, size = 0x4, scoped, tag = 'scoped memory for rnn_model_forward.1']
    #allocation9 [shape = 'u8[131072]{0}', space=vmem, size = 0x20000, scoped, tag = 'input window, operand 2, single buffered']
    #allocation10 [shape = 'u8[131072]{0}', space=vmem, size = 0x20000, scoped, tag = 'input window, operand 4, single buffered']
    #allocation11 [shape = 's32[1]{0}', space=sflag, size = 0x4, scoped, tag = 'scoped memory for rnn_model_forward.1']
    #allocation12 [shape = 'u8[131072]{0}', space=vmem, size = 0x20000, scoped, tag = 'input window, operand 5, single buffered']
    #allocation13 [shape = 'u8[32768]{0}', space=vmem, size = 0x8000, scoped, tag = 'input window, operand 7, single buffered']
    #allocation14 [shape = 's32[1]{0}', space=sflag, size = 0x4, scoped, tag = 'scoped memory for rnn_model_forward.1']
    %14 = vsyncpa [#allocation6], 0
    %15 = vsyncpa [#allocation8], 0
    %16 = vsyncpa [#allocation11], 0
    %17 = vsyncpa [#allocation14], 0
    // Predicated region
    $region2: #{rnn_model_forward.1} parent=1 // pred_check
      _
    $region3: #{rnn_model_forward.1} parent=1 // pred_check_branch
      %19 = sbr.rel (0) target = $region5
    $region4: #{rnn_model_forward.1} parent=1 // pred_region
      %s21 = ssub.s32 512, 512
      %22 = vsyncadd [#allocation6], %s21
      %s24 = sshll.u32 [#allocation5], 4
      %s25 = int_to_ptr.vmem [resolvable:$true] %s24
      %27 = dma.hbm_to_vmem [thread:$0]  %s0, 512, %s25, [#allocation6]
    $region5: #{rnn_model_forward.1} parent=1 // pred_fallthru
      _
    // Predicated region
    $region6: #{rnn_model_forward.1} parent=1 // pred_check
      _
    $region7: #{rnn_model_forward.1} parent=1 // pred_check_branch
      %29 = sbr.rel (0) target = $region9
    $region8: #{rnn_model_forward.1} parent=1 // pred_region
      %s31 = ssub.s32 16384, 16384
      %32 = vsyncadd [#allocation8], %s31
      %s33 = sshll.u32 [#allocation7], 4
      %s34 = int_to_ptr.vmem [resolvable:$true] %s33
      %39 = dma.hbm_to_vmem [thread:$0]  %s1, 16384, %s34, [#allocation8], 256, 256, 16
    $region9: #{rnn_model_forward.1} parent=1 // pred_fallthru
      _
    // Predicated region
    $region10: #{rnn_model_forward.1} parent=1 // pred_check
      _
    $region11: #{rnn_model_forward.1} parent=1 // pred_check_branch
      %41 = sbr.rel (0) target = $region13
    $region12: #{rnn_model_forward.1} parent=1 // pred_region
      %s43 = ssub.s32 4096, 4096
      %44 = vsyncadd [#allocation8], %s43
      %s45 = sshll.u32 [#allocation9], 4
      %s46 = int_to_ptr.vmem [resolvable:$true] %s45
      %51 = dma.hbm_to_vmem [thread:$0]  %s2, 4096, %s46, [#allocation8], 256, 256, 16
    $region13: #{rnn_model_forward.1} parent=1 // pred_fallthru
      _
    // Predicated region
    $region14: #{rnn_model_forward.1} parent=1 // pred_check
      _
    $region15: #{rnn_model_forward.1} parent=1 // pred_check_branch
      %53 = sbr.rel (0) target = $region17
    $region16: #{rnn_model_forward.1} parent=1 // pred_region
      _
    $region17: #{rnn_model_forward.1} parent=1 // pred_fallthru
      _
    // Predicated region
    $region18: #{rnn_model_forward.1} parent=1 // pred_check
      _
    $region19: #{rnn_model_forward.1} parent=1 // pred_check_branch
      %55 = sbr.rel (0) target = $region21
    $region20: #{rnn_model_forward.1} parent=1 // pred_region
      %s57 = ssub.s32 4096, 4096
      %58 = vsyncadd [#allocation11], %s57
      %s59 = sshll.u32 [#allocation10], 4
      %s60 = int_to_ptr.vmem [resolvable:$true] %s59
      %65 = dma.hbm_to_vmem [thread:$0]  %s4, 4096, %s60, [#allocation11], 256, 256, 16
    $region21: #{rnn_model_forward.1} parent=1 // pred_fallthru
      _
    // Predicated region
    $region22: #{rnn_model_forward.1} parent=1 // pred_check
      _
    $region23: #{rnn_model_forward.1} parent=1 // pred_check_branch
      %67 = sbr.rel (0) target = $region25
    $region24: #{rnn_model_forward.1} parent=1 // pred_region
      %s69 = ssub.s32 4096, 4096
      %70 = vsyncadd [#allocation11], %s69
      %s71 = sshll.u32 [#allocation12], 4
      %s72 = int_to_ptr.vmem [resolvable:$true] %s71
      %77 = dma.hbm_to_vmem [thread:$0]  %s5, 4096, %s72, [#allocation11], 256, 256, 16
    $region25: #{rnn_model_forward.1} parent=1 // pred_fallthru
      _
    // Predicated region
    $region26: #{rnn_model_forward.1} parent=1 // pred_check
      _
    $region27: #{rnn_model_forward.1} parent=1 // pred_check_branch
      %79 = sbr.rel (0) target = $region29
    $region28: #{rnn_model_forward.1} parent=1 // pred_region
      _
    $region29: #{rnn_model_forward.1} parent=1 // pred_fallthru
      _
    // Predicated region
    $region30: #{rnn_model_forward.1} parent=1 // pred_check
      _
    $region31: #{rnn_model_forward.1} parent=1 // pred_check_branch
      %81 = sbr.rel (0) target = $region33
    $region32: #{rnn_model_forward.1} parent=1 // pred_region
      %s83 = ssub.s32 1024, 1024
      %84 = vsyncadd [#allocation14], %s83
      %s85 = sshll.u32 [#allocation13], 4
      %s86 = int_to_ptr.vmem [resolvable:$true] %s85
      %91 = dma.hbm_to_vmem [thread:$0]  %s7, 1024, %s86, [#allocation14], 64, 64, 4
    $region33: #{rnn_model_forward.1} parent=1 // pred_fallthru
      _
    // Predicated region
    $region34: #{rnn_model_forward.1} parent=1 // pred_check
      _
    $region35: #{rnn_model_forward.1} parent=1 // pred_check_branch
      %93 = sbr.rel (0) target = $region37
    $region36: #{rnn_model_forward.1} parent=1 // pred_region
      _
    $region37: #{rnn_model_forward.1} parent=1 // pred_fallthru
      _
    // Predicated region
    $region38: #{rnn_model_forward.1} parent=1 // pred_check
      _
    $region39: #{rnn_model_forward.1} parent=1 // pred_check_branch
      %95 = sbr.rel (0) target = $region41
    $region40: #{rnn_model_forward.1} parent=1 // pred_region
      %96 = dma.done [#allocation6], 512
    $region41: #{rnn_model_forward.1} parent=1 // pred_fallthru
      _
    // Predicated region
    $region42: #{rnn_model_forward.1} parent=1 // pred_check
      _
    $region43: #{rnn_model_forward.1} parent=1 // pred_check_branch
      %98 = sbr.rel (0) target = $region45
    $region44: #{rnn_model_forward.1} parent=1 // pred_region
      %99 = dma.done [#allocation8], 16384
    $region45: #{rnn_model_forward.1} parent=1 // pred_fallthru
      _
    // Predicated region
    $region46: #{rnn_model_forward.1} parent=1 // pred_check
      _
    $region47: #{rnn_model_forward.1} parent=1 // pred_check_branch
      %101 = sbr.rel (0) target = $region49
    $region48: #{rnn_model_forward.1} parent=1 // pred_region
      %102 = dma.done [#allocation8], 4096
    $region49: #{rnn_model_forward.1} parent=1 // pred_fallthru
      _
    // Predicated region
    $region50: #{rnn_model_forward.1} parent=1 // pred_check
      _
    $region51: #{rnn_model_forward.1} parent=1 // pred_check_branch
      %104 = sbr.rel (0) target = $region53
    $region52: #{rnn_model_forward.1} parent=1 // pred_region
      %105 = dma.done [#allocation11], 4096
    $region53: #{rnn_model_forward.1} parent=1 // pred_fallthru
      _
    // Predicated region
    $region54: #{rnn_model_forward.1} parent=1 // pred_check
      _
    $region55: #{rnn_model_forward.1} parent=1 // pred_check_branch
      %107 = sbr.rel (0) target = $region57
    $region56: #{rnn_model_forward.1} parent=1 // pred_region
      %108 = dma.done [#allocation11], 4096
    $region57: #{rnn_model_forward.1} parent=1 // pred_fallthru
      _
    // Predicated region
    $region58: #{rnn_model_forward.1} parent=1 // pred_check
      _
    $region59: #{rnn_model_forward.1} parent=1 // pred_check_branch
      %110 = sbr.rel (0) target = $region61
    $region60: #{rnn_model_forward.1} parent=1 // pred_region
      %111 = dma.done [#allocation14], 1024
    $region61: #{rnn_model_forward.1} parent=1 // pred_fallthru
      _
    %v113 = vld [vmem:[#allocation5] sm:$0xff]
    %v114 = vld [vmem:[#allocation5 + $0x8] sm:$0xff]
    %v115 = vld [vmem:[#allocation5 + $0x10] sm:$0xff]
    %v116 = vld [vmem:[#allocation5 + $0x18] sm:$0xff]
    %v117 = vpack.c.bf16 %v113, %v113
    %v118 = vpack.c.bf16 %v114, %v114
    %v119 = vpack.c.bf16 %v115, %v115
    %v120 = vpack.c.bf16 %v116, %v116
    %v121 = vld [vmem:[#allocation7] sm:$0xff]
    %v122 = vld [vmem:[#allocation7 + $0x8] sm:$0xff]
    %v123 = vld [vmem:[#allocation7 + $0x10] sm:$0xff]
    %v124 = vld [vmem:[#allocation7 + $0x18] sm:$0xff]
    %v125 = vld [vmem:[#allocation7 + $0x20] sm:$0xff]
    %v126 = vld [vmem:[#allocation7 + $0x28] sm:$0xff]
    %v127 = vld [vmem:[#allocation7 + $0x30] sm:$0xff]
    %v128 = vld [vmem:[#allocation7 + $0x38] sm:$0xff]
    %v129 = vld [vmem:[#allocation7 + $0x40] sm:$0xff]
    %v130 = vld [vmem:[#allocation7 + $0x48] sm:$0xff]
    %v131 = vld [vmem:[#allocation7 + $0x50] sm:$0xff]
    %v132 = vld [vmem:[#allocation7 + $0x58] sm:$0xff]
    %v133 = vld [vmem:[#allocation7 + $0x60] sm:$0xff]
    %v134 = vld [vmem:[#allocation7 + $0x68] sm:$0xff]
    %v135 = vld [vmem:[#allocation7 + $0x70] sm:$0xff]
    %v136 = vld [vmem:[#allocation7 + $0x78] sm:$0xff]
    %v137 = vld [vmem:[#allocation7 + $0x80] sm:$0xff]
    %v138 = vld [vmem:[#allocation7 + $0x88] sm:$0xff]
    %v139 = vld [vmem:[#allocation7 + $0x90] sm:$0xff]
    %v140 = vld [vmem:[#allocation7 + $0x98] sm:$0xff]
    %v141 = vld [vmem:[#allocation7 + $0xa0] sm:$0xff]
    %v142 = vld [vmem:[#allocation7 + $0xa8] sm:$0xff]
    %v143 = vld [vmem:[#allocation7 + $0xb0] sm:$0xff]
    %v144 = vld [vmem:[#allocation7 + $0xb8] sm:$0xff]
    %v145 = vld [vmem:[#allocation7 + $0xc0] sm:$0xff]
    %v146 = vld [vmem:[#allocation7 + $0xc8] sm:$0xff]
    %v147 = vld [vmem:[#allocation7 + $0xd0] sm:$0xff]
    %v148 = vld [vmem:[#allocation7 + $0xd8] sm:$0xff]
    %v149 = vld [vmem:[#allocation7 + $0xe0] sm:$0xff]
    %v150 = vld [vmem:[#allocation7 + $0xe8] sm:$0xff]
    %v151 = vld [vmem:[#allocation7 + $0xf0] sm:$0xff]
    %v152 = vld [vmem:[#allocation7 + $0xf8] sm:$0xff]
    %v153 = vld [vmem:[#allocation7 + $0x100] sm:$0xff]
    %v154 = vld [vmem:[#allocation7 + $0x108] sm:$0xff]
    %v155 = vld [vmem:[#allocation7 + $0x110] sm:$0xff]
    %v156 = vld [vmem:[#allocation7 + $0x118] sm:$0xff]
    %v157 = vld [vmem:[#allocation7 + $0x120] sm:$0xff]
    %v158 = vld [vmem:[#allocation7 + $0x128] sm:$0xff]
    %v159 = vld [vmem:[#allocation7 + $0x130] sm:$0xff]
    %v160 = vld [vmem:[#allocation7 + $0x138] sm:$0xff]
    %v161 = vld [vmem:[#allocation7 + $0x140] sm:$0xff]
    %v162 = vld [vmem:[#allocation7 + $0x148] sm:$0xff]
    %v163 = vld [vmem:[#allocation7 + $0x150] sm:$0xff]
    %v164 = vld [vmem:[#allocation7 + $0x158] sm:$0xff]
    %v165 = vld [vmem:[#allocation7 + $0x160] sm:$0xff]
    %v166 = vld [vmem:[#allocation7 + $0x168] sm:$0xff]
    %v167 = vld [vmem:[#allocation7 + $0x170] sm:$0xff]
    %v168 = vld [vmem:[#allocation7 + $0x178] sm:$0xff]
    %v169 = vld [vmem:[#allocation7 + $0x180] sm:$0xff]
    %v170 = vld [vmem:[#allocation7 + $0x188] sm:$0xff]
    %v171 = vld [vmem:[#allocation7 + $0x190] sm:$0xff]
    %v172 = vld [vmem:[#allocation7 + $0x198] sm:$0xff]
    %v173 = vld [vmem:[#allocation7 + $0x1a0] sm:$0xff]
    %v174 = vld [vmem:[#allocation7 + $0x1a8] sm:$0xff]
    %v175 = vld [vmem:[#allocation7 + $0x1b0] sm:$0xff]
    %v176 = vld [vmem:[#allocation7 + $0x1b8] sm:$0xff]
    %v177 = vld [vmem:[#allocation7 + $0x1c0] sm:$0xff]
    %v178 = vld [vmem:[#allocation7 + $0x1c8] sm:$0xff]
    %v179 = vld [vmem:[#allocation7 + $0x1d0] sm:$0xff]
    %v180 = vld [vmem:[#allocation7 + $0x1d8] sm:$0xff]
    %v181 = vld [vmem:[#allocation7 + $0x1e0] sm:$0xff]
    %v182 = vld [vmem:[#allocation7 + $0x1e8] sm:$0xff]
    %v183 = vld [vmem:[#allocation7 + $0x1f0] sm:$0xff]
    %v184 = vld [vmem:[#allocation7 + $0x1f8] sm:$0xff]
    %v185 = vld [vmem:[#allocation7 + $0x200] sm:$0xff]
    %v186 = vld [vmem:[#allocation7 + $0x208] sm:$0xff]
    %v187 = vld [vmem:[#allocation7 + $0x210] sm:$0xff]
    %v188 = vld [vmem:[#allocation7 + $0x218] sm:$0xff]
    %v189 = vld [vmem:[#allocation7 + $0x220] sm:$0xff]
    %v190 = vld [vmem:[#allocation7 + $0x228] sm:$0xff]
    %v191 = vld [vmem:[#allocation7 + $0x230] sm:$0xff]
    %v192 = vld [vmem:[#allocation7 + $0x238] sm:$0xff]
    %v193 = vld [vmem:[#allocation7 + $0x240] sm:$0xff]
    %v194 = vld [vmem:[#allocation7 + $0x248] sm:$0xff]
    %v195 = vld [vmem:[#allocation7 + $0x250] sm:$0xff]
    %v196 = vld [vmem:[#allocation7 + $0x258] sm:$0xff]
    %v197 = vld [vmem:[#allocation7 + $0x260] sm:$0xff]
    %v198 = vld [vmem:[#allocation7 + $0x268] sm:$0xff]
    %v199 = vld [vmem:[#allocation7 + $0x270] sm:$0xff]
    %v200 = vld [vmem:[#allocation7 + $0x278] sm:$0xff]
    %v201 = vld [vmem:[#allocation7 + $0x280] sm:$0xff]
    %v202 = vld [vmem:[#allocation7 + $0x288] sm:$0xff]
    %v203 = vld [vmem:[#allocation7 + $0x290] sm:$0xff]
    %v204 = vld [vmem:[#allocation7 + $0x298] sm:$0xff]
    %v205 = vld [vmem:[#allocation7 + $0x2a0] sm:$0xff]
    %v206 = vld [vmem:[#allocation7 + $0x2a8] sm:$0xff]
    %v207 = vld [vmem:[#allocation7 + $0x2b0] sm:$0xff]
    %v208 = vld [vmem:[#allocation7 + $0x2b8] sm:$0xff]
    %v209 = vld [vmem:[#allocation7 + $0x2c0] sm:$0xff]
    %v210 = vld [vmem:[#allocation7 + $0x2c8] sm:$0xff]
    %v211 = vld [vmem:[#allocation7 + $0x2d0] sm:$0xff]
    %v212 = vld [vmem:[#allocation7 + $0x2d8] sm:$0xff]
    %v213 = vld [vmem:[#allocation7 + $0x2e0] sm:$0xff]
    %v214 = vld [vmem:[#allocation7 + $0x2e8] sm:$0xff]
    %v215 = vld [vmem:[#allocation7 + $0x2f0] sm:$0xff]
    %v216 = vld [vmem:[#allocation7 + $0x2f8] sm:$0xff]
    %v217 = vld [vmem:[#allocation7 + $0x300] sm:$0xff]
    %v218 = vld [vmem:[#allocation7 + $0x308] sm:$0xff]
    %v219 = vld [vmem:[#allocation7 + $0x310] sm:$0xff]
    %v220 = vld [vmem:[#allocation7 + $0x318] sm:$0xff]
    %v221 = vld [vmem:[#allocation7 + $0x320] sm:$0xff]
    %v222 = vld [vmem:[#allocation7 + $0x328] sm:$0xff]
    %v223 = vld [vmem:[#allocation7 + $0x330] sm:$0xff]
    %v224 = vld [vmem:[#allocation7 + $0x338] sm:$0xff]
    %v225 = vld [vmem:[#allocation7 + $0x340] sm:$0xff]
    %v226 = vld [vmem:[#allocation7 + $0x348] sm:$0xff]
    %v227 = vld [vmem:[#allocation7 + $0x350] sm:$0xff]
    %v228 = vld [vmem:[#allocation7 + $0x358] sm:$0xff]
    %v229 = vld [vmem:[#allocation7 + $0x360] sm:$0xff]
    %v230 = vld [vmem:[#allocation7 + $0x368] sm:$0xff]
    %v231 = vld [vmem:[#allocation7 + $0x370] sm:$0xff]
    %v232 = vld [vmem:[#allocation7 + $0x378] sm:$0xff]
    %v233 = vld [vmem:[#allocation7 + $0x380] sm:$0xff]
    %v234 = vld [vmem:[#allocation7 + $0x388] sm:$0xff]
    %v235 = vld [vmem:[#allocation7 + $0x390] sm:$0xff]
    %v236 = vld [vmem:[#allocation7 + $0x398] sm:$0xff]
    %v237 = vld [vmem:[#allocation7 + $0x3a0] sm:$0xff]
    %v238 = vld [vmem:[#allocation7 + $0x3a8] sm:$0xff]
    %v239 = vld [vmem:[#allocation7 + $0x3b0] sm:$0xff]
    %v240 = vld [vmem:[#allocation7 + $0x3b8] sm:$0xff]
    %v241 = vld [vmem:[#allocation7 + $0x3c0] sm:$0xff]
    %v242 = vld [vmem:[#allocation7 + $0x3c8] sm:$0xff]
    %v243 = vld [vmem:[#allocation7 + $0x3d0] sm:$0xff]
    %v244 = vld [vmem:[#allocation7 + $0x3d8] sm:$0xff]
    %v245 = vld [vmem:[#allocation7 + $0x3e0] sm:$0xff]
    %v246 = vld [vmem:[#allocation7 + $0x3e8] sm:$0xff]
    %v247 = vld [vmem:[#allocation7 + $0x3f0] sm:$0xff]
    %v248 = vld [vmem:[#allocation7 + $0x3f8] sm:$0xff]
    %v249 = vld [vmem:[%s3] sm:$0xf]
    %v251 = vlaneseq
    %v252 = vshrl.u32 %v251, 7
    %v253 = vsub.s32 0, %v252
    %v254 = vrot.slane %v249, %v253
    %v255 = vlaneseq
    %v256 = vshrl.u32 %v255, 7
    %v257 = vsub.s32 1, %v256
    %v258 = vrot.slane %v249, %v257
    %v259 = vlaneseq
    %v260 = vshrl.u32 %v259, 7
    %v261 = vsub.s32 2, %v260
    %v262 = vrot.slane %v249, %v261
    %v263 = vlaneseq
    %v264 = vshrl.u32 %v263, 7
    %v265 = vsub.s32 3, %v264
    %v266 = vrot.slane %v249, %v265
    %v399 = vunpack.c.l.b16 %v121
    %v400 = vunpack.c.h.b16 %v121
    %v401 = vunpack.c.l.b16 %v122
    %v402 = vunpack.c.h.b16 %v122
    %v403 = vunpack.c.l.b16 %v123
    %v404 = vunpack.c.h.b16 %v123
    %v405 = vunpack.c.l.b16 %v124
    %v406 = vunpack.c.h.b16 %v124
    %v407 = vunpack.c.l.b16 %v125
    %v408 = vunpack.c.h.b16 %v125
    %v409 = vunpack.c.l.b16 %v126
    %v410 = vunpack.c.h.b16 %v126
    %v411 = vunpack.c.l.b16 %v127
    %v412 = vunpack.c.h.b16 %v127
    %v413 = vunpack.c.l.b16 %v128
    %v414 = vunpack.c.h.b16 %v128
    %v415 = vunpack.c.l.b16 %v129
    %v416 = vunpack.c.h.b16 %v129
    %v417 = vunpack.c.l.b16 %v130
    %v418 = vunpack.c.h.b16 %v130
    %v419 = vunpack.c.l.b16 %v131
    %v420 = vunpack.c.h.b16 %v131
    %v421 = vunpack.c.l.b16 %v132
    %v422 = vunpack.c.h.b16 %v132
    %v423 = vunpack.c.l.b16 %v133
    %v424 = vunpack.c.h.b16 %v133
    %v425 = vunpack.c.l.b16 %v134
    %v426 = vunpack.c.h.b16 %v134
    %v427 = vunpack.c.l.b16 %v135
    %v428 = vunpack.c.h.b16 %v135
    %v429 = vunpack.c.l.b16 %v136
    %v430 = vunpack.c.h.b16 %v136
    %v431 = vunpack.c.l.b16 %v137
    %v432 = vunpack.c.h.b16 %v137
    %v433 = vunpack.c.l.b16 %v138
    %v434 = vunpack.c.h.b16 %v138
    %v435 = vunpack.c.l.b16 %v139
    %v436 = vunpack.c.h.b16 %v139
    %v437 = vunpack.c.l.b16 %v140
    %v438 = vunpack.c.h.b16 %v140
    %v439 = vunpack.c.l.b16 %v141
    %v440 = vunpack.c.h.b16 %v141
    %v441 = vunpack.c.l.b16 %v142
    %v442 = vunpack.c.h.b16 %v142
    %v443 = vunpack.c.l.b16 %v143
    %v444 = vunpack.c.h.b16 %v143
    %v445 = vunpack.c.l.b16 %v144
    %v446 = vunpack.c.h.b16 %v144
    %v447 = vunpack.c.l.b16 %v145
    %v448 = vunpack.c.h.b16 %v145
    %v449 = vunpack.c.l.b16 %v146
    %v450 = vunpack.c.h.b16 %v146
    %v451 = vunpack.c.l.b16 %v147
    %v452 = vunpack.c.h.b16 %v147
    %v453 = vunpack.c.l.b16 %v148
    %v454 = vunpack.c.h.b16 %v148
    %v455 = vunpack.c.l.b16 %v149
    %v456 = vunpack.c.h.b16 %v149
    %v457 = vunpack.c.l.b16 %v150
    %v458 = vunpack.c.h.b16 %v150
    %v459 = vunpack.c.l.b16 %v151
    %v460 = vunpack.c.h.b16 %v151
    %v461 = vunpack.c.l.b16 %v152
    %v462 = vunpack.c.h.b16 %v152
    %v463 = vunpack.c.l.b16 %v153
    %v464 = vunpack.c.h.b16 %v153
    %v465 = vunpack.c.l.b16 %v154
    %v466 = vunpack.c.h.b16 %v154
    %v467 = vunpack.c.l.b16 %v155
    %v468 = vunpack.c.h.b16 %v155
    %v469 = vunpack.c.l.b16 %v156
    %v470 = vunpack.c.h.b16 %v156
    %v471 = vunpack.c.l.b16 %v157
    %v472 = vunpack.c.h.b16 %v157
    %v473 = vunpack.c.l.b16 %v158
    %v474 = vunpack.c.h.b16 %v158
    %v475 = vunpack.c.l.b16 %v159
    %v476 = vunpack.c.h.b16 %v159
    %v477 = vunpack.c.l.b16 %v160
    %v478 = vunpack.c.h.b16 %v160
    %v479 = vunpack.c.l.b16 %v161
    %v480 = vunpack.c.h.b16 %v161
    %v481 = vunpack.c.l.b16 %v162
    %v482 = vunpack.c.h.b16 %v162
    %v483 = vunpack.c.l.b16 %v163
    %v484 = vunpack.c.h.b16 %v163
    %v485 = vunpack.c.l.b16 %v164
    %v486 = vunpack.c.h.b16 %v164
    %v487 = vunpack.c.l.b16 %v165
    %v488 = vunpack.c.h.b16 %v165
    %v489 = vunpack.c.l.b16 %v166
    %v490 = vunpack.c.h.b16 %v166
    %v491 = vunpack.c.l.b16 %v167
    %v492 = vunpack.c.h.b16 %v167
    %v493 = vunpack.c.l.b16 %v168
    %v494 = vunpack.c.h.b16 %v168
    %v495 = vunpack.c.l.b16 %v169
    %v496 = vunpack.c.h.b16 %v169
    %v497 = vunpack.c.l.b16 %v170
    %v498 = vunpack.c.h.b16 %v170
    %v499 = vunpack.c.l.b16 %v171
    %v500 = vunpack.c.h.b16 %v171
    %v501 = vunpack.c.l.b16 %v172
    %v502 = vunpack.c.h.b16 %v172
    %v503 = vunpack.c.l.b16 %v173
    %v504 = vunpack.c.h.b16 %v173
    %v505 = vunpack.c.l.b16 %v174
    %v506 = vunpack.c.h.b16 %v174
    %v507 = vunpack.c.l.b16 %v175
    %v508 = vunpack.c.h.b16 %v175
    %v509 = vunpack.c.l.b16 %v176
    %v510 = vunpack.c.h.b16 %v176
    %v511 = vunpack.c.l.b16 %v177
    %v512 = vunpack.c.h.b16 %v177
    %v513 = vunpack.c.l.b16 %v178
    %v514 = vunpack.c.h.b16 %v178
    %v515 = vunpack.c.l.b16 %v179
    %v516 = vunpack.c.h.b16 %v179
    %v517 = vunpack.c.l.b16 %v180
    %v518 = vunpack.c.h.b16 %v180
    %v519 = vunpack.c.l.b16 %v181
    %v520 = vunpack.c.h.b16 %v181
    %v521 = vunpack.c.l.b16 %v182
    %v522 = vunpack.c.h.b16 %v182
    %v523 = vunpack.c.l.b16 %v183
    %v524 = vunpack.c.h.b16 %v183
    %v525 = vunpack.c.l.b16 %v184
    %v526 = vunpack.c.h.b16 %v184
    %v527 = vunpack.c.l.b16 %v185
    %v528 = vunpack.c.h.b16 %v185
    %v529 = vunpack.c.l.b16 %v186
    %v530 = vunpack.c.h.b16 %v186
    %v531 = vunpack.c.l.b16 %v187
    %v532 = vunpack.c.h.b16 %v187
    %v533 = vunpack.c.l.b16 %v188
    %v534 = vunpack.c.h.b16 %v188
    %v535 = vunpack.c.l.b16 %v189
    %v536 = vunpack.c.h.b16 %v189
    %v537 = vunpack.c.l.b16 %v190
    %v538 = vunpack.c.h.b16 %v190
    %v539 = vunpack.c.l.b16 %v191
    %v540 = vunpack.c.h.b16 %v191
    %v541 = vunpack.c.l.b16 %v192
    %v542 = vunpack.c.h.b16 %v192
    %v543 = vunpack.c.l.b16 %v193
    %v544 = vunpack.c.h.b16 %v193
    %v545 = vunpack.c.l.b16 %v194
    %v546 = vunpack.c.h.b16 %v194
    %v547 = vunpack.c.l.b16 %v195
    %v548 = vunpack.c.h.b16 %v195
    %v549 = vunpack.c.l.b16 %v196
    %v550 = vunpack.c.h.b16 %v196
    %v551 = vunpack.c.l.b16 %v197
    %v552 = vunpack.c.h.b16 %v197
    %v553 = vunpack.c.l.b16 %v198
    %v554 = vunpack.c.h.b16 %v198
    %v555 = vunpack.c.l.b16 %v199
    %v556 = vunpack.c.h.b16 %v199
    %v557 = vunpack.c.l.b16 %v200
    %v558 = vunpack.c.h.b16 %v200
    %v559 = vunpack.c.l.b16 %v201
    %v560 = vunpack.c.h.b16 %v201
    %v561 = vunpack.c.l.b16 %v202
    %v562 = vunpack.c.h.b16 %v202
    %v563 = vunpack.c.l.b16 %v203
    %v564 = vunpack.c.h.b16 %v203
    %v565 = vunpack.c.l.b16 %v204
    %v566 = vunpack.c.h.b16 %v204
    %v567 = vunpack.c.l.b16 %v205
    %v568 = vunpack.c.h.b16 %v205
    %v569 = vunpack.c.l.b16 %v206
    %v570 = vunpack.c.h.b16 %v206
    %v571 = vunpack.c.l.b16 %v207
    %v572 = vunpack.c.h.b16 %v207
    %v573 = vunpack.c.l.b16 %v208
    %v574 = vunpack.c.h.b16 %v208
    %v575 = vunpack.c.l.b16 %v209
    %v576 = vunpack.c.h.b16 %v209
    %v577 = vunpack.c.l.b16 %v210
    %v578 = vunpack.c.h.b16 %v210
    %v579 = vunpack.c.l.b16 %v211
    %v580 = vunpack.c.h.b16 %v211
    %v581 = vunpack.c.l.b16 %v212
    %v582 = vunpack.c.h.b16 %v212
    %v583 = vunpack.c.l.b16 %v213
    %v584 = vunpack.c.h.b16 %v213
    %v585 = vunpack.c.l.b16 %v214
    %v586 = vunpack.c.h.b16 %v214
    %v587 = vunpack.c.l.b16 %v215
    %v588 = vunpack.c.h.b16 %v215
    %v589 = vunpack.c.l.b16 %v216
    %v590 = vunpack.c.h.b16 %v216
    %v591 = vunpack.c.l.b16 %v217
    %v592 = vunpack.c.h.b16 %v217
    %v593 = vunpack.c.l.b16 %v218
    %v594 = vunpack.c.h.b16 %v218
    %v595 = vunpack.c.l.b16 %v219
    %v596 = vunpack.c.h.b16 %v219
    %v597 = vunpack.c.l.b16 %v220
    %v598 = vunpack.c.h.b16 %v220
    %v599 = vunpack.c.l.b16 %v221
    %v600 = vunpack.c.h.b16 %v221
    %v601 = vunpack.c.l.b16 %v222
    %v602 = vunpack.c.h.b16 %v222
    %v603 = vunpack.c.l.b16 %v223
    %v604 = vunpack.c.h.b16 %v223
    %v605 = vunpack.c.l.b16 %v224
    %v606 = vunpack.c.h.b16 %v224
    %v607 = vunpack.c.l.b16 %v225
    %v608 = vunpack.c.h.b16 %v225
    %v609 = vunpack.c.l.b16 %v226
    %v610 = vunpack.c.h.b16 %v226
    %v611 = vunpack.c.l.b16 %v227
    %v612 = vunpack.c.h.b16 %v227
    %v613 = vunpack.c.l.b16 %v228
    %v614 = vunpack.c.h.b16 %v228
    %v615 = vunpack.c.l.b16 %v229
    %v616 = vunpack.c.h.b16 %v229
    %v617 = vunpack.c.l.b16 %v230
    %v618 = vunpack.c.h.b16 %v230
    %v619 = vunpack.c.l.b16 %v231
    %v620 = vunpack.c.h.b16 %v231
    %v621 = vunpack.c.l.b16 %v232
    %v622 = vunpack.c.h.b16 %v232
    %v623 = vunpack.c.l.b16 %v233
    %v624 = vunpack.c.h.b16 %v233
    %v625 = vunpack.c.l.b16 %v234
    %v626 = vunpack.c.h.b16 %v234
    %v627 = vunpack.c.l.b16 %v235
    %v628 = vunpack.c.h.b16 %v235
    %v629 = vunpack.c.l.b16 %v236
    %v630 = vunpack.c.h.b16 %v236
    %v631 = vunpack.c.l.b16 %v237
    %v632 = vunpack.c.h.b16 %v237
    %v633 = vunpack.c.l.b16 %v238
    %v634 = vunpack.c.h.b16 %v238
    %v635 = vunpack.c.l.b16 %v239
    %v636 = vunpack.c.h.b16 %v239
    %v637 = vunpack.c.l.b16 %v240
    %v638 = vunpack.c.h.b16 %v240
    %v639 = vunpack.c.l.b16 %v241
    %v640 = vunpack.c.h.b16 %v241
    %v641 = vunpack.c.l.b16 %v242
    %v642 = vunpack.c.h.b16 %v242
    %v643 = vunpack.c.l.b16 %v243
    %v644 = vunpack.c.h.b16 %v243
    %v645 = vunpack.c.l.b16 %v244
    %v646 = vunpack.c.h.b16 %v244
    %v647 = vunpack.c.l.b16 %v245
    %v648 = vunpack.c.h.b16 %v245
    %v649 = vunpack.c.l.b16 %v246
    %v650 = vunpack.c.h.b16 %v246
    %v651 = vunpack.c.l.b16 %v247
    %v652 = vunpack.c.h.b16 %v247
    %v653 = vunpack.c.l.b16 %v248
    %v654 = vunpack.c.h.b16 %v248
    %v655 = vpack.c.b16 %v403, %v399
    %v656 = vpack.c.b16 %v404, %v400
    %v657 = vpack.c.b16 %v405, %v401
    %v658 = vpack.c.b16 %v406, %v402
    %v659 = vpack.c.b16 %v411, %v407
    %v660 = vpack.c.b16 %v412, %v408
    %v661 = vpack.c.b16 %v413, %v409
    %v662 = vpack.c.b16 %v414, %v410
    %v663 = vpack.c.b16 %v419, %v415
    %v664 = vpack.c.b16 %v420, %v416
    %v665 = vpack.c.b16 %v421, %v417
    %v666 = vpack.c.b16 %v422, %v418
    %v667 = vpack.c.b16 %v427, %v423
    %v668 = vpack.c.b16 %v428, %v424
    %v669 = vpack.c.b16 %v429, %v425
    %v670 = vpack.c.b16 %v430, %v426
    %v671 = vpack.c.b16 %v435, %v431
    %v672 = vpack.c.b16 %v436, %v432
    %v673 = vpack.c.b16 %v437, %v433
    %v674 = vpack.c.b16 %v438, %v434
    %v675 = vpack.c.b16 %v443, %v439
    %v676 = vpack.c.b16 %v444, %v440
    %v677 = vpack.c.b16 %v445, %v441
    %v678 = vpack.c.b16 %v446, %v442
    %v679 = vpack.c.b16 %v451, %v447
    %v680 = vpack.c.b16 %v452, %v448
    %v681 = vpack.c.b16 %v453, %v449
    %v682 = vpack.c.b16 %v454, %v450
    %v683 = vpack.c.b16 %v459, %v455
    %v684 = vpack.c.b16 %v460, %v456
    %v685 = vpack.c.b16 %v461, %v457
    %v686 = vpack.c.b16 %v462, %v458
    %v687 = vpack.c.b16 %v467, %v463
    %v688 = vpack.c.b16 %v468, %v464
    %v689 = vpack.c.b16 %v469, %v465
    %v690 = vpack.c.b16 %v470, %v466
    %v691 = vpack.c.b16 %v475, %v471
    %v692 = vpack.c.b16 %v476, %v472
    %v693 = vpack.c.b16 %v477, %v473
    %v694 = vpack.c.b16 %v478, %v474
    %v695 = vpack.c.b16 %v483, %v479
    %v696 = vpack.c.b16 %v484, %v480
    %v697 = vpack.c.b16 %v485, %v481
    %v698 = vpack.c.b16 %v486, %v482
    %v699 = vpack.c.b16 %v491, %v487
    %v700 = vpack.c.b16 %v492, %v488
    %v701 = vpack.c.b16 %v493, %v489
    %v702 = vpack.c.b16 %v494, %v490
    %v703 = vpack.c.b16 %v499, %v495
    %v704 = vpack.c.b16 %v500, %v496
    %v705 = vpack.c.b16 %v501, %v497
    %v706 = vpack.c.b16 %v502, %v498
    %v707 = vpack.c.b16 %v507, %v503
    %v708 = vpack.c.b16 %v508, %v504
    %v709 = vpack.c.b16 %v509, %v505
    %v710 = vpack.c.b16 %v510, %v506
    %v711 = vpack.c.b16 %v515, %v511
    %v712 = vpack.c.b16 %v516, %v512
    %v713 = vpack.c.b16 %v517, %v513
    %v714 = vpack.c.b16 %v518, %v514
    %v715 = vpack.c.b16 %v523, %v519
    %v716 = vpack.c.b16 %v524, %v520
    %v717 = vpack.c.b16 %v525, %v521
    %v718 = vpack.c.b16 %v526, %v522
    %v719 = vpack.c.b16 %v531, %v527
    %v720 = vpack.c.b16 %v532, %v528
    %v721 = vpack.c.b16 %v533, %v529
    %v722 = vpack.c.b16 %v534, %v530
    %v723 = vpack.c.b16 %v539, %v535
    %v724 = vpack.c.b16 %v540, %v536
    %v725 = vpack.c.b16 %v541, %v537
    %v726 = vpack.c.b16 %v542, %v538
    %v727 = vpack.c.b16 %v547, %v543
    %v728 = vpack.c.b16 %v548, %v544
    %v729 = vpack.c.b16 %v549, %v545
    %v730 = vpack.c.b16 %v550, %v546
    %v731 = vpack.c.b16 %v555, %v551
    %v732 = vpack.c.b16 %v556, %v552
    %v733 = vpack.c.b16 %v557, %v553
    %v734 = vpack.c.b16 %v558, %v554
    %v735 = vpack.c.b16 %v563, %v559
    %v736 = vpack.c.b16 %v564, %v560
    %v737 = vpack.c.b16 %v565, %v561
    %v738 = vpack.c.b16 %v566, %v562
    %v739 = vpack.c.b16 %v571, %v567
    %v740 = vpack.c.b16 %v572, %v568
    %v741 = vpack.c.b16 %v573, %v569
    %v742 = vpack.c.b16 %v574, %v570
    %v743 = vpack.c.b16 %v579, %v575
    %v744 = vpack.c.b16 %v580, %v576
    %v745 = vpack.c.b16 %v581, %v577
    %v746 = vpack.c.b16 %v582, %v578
    %v747 = vpack.c.b16 %v587, %v583
    %v748 = vpack.c.b16 %v588, %v584
    %v749 = vpack.c.b16 %v589, %v585
    %v750 = vpack.c.b16 %v590, %v586
    %v751 = vpack.c.b16 %v595, %v591
    %v752 = vpack.c.b16 %v596, %v592
    %v753 = vpack.c.b16 %v597, %v593
    %v754 = vpack.c.b16 %v598, %v594
    %v755 = vpack.c.b16 %v603, %v599
    %v756 = vpack.c.b16 %v604, %v600
    %v757 = vpack.c.b16 %v605, %v601
    %v758 = vpack.c.b16 %v606, %v602
    %v759 = vpack.c.b16 %v611, %v607
    %v760 = vpack.c.b16 %v612, %v608
    %v761 = vpack.c.b16 %v613, %v609
    %v762 = vpack.c.b16 %v614, %v610
    %v763 = vpack.c.b16 %v619, %v615
    %v764 = vpack.c.b16 %v620, %v616
    %v765 = vpack.c.b16 %v621, %v617
    %v766 = vpack.c.b16 %v622, %v618
    %v767 = vpack.c.b16 %v627, %v623
    %v768 = vpack.c.b16 %v628, %v624
    %v769 = vpack.c.b16 %v629, %v625
    %v770 = vpack.c.b16 %v630, %v626
    %v771 = vpack.c.b16 %v635, %v631
    %v772 = vpack.c.b16 %v636, %v632
    %v773 = vpack.c.b16 %v637, %v633
    %v774 = vpack.c.b16 %v638, %v634
    %v775 = vpack.c.b16 %v643, %v639
    %v776 = vpack.c.b16 %v644, %v640
    %v777 = vpack.c.b16 %v645, %v641
    %v778 = vpack.c.b16 %v646, %v642
    %v779 = vpack.c.b16 %v651, %v647
    %v780 = vpack.c.b16 %v652, %v648
    %v781 = vpack.c.b16 %v653, %v649
    %v782 = vpack.c.b16 %v654, %v650
    %911 = vmatprep.subr.bf16.mxu0 %v656
    %912 = vmatpush1.bf16.msra.mxu0 %v655
    %913 = vmatprep.subr.bf16.mxu0 %v660
    %914 = vmatpush1.bf16.msra.mxu0 %v659
    %915 = vmatprep.subr.bf16.mxu0 %v664
    %916 = vmatpush1.bf16.msra.mxu0 %v663
    %917 = vmatprep.subr.bf16.mxu0 %v668
    %918 = vmatpush1.bf16.msra.mxu0 %v667
    %919 = vmatprep.subr.bf16.mxu0 %v672
    %920 = vmatpush1.bf16.msra.mxu0 %v671
    %921 = vmatprep.subr.bf16.mxu0 %v676
    %922 = vmatpush1.bf16.msra.mxu0 %v675
    %923 = vmatprep.subr.bf16.mxu0 %v680
    %924 = vmatpush1.bf16.msra.mxu0 %v679
    %925 = vmatprep.subr.bf16.mxu0 %v684
    %926 = vmatpush1.bf16.msra.mxu0 %v683
    %927 = vmatprep.subr.bf16.mxu0 %v688
    %928 = vmatpush1.bf16.msra.mxu0 %v687
    %929 = vmatprep.subr.bf16.mxu0 %v692
    %930 = vmatpush1.bf16.msra.mxu0 %v691
    %931 = vmatprep.subr.bf16.mxu0 %v696
    %932 = vmatpush1.bf16.msra.mxu0 %v695
    %933 = vmatprep.subr.bf16.mxu0 %v700
    %934 = vmatpush1.bf16.msra.mxu0 %v699
    %935 = vmatprep.subr.bf16.mxu0 %v704
    %936 = vmatpush1.bf16.msra.mxu0 %v703
    %937 = vmatprep.subr.bf16.mxu0 %v708
    %938 = vmatpush1.bf16.msra.mxu0 %v707
    %939 = vmatprep.subr.bf16.mxu0 %v712
    %940 = vmatpush1.bf16.msra.mxu0 %v711
    %941 = vmatprep.subr.bf16.mxu0 %v716
    %942 = vmatpush1.bf16.msra.mxu0 %v715
    %943 = vmatprep.mubr.bf16.mxu0 %v118
    %944 = vmatmul.mubr.bf16.gmra.mrb[0].mxu0 %v117
    %v945 = vpop.f32.mrb[0].mxu0
    %v946 = vadd.f32 %v254, %v945
    %v947 = vpop.f32.mrb[0].mxu0
    %v948 = vadd.f32 %v258, %v947
    %v949 = vpop.f32.mrb[0].mxu0
    %v950 = vpop.f32.mrb[0].mxu0
    %951 = vdwg.mxu0
    %952 = vmatprep.subr.bf16.mxu0 %v720
    %953 = vmatpush1.bf16.msra.mxu0 %v719
    %954 = vmatprep.subr.bf16.mxu0 %v724
    %955 = vmatpush1.bf16.msra.mxu0 %v723
    %956 = vmatprep.subr.bf16.mxu0 %v728
    %957 = vmatpush1.bf16.msra.mxu0 %v727
    %958 = vmatprep.subr.bf16.mxu0 %v732
    %959 = vmatpush1.bf16.msra.mxu0 %v731
    %960 = vmatprep.subr.bf16.mxu0 %v736
    %961 = vmatpush1.bf16.msra.mxu0 %v735
    %962 = vmatprep.subr.bf16.mxu0 %v740
    %963 = vmatpush1.bf16.msra.mxu0 %v739
    %964 = vmatprep.subr.bf16.mxu0 %v744
    %965 = vmatpush1.bf16.msra.mxu0 %v743
    %966 = vmatprep.subr.bf16.mxu0 %v748
    %967 = vmatpush1.bf16.msra.mxu0 %v747
    %968 = vmatprep.subr.bf16.mxu0 %v752
    %969 = vmatpush1.bf16.msra.mxu0 %v751
    %970 = vmatprep.subr.bf16.mxu0 %v756
    %971 = vmatpush1.bf16.msra.mxu0 %v755
    %972 = vmatprep.subr.bf16.mxu0 %v760
    %973 = vmatpush1.bf16.msra.mxu0 %v759
    %974 = vmatprep.subr.bf16.mxu0 %v764
    %975 = vmatpush1.bf16.msra.mxu0 %v763
    %976 = vmatprep.subr.bf16.mxu0 %v768
    %977 = vmatpush1.bf16.msra.mxu0 %v767
    %978 = vmatprep.subr.bf16.mxu0 %v772
    %979 = vmatpush1.bf16.msra.mxu0 %v771
    %980 = vmatprep.subr.bf16.mxu0 %v776
    %981 = vmatpush1.bf16.msra.mxu0 %v775
    %982 = vmatprep.subr.bf16.mxu0 %v780
    %983 = vmatpush1.bf16.msra.mxu0 %v779
    %984 = vmatprep.mubr.bf16.mxu0 %v120
    %985 = vmatmul.mubr.bf16.gmra.mrb[0].mxu0 %v119
    %v986 = vpop.f32.mrb[0].mxu0
    %v987 = vadd.f32 %v946, %v986
    %v988 = vpop.f32.mrb[0].mxu0
    %v989 = vadd.f32 %v948, %v988
    %v990 = vpop.f32.mrb[0].mxu0
    %v991 = vpop.f32.mrb[0].mxu0
    %992 = vdwg.mxu0
    %993 = vmatprep.subr.bf16.mxu0 %v658
    %994 = vmatpush1.bf16.msra.mxu0 %v657
    %995 = vmatprep.subr.bf16.mxu0 %v662
    %996 = vmatpush1.bf16.msra.mxu0 %v661
    %997 = vmatprep.subr.bf16.mxu0 %v666
    %998 = vmatpush1.bf16.msra.mxu0 %v665
    %999 = vmatprep.subr.bf16.mxu0 %v670
    %1000 = vmatpush1.bf16.msra.mxu0 %v669
    %1001 = vmatprep.subr.bf16.mxu0 %v674
    %1002 = vmatpush1.bf16.msra.mxu0 %v673
    %1003 = vmatprep.subr.bf16.mxu0 %v678
    %1004 = vmatpush1.bf16.msra.mxu0 %v677
    %1005 = vmatprep.subr.bf16.mxu0 %v682
    %1006 = vmatpush1.bf16.msra.mxu0 %v681
    %1007 = vmatprep.subr.bf16.mxu0 %v686
    %1008 = vmatpush1.bf16.msra.mxu0 %v685
    %1009 = vmatprep.subr.bf16.mxu0 %v690
    %1010 = vmatpush1.bf16.msra.mxu0 %v689
    %1011 = vmatprep.subr.bf16.mxu0 %v694
    %1012 = vmatpush1.bf16.msra.mxu0 %v693
    %1013 = vmatprep.subr.bf16.mxu0 %v698
    %1014 = vmatpush1.bf16.msra.mxu0 %v697
    %1015 = vmatprep.subr.bf16.mxu0 %v702
    %1016 = vmatpush1.bf16.msra.mxu0 %v701
    %1017 = vmatprep.subr.bf16.mxu0 %v706
    %1018 = vmatpush1.bf16.msra.mxu0 %v705
    %1019 = vmatprep.subr.bf16.mxu0 %v710
    %1020 = vmatpush1.bf16.msra.mxu0 %v709
    %1021 = vmatprep.subr.bf16.mxu0 %v714
    %1022 = vmatpush1.bf16.msra.mxu0 %v713
    %1023 = vmatprep.subr.bf16.mxu0 %v718
    %1024 = vmatpush1.bf16.msra.mxu0 %v717
    %1025 = vmatprep.mubr.bf16.mxu0 %v118
    %1026 = vmatmul.mubr.bf16.gmra.mrb[0].mxu0 %v117
    %v1027 = vpop.f32.mrb[0].mxu0
    %v1028 = vadd.f32 %v262, %v1027
    %v1029 = vpop.f32.mrb[0].mxu0
    %v1030 = vadd.f32 %v266, %v1029
    %v1031 = vpop.f32.mrb[0].mxu0
    %v1032 = vpop.f32.mrb[0].mxu0
    %1033 = vdwg.mxu0
    %1034 = vmatprep.subr.bf16.mxu0 %v722
    %1035 = vmatpush1.bf16.msra.mxu0 %v721
    %1036 = vmatprep.subr.bf16.mxu0 %v726
    %1037 = vmatpush1.bf16.msra.mxu0 %v725
    %1038 = vmatprep.subr.bf16.mxu0 %v730
    %1039 = vmatpush1.bf16.msra.mxu0 %v729
    %1040 = vmatprep.subr.bf16.mxu0 %v734
    %1041 = vmatpush1.bf16.msra.mxu0 %v733
    %1042 = vmatprep.subr.bf16.mxu0 %v738
    %1043 = vmatpush1.bf16.msra.mxu0 %v737
    %1044 = vmatprep.subr.bf16.mxu0 %v742
    %1045 = vmatpush1.bf16.msra.mxu0 %v741
    %1046 = vmatprep.subr.bf16.mxu0 %v746
    %1047 = vmatpush1.bf16.msra.mxu0 %v745
    %1048 = vmatprep.subr.bf16.mxu0 %v750
    %1049 = vmatpush1.bf16.msra.mxu0 %v749
    %1050 = vmatprep.subr.bf16.mxu0 %v754
    %1051 = vmatpush1.bf16.msra.mxu0 %v753
    %1052 = vmatprep.subr.bf16.mxu0 %v758
    %1053 = vmatpush1.bf16.msra.mxu0 %v757
    %1054 = vmatprep.subr.bf16.mxu0 %v762
    %1055 = vmatpush1.bf16.msra.mxu0 %v761
    %1056 = vmatprep.subr.bf16.mxu0 %v766
    %1057 = vmatpush1.bf16.msra.mxu0 %v765
    %1058 = vmatprep.subr.bf16.mxu0 %v770
    %1059 = vmatpush1.bf16.msra.mxu0 %v769
    %1060 = vmatprep.subr.bf16.mxu0 %v774
    %1061 = vmatpush1.bf16.msra.mxu0 %v773
    %1062 = vmatprep.subr.bf16.mxu0 %v778
    %1063 = vmatpush1.bf16.msra.mxu0 %v777
    %1064 = vmatprep.subr.bf16.mxu0 %v782
    %1065 = vmatpush1.bf16.msra.mxu0 %v781
    %1066 = vmatprep.mubr.bf16.mxu0 %v120
    %1067 = vmatmul.mubr.bf16.gmra.mrb[0].mxu0 %v119
    %v1068 = vpop.f32.mrb[0].mxu0
    %v1069 = vadd.f32 %v1028, %v1068
    %v1070 = vpop.f32.mrb[0].mxu0
    %v1071 = vadd.f32 %v1030, %v1070
    %v1072 = vpop.f32.mrb[0].mxu0
    %v1073 = vpop.f32.mrb[0].mxu0
    %1074 = vdwg.mxu0
    %1075 = vst [vmem:[#allocation2] sm:$0xff] %v987
    %1076 = vst [vmem:[#allocation2 + $0x8] sm:$0xff] %v989
    %1077 = vst [vmem:[#allocation2 + $0x10] sm:$0xff] %v1069
    %1078 = vst [vmem:[#allocation2 + $0x18] sm:$0xff] %v1071
    %v1079 = vld [vmem:[#allocation9] sm:$0xff]
    %v1080 = vld [vmem:[#allocation9 + $0x8] sm:$0xff]
    %v1081 = vld [vmem:[#allocation9 + $0x10] sm:$0xff]
    %v1082 = vld [vmem:[#allocation9 + $0x18] sm:$0xff]
    %v1083 = vld [vmem:[#allocation9 + $0x20] sm:$0xff]
    %v1084 = vld [vmem:[#allocation9 + $0x28] sm:$0xff]
    %v1085 = vld [vmem:[#allocation9 + $0x30] sm:$0xff]
    %v1086 = vld [vmem:[#allocation9 + $0x38] sm:$0xff]
    %v1087 = vld [vmem:[#allocation9 + $0x40] sm:$0xff]
    %v1088 = vld [vmem:[#allocation9 + $0x48] sm:$0xff]
    %v1089 = vld [vmem:[#allocation9 + $0x50] sm:$0xff]
    %v1090 = vld [vmem:[#allocation9 + $0x58] sm:$0xff]
    %v1091 = vld [vmem:[#allocation9 + $0x60] sm:$0xff]
    %v1092 = vld [vmem:[#allocation9 + $0x68] sm:$0xff]
    %v1093 = vld [vmem:[#allocation9 + $0x70] sm:$0xff]
    %v1094 = vld [vmem:[#allocation9 + $0x78] sm:$0xff]
    %v1095 = vld [vmem:[#allocation9 + $0x80] sm:$0xff]
    %v1096 = vld [vmem:[#allocation9 + $0x88] sm:$0xff]
    %v1097 = vld [vmem:[#allocation9 + $0x90] sm:$0xff]
    %v1098 = vld [vmem:[#allocation9 + $0x98] sm:$0xff]
    %v1099 = vld [vmem:[#allocation9 + $0xa0] sm:$0xff]
    %v1100 = vld [vmem:[#allocation9 + $0xa8] sm:$0xff]
    %v1101 = vld [vmem:[#allocation9 + $0xb0] sm:$0xff]
    %v1102 = vld [vmem:[#allocation9 + $0xb8] sm:$0xff]
    %v1103 = vld [vmem:[#allocation9 + $0xc0] sm:$0xff]
    %v1104 = vld [vmem:[#allocation9 + $0xc8] sm:$0xff]
    %v1105 = vld [vmem:[#allocation9 + $0xd0] sm:$0xff]
    %v1106 = vld [vmem:[#allocation9 + $0xd8] sm:$0xff]
    %v1107 = vld [vmem:[#allocation9 + $0xe0] sm:$0xff]
    %v1108 = vld [vmem:[#allocation9 + $0xe8] sm:$0xff]
    %v1109 = vld [vmem:[#allocation9 + $0xf0] sm:$0xff]
    %v1110 = vld [vmem:[#allocation9 + $0xf8] sm:$0xff]
    %v1111 = vld [vmem:[#allocation2] ss:$8 sm:$0xf]
    %v1144 = vunpack.c.l.b16 %v1079
    %v1145 = vunpack.c.h.b16 %v1079
    %v1146 = vunpack.c.l.b16 %v1080
    %v1147 = vunpack.c.h.b16 %v1080
    %v1148 = vunpack.c.l.b16 %v1081
    %v1149 = vunpack.c.h.b16 %v1081
    %v1150 = vunpack.c.l.b16 %v1082
    %v1151 = vunpack.c.h.b16 %v1082
    %v1152 = vunpack.c.l.b16 %v1083
    %v1153 = vunpack.c.h.b16 %v1083
    %v1154 = vunpack.c.l.b16 %v1084
    %v1155 = vunpack.c.h.b16 %v1084
    %v1156 = vunpack.c.l.b16 %v1085
    %v1157 = vunpack.c.h.b16 %v1085
    %v1158 = vunpack.c.l.b16 %v1086
    %v1159 = vunpack.c.h.b16 %v1086
    %v1160 = vunpack.c.l.b16 %v1087
    %v1161 = vunpack.c.h.b16 %v1087
    %v1162 = vunpack.c.l.b16 %v1088
    %v1163 = vunpack.c.h.b16 %v1088
    %v1164 = vunpack.c.l.b16 %v1089
    %v1165 = vunpack.c.h.b16 %v1089
    %v1166 = vunpack.c.l.b16 %v1090
    %v1167 = vunpack.c.h.b16 %v1090
    %v1168 = vunpack.c.l.b16 %v1091
    %v1169 = vunpack.c.h.b16 %v1091
    %v1170 = vunpack.c.l.b16 %v1092
    %v1171 = vunpack.c.h.b16 %v1092
    %v1172 = vunpack.c.l.b16 %v1093
    %v1173 = vunpack.c.h.b16 %v1093
    %v1174 = vunpack.c.l.b16 %v1094
    %v1175 = vunpack.c.h.b16 %v1094
    %v1176 = vunpack.c.l.b16 %v1095
    %v1177 = vunpack.c.h.b16 %v1095
    %v1178 = vunpack.c.l.b16 %v1096
    %v1179 = vunpack.c.h.b16 %v1096
    %v1180 = vunpack.c.l.b16 %v1097
    %v1181 = vunpack.c.h.b16 %v1097
    %v1182 = vunpack.c.l.b16 %v1098
    %v1183 = vunpack.c.h.b16 %v1098
    %v1184 = vunpack.c.l.b16 %v1099
    %v1185 = vunpack.c.h.b16 %v1099
    %v1186 = vunpack.c.l.b16 %v1100
    %v1187 = vunpack.c.h.b16 %v1100
    %v1188 = vunpack.c.l.b16 %v1101
    %v1189 = vunpack.c.h.b16 %v1101
    %v1190 = vunpack.c.l.b16 %v1102
    %v1191 = vunpack.c.h.b16 %v1102
    %v1192 = vunpack.c.l.b16 %v1103
    %v1193 = vunpack.c.h.b16 %v1103
    %v1194 = vunpack.c.l.b16 %v1104
    %v1195 = vunpack.c.h.b16 %v1104
    %v1196 = vunpack.c.l.b16 %v1105
    %v1197 = vunpack.c.h.b16 %v1105
    %v1198 = vunpack.c.l.b16 %v1106
    %v1199 = vunpack.c.h.b16 %v1106
    %v1200 = vunpack.c.l.b16 %v1107
    %v1201 = vunpack.c.h.b16 %v1107
    %v1202 = vunpack.c.l.b16 %v1108
    %v1203 = vunpack.c.h.b16 %v1108
    %v1204 = vunpack.c.l.b16 %v1109
    %v1205 = vunpack.c.h.b16 %v1109
    %v1206 = vunpack.c.l.b16 %v1110
    %v1207 = vunpack.c.h.b16 %v1110
    %v1208 = vpack.c.b16 %v1148, %v1144
    %v1209 = vpack.c.b16 %v1149, %v1145
    %v1210 = vpack.c.b16 %v1150, %v1146
    %v1211 = vpack.c.b16 %v1151, %v1147
    %v1212 = vpack.c.b16 %v1156, %v1152
    %v1213 = vpack.c.b16 %v1157, %v1153
    %v1214 = vpack.c.b16 %v1158, %v1154
    %v1215 = vpack.c.b16 %v1159, %v1155
    %v1216 = vpack.c.b16 %v1164, %v1160
    %v1217 = vpack.c.b16 %v1165, %v1161
    %v1218 = vpack.c.b16 %v1166, %v1162
    %v1219 = vpack.c.b16 %v1167, %v1163
    %v1220 = vpack.c.b16 %v1172, %v1168
    %v1221 = vpack.c.b16 %v1173, %v1169
    %v1222 = vpack.c.b16 %v1174, %v1170
    %v1223 = vpack.c.b16 %v1175, %v1171
    %v1224 = vpack.c.b16 %v1180, %v1176
    %v1225 = vpack.c.b16 %v1181, %v1177
    %v1226 = vpack.c.b16 %v1182, %v1178
    %v1227 = vpack.c.b16 %v1183, %v1179
    %v1228 = vpack.c.b16 %v1188, %v1184
    %v1229 = vpack.c.b16 %v1189, %v1185
    %v1230 = vpack.c.b16 %v1190, %v1186
    %v1231 = vpack.c.b16 %v1191, %v1187
    %v1232 = vpack.c.b16 %v1196, %v1192
    %v1233 = vpack.c.b16 %v1197, %v1193
    %v1234 = vpack.c.b16 %v1198, %v1194
    %v1235 = vpack.c.b16 %v1199, %v1195
    %v1236 = vpack.c.b16 %v1204, %v1200
    %v1237 = vpack.c.b16 %v1205, %v1201
    %v1238 = vpack.c.b16 %v1206, %v1202
    %v1239 = vpack.c.b16 %v1207, %v1203
    %1272 = vmatprep.subr.bf16.mxu0 %v1209
    %1273 = vmatpush1.bf16.msra.mxu0 %v1208
    %1274 = vmatprep.subr.bf16.mxu0 %v1213
    %1275 = vmatpush1.bf16.msra.mxu0 %v1212
    %1276 = vmatprep.subr.bf16.mxu0 %v1217
    %1277 = vmatpush1.bf16.msra.mxu0 %v1216
    %1278 = vmatprep.subr.bf16.mxu0 %v1221
    %1279 = vmatpush1.bf16.msra.mxu0 %v1220
    %1280 = vmatprep.subr.bf16.mxu0 %v1225
    %1281 = vmatpush1.bf16.msra.mxu0 %v1224
    %1282 = vmatprep.subr.bf16.mxu0 %v1229
    %1283 = vmatpush1.bf16.msra.mxu0 %v1228
    %1284 = vmatprep.subr.bf16.mxu0 %v1233
    %1285 = vmatpush1.bf16.msra.mxu0 %v1232
    %1286 = vmatprep.subr.bf16.mxu0 %v1237
    %1287 = vmatpush1.bf16.msra.mxu0 %v1236
    %1288 = vmatprep.subr.bf16.mxu0 0
    %1289 = vmatpush1.bf16.msra.mxu0 0
    %1290 = vmatprep.subr.bf16.mxu0 0
    %1291 = vmatpush1.bf16.msra.mxu0 0
    %1292 = vmatprep.subr.bf16.mxu0 0
    %1293 = vmatpush1.bf16.msra.mxu0 0
    %1294 = vmatprep.subr.bf16.mxu0 0
    %1295 = vmatpush1.bf16.msra.mxu0 0
    %1296 = vmatprep.subr.bf16.mxu0 0
    %1297 = vmatpush1.bf16.msra.mxu0 0
    %1298 = vmatprep.subr.bf16.mxu0 0
    %1299 = vmatpush1.bf16.msra.mxu0 0
    %1300 = vmatprep.subr.bf16.mxu0 0
    %1301 = vmatpush1.bf16.msra.mxu0 0
    %1302 = vmatprep.subr.bf16.mxu0 0
    %1303 = vmatpush1.bf16.msra.mxu0 0
    %1304 = vmatprep.mubr.bf16.mxu0 0
    %1305 = vmatmul.mubr.bf16.gmra.mrb[0].mxu0 0
    %v1306 = vpop.f32.mrb[0].mxu0
    %v1307 = vadd.f32 0.0, %v1306
    %v1308 = vpop.f32.mrb[0].mxu0
    %v1309 = vadd.f32 0.0, %v1308
    %v1310 = vpop.f32.mrb[0].mxu0
    %v1311 = vpop.f32.mrb[0].mxu0
    %1312 = vdwg.mxu0
    %1313 = vmatprep.subr.bf16.mxu0 %v1211
    %1314 = vmatpush1.bf16.msra.mxu0 %v1210
    %1315 = vmatprep.subr.bf16.mxu0 %v1215
    %1316 = vmatpush1.bf16.msra.mxu0 %v1214
    %1317 = vmatprep.subr.bf16.mxu0 %v1219
    %1318 = vmatpush1.bf16.msra.mxu0 %v1218
    %1319 = vmatprep.subr.bf16.mxu0 %v1223
    %1320 = vmatpush1.bf16.msra.mxu0 %v1222
    %1321 = vmatprep.subr.bf16.mxu0 %v1227
    %1322 = vmatpush1.bf16.msra.mxu0 %v1226
    %1323 = vmatprep.subr.bf16.mxu0 %v1231
    %1324 = vmatpush1.bf16.msra.mxu0 %v1230
    %1325 = vmatprep.subr.bf16.mxu0 %v1235
    %1326 = vmatpush1.bf16.msra.mxu0 %v1234
    %1327 = vmatprep.subr.bf16.mxu0 %v1239
    %1328 = vmatpush1.bf16.msra.mxu0 %v1238
    %1329 = vmatprep.subr.bf16.mxu0 0
    %1330 = vmatpush1.bf16.msra.mxu0 0
    %1331 = vmatprep.subr.bf16.mxu0 0
    %1332 = vmatpush1.bf16.msra.mxu0 0
    %1333 = vmatprep.subr.bf16.mxu0 0
    %1334 = vmatpush1.bf16.msra.mxu0 0
    %1335 = vmatprep.subr.bf16.mxu0 0
    %1336 = vmatpush1.bf16.msra.mxu0 0
    %1337 = vmatprep.subr.bf16.mxu0 0
    %1338 = vmatpush1.bf16.msra.mxu0 0
    %1339 = vmatprep.subr.bf16.mxu0 0
    %1340 = vmatpush1.bf16.msra.mxu0 0
    %1341 = vmatprep.subr.bf16.mxu0 0
    %1342 = vmatpush1.bf16.msra.mxu0 0
    %1343 = vmatprep.subr.bf16.mxu0 0
    %1344 = vmatpush1.bf16.msra.mxu0 0
    %1345 = vmatprep.mubr.bf16.mxu0 0
    %1346 = vmatmul.mubr.bf16.gmra.mrb[0].mxu0 0
    %v1347 = vpop.f32.mrb[0].mxu0
    %v1348 = vadd.f32 0.0, %v1347
    %v1349 = vpop.f32.mrb[0].mxu0
    %v1350 = vadd.f32 0.0, %v1349
    %v1351 = vpop.f32.mrb[0].mxu0
    %v1352 = vpop.f32.mrb[0].mxu0
    %1353 = vdwg.mxu0
    %v1358 = vcombine.low %v1307, %v1309
    %v1359 = vcombine.low %v1348, %v1350
    %v1361 = vunpack.c.l.s4 1966171168
    %v1362 = vunpack.c.0.s8 %v1361
    %v1363 = vlaneseq
    %v1364 = vshrl.u32 %v1363, 7
    %v1365 = vsub.s32 %v1362, %v1364
    %v1366 = vrot.slane %v1358, %v1365
    %v1368 = vunpack.c.l.s4 1966171168
    %v1369 = vunpack.c.0.s8 %v1368
    %v1370 = vlaneseq
    %v1371 = vshrl.u32 %v1370, 7
    %v1372 = vsub.s32 %v1369, %v1371
    %v1373 = vrot.slane %v1359, %v1372
    %v1374 = vcombine.low %v1366, %v1373
    %v1376 = vunpack.c.l.s4 1966171168
    %v1377 = vunpack.c.0.s8 %v1376
    %v1378 = vlaneseq
    %v1379 = vshrl.u32 %v1378, 7
    %v1380 = vsub.s32 %v1377, %v1379
    %v1381 = vrot.slane %v1374, %v1380
    %v1383 = vadd.f32 %v1111, %v1381
    %v1384 = vxor.u32 %v1383, 2147483648
    %v1385 = vmul.f32 %v1384, 1.442695
    %v1386 = vpow.pop %v1385
    %v1387 = vadd.f32 %v1386, 1.0
    %v1388 = vrcp.pop %v1387
    %v1389 = vmul.f32 1.0, %v1388
    %v1391 = vrot.slane %v1383, 1
    %v1393 = vxor.u32 %v1391, 2147483648
    %v1394 = vmul.f32 %v1393, 1.442695
    %v1395 = vpow.pop %v1394
    %v1396 = vadd.f32 %v1395, 1.0
    %v1397 = vrcp.pop %v1396
    %v1398 = vmul.f32 1.0, %v1397
    %v1399 = vrot.slane %v1383, 2
    %v1401 = vtanh.pop %v1399
    %v1402 = vrot.slane %v1383, 3
    %v1404 = vxor.u32 %v1402, 2147483648
    %v1405 = vmul.f32 %v1404, 1.442695
    %v1406 = vpow.pop %v1405
    %v1407 = vadd.f32 %v1406, 1.0
    %v1408 = vrcp.pop %v1407
    %v1409 = vmul.f32 1.0, %v1408
    %v1410 = vmul.f32 %v1398, 0.0
    %v1411 = vmul.f32 %v1389, %v1401
    %v1412 = vadd.f32 %v1410, %v1411
    %v1413 = vtanh.pop %v1412
    %v1414 = vmul.f32 %v1409, %v1413
    %1415 = vst [vmem:[#allocation3] sm:$0x1] %v1414
    %s1416 = scalar_lea.vmem [#allocation2], 1
    %v1417 = vld [vmem:[%s1416] ss:$8 sm:$0xf]
    %v1418 = vpack.c.bf16 %v1414, %v1414
    %1419 = vmatprep.subr.bf16.mxu0 %v1209
    %1420 = vmatpush1.bf16.msra.mxu0 %v1208
    %1421 = vmatprep.subr.bf16.mxu0 %v1213
    %1422 = vmatpush1.bf16.msra.mxu0 %v1212
    %1423 = vmatprep.subr.bf16.mxu0 %v1217
    %1424 = vmatpush1.bf16.msra.mxu0 %v1216
    %1425 = vmatprep.subr.bf16.mxu0 %v1221
    %1426 = vmatpush1.bf16.msra.mxu0 %v1220
    %1427 = vmatprep.subr.bf16.mxu0 %v1225
    %1428 = vmatpush1.bf16.msra.mxu0 %v1224
    %1429 = vmatprep.subr.bf16.mxu0 %v1229
    %1430 = vmatpush1.bf16.msra.mxu0 %v1228
    %1431 = vmatprep.subr.bf16.mxu0 %v1233
    %1432 = vmatpush1.bf16.msra.mxu0 %v1232
    %1433 = vmatprep.subr.bf16.mxu0 %v1237
    %1434 = vmatpush1.bf16.msra.mxu0 %v1236
    %1435 = vmatprep.subr.bf16.mxu0 0
    %1436 = vmatpush1.bf16.msra.mxu0 0
    %1437 = vmatprep.subr.bf16.mxu0 0
    %1438 = vmatpush1.bf16.msra.mxu0 0
    %1439 = vmatprep.subr.bf16.mxu0 0
    %1440 = vmatpush1.bf16.msra.mxu0 0
    %1441 = vmatprep.subr.bf16.mxu0 0
    %1442 = vmatpush1.bf16.msra.mxu0 0
    %1443 = vmatprep.subr.bf16.mxu0 0
    %1444 = vmatpush1.bf16.msra.mxu0 0
    %1445 = vmatprep.subr.bf16.mxu0 0
    %1446 = vmatpush1.bf16.msra.mxu0 0
    %1447 = vmatprep.subr.bf16.mxu0 0
    %1448 = vmatpush1.bf16.msra.mxu0 0
    %1449 = vmatprep.subr.bf16.mxu0 0
    %1450 = vmatpush1.bf16.msra.mxu0 0
    %1451 = vmatprep.mubr.bf16.mxu0 0
    %1452 = vmatmul.mubr.bf16.gmra.mrb[0].mxu0 %v1418
    %v1453 = vpop.f32.mrb[0].mxu0
    %v1454 = vadd.f32 0.0, %v1453
    %v1455 = vpop.f32.mrb[0].mxu0
    %v1456 = vadd.f32 0.0, %v1455
    %v1457 = vpop.f32.mrb[0].mxu0
    %v1458 = vpop.f32.mrb[0].mxu0
    %1459 = vdwg.mxu0
    %1460 = vmatprep.subr.bf16.mxu0 %v1211
    %1461 = vmatpush1.bf16.msra.mxu0 %v1210
    %1462 = vmatprep.subr.bf16.mxu0 %v1215
    %1463 = vmatpush1.bf16.msra.mxu0 %v1214
    %1464 = vmatprep.subr.bf16.mxu0 %v1219
    %1465 = vmatpush1.bf16.msra.mxu0 %v1218
    %1466 = vmatprep.subr.bf16.mxu0 %v1223
    %1467 = vmatpush1.bf16.msra.mxu0 %v1222
    %1468 = vmatprep.subr.bf16.mxu0 %v1227
    %1469 = vmatpush1.bf16.msra.mxu0 %v1226
    %1470 = vmatprep.subr.bf16.mxu0 %v1231
    %1471 = vmatpush1.bf16.msra.mxu0 %v1230
    %1472 = vmatprep.subr.bf16.mxu0 %v1235
    %1473 = vmatpush1.bf16.msra.mxu0 %v1234
    %1474 = vmatprep.subr.bf16.mxu0 %v1239
    %1475 = vmatpush1.bf16.msra.mxu0 %v1238
    %1476 = vmatprep.subr.bf16.mxu0 0
    %1477 = vmatpush1.bf16.msra.mxu0 0
    %1478 = vmatprep.subr.bf16.mxu0 0
    %1479 = vmatpush1.bf16.msra.mxu0 0
    %1480 = vmatprep.subr.bf16.mxu0 0
    %1481 = vmatpush1.bf16.msra.mxu0 0
    %1482 = vmatprep.subr.bf16.mxu0 0
    %1483 = vmatpush1.bf16.msra.mxu0 0
    %1484 = vmatprep.subr.bf16.mxu0 0
    %1485 = vmatpush1.bf16.msra.mxu0 0
    %1486 = vmatprep.subr.bf16.mxu0 0
    %1487 = vmatpush1.bf16.msra.mxu0 0
    %1488 = vmatprep.subr.bf16.mxu0 0
    %1489 = vmatpush1.bf16.msra.mxu0 0
    %1490 = vmatprep.subr.bf16.mxu0 0
    %1491 = vmatpush1.bf16.msra.mxu0 0
    %1492 = vmatprep.mubr.bf16.mxu0 0
    %1493 = vmatmul.mubr.bf16.gmra.mrb[0].mxu0 %v1418
    %v1494 = vpop.f32.mrb[0].mxu0
    %v1495 = vadd.f32 0.0, %v1494
    %v1496 = vpop.f32.mrb[0].mxu0
    %v1497 = vadd.f32 0.0, %v1496
    %v1498 = vpop.f32.mrb[0].mxu0
    %v1499 = vpop.f32.mrb[0].mxu0
    %1500 = vdwg.mxu0
    %v1505 = vcombine.low %v1454, %v1456
    %v1506 = vcombine.low %v1495, %v1497
    %v1508 = vunpack.c.l.s4 1966171168
    %v1509 = vunpack.c.0.s8 %v1508
    %v1510 = vlaneseq
    %v1511 = vshrl.u32 %v1510, 7
    %v1512 = vsub.s32 %v1509, %v1511
    %v1513 = vrot.slane %v1505, %v1512
    %v1515 = vunpack.c.l.s4 1966171168
    %v1516 = vunpack.c.0.s8 %v1515
    %v1517 = vlaneseq
    %v1518 = vshrl.u32 %v1517, 7
    %v1519 = vsub.s32 %v1516, %v1518
    %v1520 = vrot.slane %v1506, %v1519
    %v1521 = vcombine.low %v1513, %v1520
    %v1523 = vunpack.c.l.s4 1966171168
    %v1524 = vunpack.c.0.s8 %v1523
    %v1525 = vlaneseq
    %v1526 = vshrl.u32 %v1525, 7
    %v1527 = vsub.s32 %v1524, %v1526
    %v1528 = vrot.slane %v1521, %v1527
    %v1530 = vadd.f32 %v1417, %v1528
    %v1531 = vxor.u32 %v1530, 2147483648
    %v1532 = vmul.f32 %v1531, 1.442695
    %v1533 = vpow.pop %v1532
    %v1534 = vadd.f32 %v1533, 1.0
    %v1535 = vrcp.pop %v1534
    %v1536 = vmul.f32 1.0, %v1535
    %v1538 = vrot.slane %v1530, 1
    %v1540 = vxor.u32 %v1538, 2147483648
    %v1541 = vmul.f32 %v1540, 1.442695
    %v1542 = vpow.pop %v1541
    %v1543 = vadd.f32 %v1542, 1.0
    %v1544 = vrcp.pop %v1543
    %v1545 = vmul.f32 1.0, %v1544
    %v1546 = vrot.slane %v1530, 2
    %v1548 = vtanh.pop %v1546
    %v1549 = vrot.slane %v1530, 3
    %v1551 = vxor.u32 %v1549, 2147483648
    %v1552 = vmul.f32 %v1551, 1.442695
    %v1553 = vpow.pop %v1552
    %v1554 = vadd.f32 %v1553, 1.0
    %v1555 = vrcp.pop %v1554
    %v1556 = vmul.f32 1.0, %v1555
    %v1557 = vmul.f32 %v1545, %v1412
    %v1558 = vmul.f32 %v1536, %v1548
    %v1559 = vadd.f32 %v1557, %v1558
    %v1560 = vtanh.pop %v1559
    %v1561 = vmul.f32 %v1556, %v1560
    %1562 = vst [vmem:[#allocation3 + $0x1] sm:$0x1] %v1561
    %s1563 = scalar_lea.vmem [#allocation2], 2
    %v1564 = vld [vmem:[%s1563] ss:$8 sm:$0xf]
    %v1565 = vpack.c.bf16 %v1561, %v1561
    %1566 = vmatprep.subr.bf16.mxu0 %v1209
    %1567 = vmatpush1.bf16.msra.mxu0 %v1208
    %1568 = vmatprep.subr.bf16.mxu0 %v1213
    %1569 = vmatpush1.bf16.msra.mxu0 %v1212
    %1570 = vmatprep.subr.bf16.mxu0 %v1217
    %1571 = vmatpush1.bf16.msra.mxu0 %v1216
    %1572 = vmatprep.subr.bf16.mxu0 %v1221
    %1573 = vmatpush1.bf16.msra.mxu0 %v1220
    %1574 = vmatprep.subr.bf16.mxu0 %v1225
    %1575 = vmatpush1.bf16.msra.mxu0 %v1224
    %1576 = vmatprep.subr.bf16.mxu0 %v1229
    %1577 = vmatpush1.bf16.msra.mxu0 %v1228
    %1578 = vmatprep.subr.bf16.mxu0 %v1233
    %1579 = vmatpush1.bf16.msra.mxu0 %v1232
    %1580 = vmatprep.subr.bf16.mxu0 %v1237
    %1581 = vmatpush1.bf16.msra.mxu0 %v1236
    %1582 = vmatprep.subr.bf16.mxu0 0
    %1583 = vmatpush1.bf16.msra.mxu0 0
    %1584 = vmatprep.subr.bf16.mxu0 0
    %1585 = vmatpush1.bf16.msra.mxu0 0
    %1586 = vmatprep.subr.bf16.mxu0 0
    %1587 = vmatpush1.bf16.msra.mxu0 0
    %1588 = vmatprep.subr.bf16.mxu0 0
    %1589 = vmatpush1.bf16.msra.mxu0 0
    %1590 = vmatprep.subr.bf16.mxu0 0
    %1591 = vmatpush1.bf16.msra.mxu0 0
    %1592 = vmatprep.subr.bf16.mxu0 0
    %1593 = vmatpush1.bf16.msra.mxu0 0
    %1594 = vmatprep.subr.bf16.mxu0 0
    %1595 = vmatpush1.bf16.msra.mxu0 0
    %1596 = vmatprep.subr.bf16.mxu0 0
    %1597 = vmatpush1.bf16.msra.mxu0 0
    %1598 = vmatprep.mubr.bf16.mxu0 0
    %1599 = vmatmul.mubr.bf16.gmra.mrb[0].mxu0 %v1565
    %v1600 = vpop.f32.mrb[0].mxu0
    %v1601 = vadd.f32 0.0, %v1600
    %v1602 = vpop.f32.mrb[0].mxu0
    %v1603 = vadd.f32 0.0, %v1602
    %v1604 = vpop.f32.mrb[0].mxu0
    %v1605 = vpop.f32.mrb[0].mxu0
    %1606 = vdwg.mxu0
    %1607 = vmatprep.subr.bf16.mxu0 %v1211
    %1608 = vmatpush1.bf16.msra.mxu0 %v1210
    %1609 = vmatprep.subr.bf16.mxu0 %v1215
    %1610 = vmatpush1.bf16.msra.mxu0 %v1214
    %1611 = vmatprep.subr.bf16.mxu0 %v1219
    %1612 = vmatpush1.bf16.msra.mxu0 %v1218
    %1613 = vmatprep.subr.bf16.mxu0 %v1223
    %1614 = vmatpush1.bf16.msra.mxu0 %v1222
    %1615 = vmatprep.subr.bf16.mxu0 %v1227
    %1616 = vmatpush1.bf16.msra.mxu0 %v1226
    %1617 = vmatprep.subr.bf16.mxu0 %v1231
    %1618 = vmatpush1.bf16.msra.mxu0 %v1230
    %1619 = vmatprep.subr.bf16.mxu0 %v1235
    %1620 = vmatpush1.bf16.msra.mxu0 %v1234
    %1621 = vmatprep.subr.bf16.mxu0 %v1239
    %1622 = vmatpush1.bf16.msra.mxu0 %v1238
    %1623 = vmatprep.subr.bf16.mxu0 0
    %1624 = vmatpush1.bf16.msra.mxu0 0
    %1625 = vmatprep.subr.bf16.mxu0 0
    %1626 = vmatpush1.bf16.msra.mxu0 0
    %1627 = vmatprep.subr.bf16.mxu0 0
    %1628 = vmatpush1.bf16.msra.mxu0 0
    %1629 = vmatprep.subr.bf16.mxu0 0
    %1630 = vmatpush1.bf16.msra.mxu0 0
    %1631 = vmatprep.subr.bf16.mxu0 0
    %1632 = vmatpush1.bf16.msra.mxu0 0
    %1633 = vmatprep.subr.bf16.mxu0 0
    %1634 = vmatpush1.bf16.msra.mxu0 0
    %1635 = vmatprep.subr.bf16.mxu0 0
    %1636 = vmatpush1.bf16.msra.mxu0 0
    %1637 = vmatprep.subr.bf16.mxu0 0
    %1638 = vmatpush1.bf16.msra.mxu0 0
    %1639 = vmatprep.mubr.bf16.mxu0 0
    %1640 = vmatmul.mubr.bf16.gmra.mrb[0].mxu0 %v1565
    %v1641 = vpop.f32.mrb[0].mxu0
    %v1642 = vadd.f32 0.0, %v1641
    %v1643 = vpop.f32.mrb[0].mxu0
    %v1644 = vadd.f32 0.0, %v1643
    %v1645 = vpop.f32.mrb[0].mxu0
    %v1646 = vpop.f32.mrb[0].mxu0
    %1647 = vdwg.mxu0
    %v1652 = vcombine.low %v1601, %v1603
    %v1653 = vcombine.low %v1642, %v1644
    %v1655 = vunpack.c.l.s4 1966171168
    %v1656 = vunpack.c.0.s8 %v1655
    %v1657 = vlaneseq
    %v1658 = vshrl.u32 %v1657, 7
    %v1659 = vsub.s32 %v1656, %v1658
    %v1660 = vrot.slane %v1652, %v1659
    %v1662 = vunpack.c.l.s4 1966171168
    %v1663 = vunpack.c.0.s8 %v1662
    %v1664 = vlaneseq
    %v1665 = vshrl.u32 %v1664, 7
    %v1666 = vsub.s32 %v1663, %v1665
    %v1667 = vrot.slane %v1653, %v1666
    %v1668 = vcombine.low %v1660, %v1667
    %v1670 = vunpack.c.l.s4 1966171168
    %v1671 = vunpack.c.0.s8 %v1670
    %v1672 = vlaneseq
    %v1673 = vshrl.u32 %v1672, 7
    %v1674 = vsub.s32 %v1671, %v1673
    %v1675 = vrot.slane %v1668, %v1674
    %v1677 = vadd.f32 %v1564, %v1675
    %v1678 = vxor.u32 %v1677, 2147483648
    %v1679 = vmul.f32 %v1678, 1.442695
    %v1680 = vpow.pop %v1679
    %v1681 = vadd.f32 %v1680, 1.0
    %v1682 = vrcp.pop %v1681
    %v1683 = vmul.f32 1.0, %v1682
    %v1685 = vrot.slane %v1677, 1
    %v1687 = vxor.u32 %v1685, 2147483648
    %v1688 = vmul.f32 %v1687, 1.442695
    %v1689 = vpow.pop %v1688
    %v1690 = vadd.f32 %v1689, 1.0
    %v1691 = vrcp.pop %v1690
    %v1692 = vmul.f32 1.0, %v1691
    %v1693 = vrot.slane %v1677, 2
    %v1695 = vtanh.pop %v1693
    %v1696 = vrot.slane %v1677, 3
    %v1698 = vxor.u32 %v1696, 2147483648
    %v1699 = vmul.f32 %v1698, 1.442695
    %v1700 = vpow.pop %v1699
    %v1701 = vadd.f32 %v1700, 1.0
    %v1702 = vrcp.pop %v1701
    %v1703 = vmul.f32 1.0, %v1702
    %v1704 = vmul.f32 %v1692, %v1559
    %v1705 = vmul.f32 %v1683, %v1695
    %v1706 = vadd.f32 %v1704, %v1705
    %v1707 = vtanh.pop %v1706
    %v1708 = vmul.f32 %v1703, %v1707
    %1709 = vst [vmem:[#allocation3 + $0x2] sm:$0x1] %v1708
    %s1710 = scalar_lea.vmem [#allocation2], 3
    %v1711 = vld [vmem:[%s1710] ss:$8 sm:$0xf]
    %v1712 = vpack.c.bf16 %v1708, %v1708
    %1713 = vmatprep.subr.bf16.mxu0 %v1209
    %1714 = vmatpush1.bf16.msra.mxu0 %v1208
    %1715 = vmatprep.subr.bf16.mxu0 %v1213
    %1716 = vmatpush1.bf16.msra.mxu0 %v1212
    %1717 = vmatprep.subr.bf16.mxu0 %v1217
    %1718 = vmatpush1.bf16.msra.mxu0 %v1216
    %1719 = vmatprep.subr.bf16.mxu0 %v1221
    %1720 = vmatpush1.bf16.msra.mxu0 %v1220
    %1721 = vmatprep.subr.bf16.mxu0 %v1225
    %1722 = vmatpush1.bf16.msra.mxu0 %v1224
    %1723 = vmatprep.subr.bf16.mxu0 %v1229
    %1724 = vmatpush1.bf16.msra.mxu0 %v1228
    %1725 = vmatprep.subr.bf16.mxu0 %v1233
    %1726 = vmatpush1.bf16.msra.mxu0 %v1232
    %1727 = vmatprep.subr.bf16.mxu0 %v1237
    %1728 = vmatpush1.bf16.msra.mxu0 %v1236
    %1729 = vmatprep.subr.bf16.mxu0 0
    %1730 = vmatpush1.bf16.msra.mxu0 0
    %1731 = vmatprep.subr.bf16.mxu0 0
    %1732 = vmatpush1.bf16.msra.mxu0 0
    %1733 = vmatprep.subr.bf16.mxu0 0
    %1734 = vmatpush1.bf16.msra.mxu0 0
    %1735 = vmatprep.subr.bf16.mxu0 0
    %1736 = vmatpush1.bf16.msra.mxu0 0
    %1737 = vmatprep.subr.bf16.mxu0 0
    %1738 = vmatpush1.bf16.msra.mxu0 0
    %1739 = vmatprep.subr.bf16.mxu0 0
    %1740 = vmatpush1.bf16.msra.mxu0 0
    %1741 = vmatprep.subr.bf16.mxu0 0
    %1742 = vmatpush1.bf16.msra.mxu0 0
    %1743 = vmatprep.subr.bf16.mxu0 0
    %1744 = vmatpush1.bf16.msra.mxu0 0
    %1745 = vmatprep.mubr.bf16.mxu0 0
    %1746 = vmatmul.mubr.bf16.gmra.mrb[0].mxu0 %v1712
    %v1747 = vpop.f32.mrb[0].mxu0
    %v1748 = vadd.f32 0.0, %v1747
    %v1749 = vpop.f32.mrb[0].mxu0
    %v1750 = vadd.f32 0.0, %v1749
    %v1751 = vpop.f32.mrb[0].mxu0
    %v1752 = vpop.f32.mrb[0].mxu0
    %1753 = vdwg.mxu0
    %1754 = vmatprep.subr.bf16.mxu0 %v1211
    %1755 = vmatpush1.bf16.msra.mxu0 %v1210
    %1756 = vmatprep.subr.bf16.mxu0 %v1215
    %1757 = vmatpush1.bf16.msra.mxu0 %v1214
    %1758 = vmatprep.subr.bf16.mxu0 %v1219
    %1759 = vmatpush1.bf16.msra.mxu0 %v1218
    %1760 = vmatprep.subr.bf16.mxu0 %v1223
    %1761 = vmatpush1.bf16.msra.mxu0 %v1222
    %1762 = vmatprep.subr.bf16.mxu0 %v1227
    %1763 = vmatpush1.bf16.msra.mxu0 %v1226
    %1764 = vmatprep.subr.bf16.mxu0 %v1231
    %1765 = vmatpush1.bf16.msra.mxu0 %v1230
    %1766 = vmatprep.subr.bf16.mxu0 %v1235
    %1767 = vmatpush1.bf16.msra.mxu0 %v1234
    %1768 = vmatprep.subr.bf16.mxu0 %v1239
    %1769 = vmatpush1.bf16.msra.mxu0 %v1238
    %1770 = vmatprep.subr.bf16.mxu0 0
    %1771 = vmatpush1.bf16.msra.mxu0 0
    %1772 = vmatprep.subr.bf16.mxu0 0
    %1773 = vmatpush1.bf16.msra.mxu0 0
    %1774 = vmatprep.subr.bf16.mxu0 0
    %1775 = vmatpush1.bf16.msra.mxu0 0
    %1776 = vmatprep.subr.bf16.mxu0 0
    %1777 = vmatpush1.bf16.msra.mxu0 0
    %1778 = vmatprep.subr.bf16.mxu0 0
    %1779 = vmatpush1.bf16.msra.mxu0 0
    %1780 = vmatprep.subr.bf16.mxu0 0
    %1781 = vmatpush1.bf16.msra.mxu0 0
    %1782 = vmatprep.subr.bf16.mxu0 0
    %1783 = vmatpush1.bf16.msra.mxu0 0
    %1784 = vmatprep.subr.bf16.mxu0 0
    %1785 = vmatpush1.bf16.msra.mxu0 0
    %1786 = vmatprep.mubr.bf16.mxu0 0
    %1787 = vmatmul.mubr.bf16.gmra.mrb[0].mxu0 %v1712
    %v1788 = vpop.f32.mrb[0].mxu0
    %v1789 = vadd.f32 0.0, %v1788
    %v1790 = vpop.f32.mrb[0].mxu0
    %v1791 = vadd.f32 0.0, %v1790
    %v1792 = vpop.f32.mrb[0].mxu0
    %v1793 = vpop.f32.mrb[0].mxu0
    %1794 = vdwg.mxu0
    %v1799 = vcombine.low %v1748, %v1750
    %v1800 = vcombine.low %v1789, %v1791
    %v1802 = vunpack.c.l.s4 1966171168
    %v1803 = vunpack.c.0.s8 %v1802
    %v1804 = vlaneseq
    %v1805 = vshrl.u32 %v1804, 7
    %v1806 = vsub.s32 %v1803, %v1805
    %v1807 = vrot.slane %v1799, %v1806
    %v1809 = vunpack.c.l.s4 1966171168
    %v1810 = vunpack.c.0.s8 %v1809
    %v1811 = vlaneseq
    %v1812 = vshrl.u32 %v1811, 7
    %v1813 = vsub.s32 %v1810, %v1812
    %v1814 = vrot.slane %v1800, %v1813
    %v1815 = vcombine.low %v1807, %v1814
    %v1817 = vunpack.c.l.s4 1966171168
    %v1818 = vunpack.c.0.s8 %v1817
    %v1819 = vlaneseq
    %v1820 = vshrl.u32 %v1819, 7
    %v1821 = vsub.s32 %v1818, %v1820
    %v1822 = vrot.slane %v1815, %v1821
    %v1824 = vadd.f32 %v1711, %v1822
    %v1825 = vxor.u32 %v1824, 2147483648
    %v1826 = vmul.f32 %v1825, 1.442695
    %v1827 = vpow.pop %v1826
    %v1828 = vadd.f32 %v1827, 1.0
    %v1829 = vrcp.pop %v1828
    %v1830 = vmul.f32 1.0, %v1829
    %v1832 = vrot.slane %v1824, 1
    %v1834 = vxor.u32 %v1832, 2147483648
    %v1835 = vmul.f32 %v1834, 1.442695
    %v1836 = vpow.pop %v1835
    %v1837 = vadd.f32 %v1836, 1.0
    %v1838 = vrcp.pop %v1837
    %v1839 = vmul.f32 1.0, %v1838
    %v1840 = vrot.slane %v1824, 2
    %v1842 = vtanh.pop %v1840
    %v1843 = vrot.slane %v1824, 3
    %v1845 = vxor.u32 %v1843, 2147483648
    %v1846 = vmul.f32 %v1845, 1.442695
    %v1847 = vpow.pop %v1846
    %v1848 = vadd.f32 %v1847, 1.0
    %v1849 = vrcp.pop %v1848
    %v1850 = vmul.f32 1.0, %v1849
    %v1851 = vmul.f32 %v1839, %v1706
    %v1852 = vmul.f32 %v1830, %v1842
    %v1853 = vadd.f32 %v1851, %v1852
    %v1854 = vtanh.pop %v1853
    %v1855 = vmul.f32 %v1850, %v1854
    %1856 = vst [vmem:[#allocation3 + $0x3] sm:$0x1] %v1855
    %s1857 = scalar_lea.vmem [#allocation2], 4
    %v1858 = vld [vmem:[%s1857] ss:$8 sm:$0xf]
    %v1859 = vpack.c.bf16 %v1855, %v1855
    %1860 = vmatprep.subr.bf16.mxu0 %v1209
    %1861 = vmatpush1.bf16.msra.mxu0 %v1208
    %1862 = vmatprep.subr.bf16.mxu0 %v1213
    %1863 = vmatpush1.bf16.msra.mxu0 %v1212
    %1864 = vmatprep.subr.bf16.mxu0 %v1217
    %1865 = vmatpush1.bf16.msra.mxu0 %v1216
    %1866 = vmatprep.subr.bf16.mxu0 %v1221
    %1867 = vmatpush1.bf16.msra.mxu0 %v1220
    %1868 = vmatprep.subr.bf16.mxu0 %v1225
    %1869 = vmatpush1.bf16.msra.mxu0 %v1224
    %1870 = vmatprep.subr.bf16.mxu0 %v1229
    %1871 = vmatpush1.bf16.msra.mxu0 %v1228
    %1872 = vmatprep.subr.bf16.mxu0 %v1233
    %1873 = vmatpush1.bf16.msra.mxu0 %v1232
    %1874 = vmatprep.subr.bf16.mxu0 %v1237
    %1875 = vmatpush1.bf16.msra.mxu0 %v1236
    %1876 = vmatprep.subr.bf16.mxu0 0
    %1877 = vmatpush1.bf16.msra.mxu0 0
    %1878 = vmatprep.subr.bf16.mxu0 0
    %1879 = vmatpush1.bf16.msra.mxu0 0
    %1880 = vmatprep.subr.bf16.mxu0 0
    %1881 = vmatpush1.bf16.msra.mxu0 0
    %1882 = vmatprep.subr.bf16.mxu0 0
    %1883 = vmatpush1.bf16.msra.mxu0 0
    %1884 = vmatprep.subr.bf16.mxu0 0
    %1885 = vmatpush1.bf16.msra.mxu0 0
    %1886 = vmatprep.subr.bf16.mxu0 0
    %1887 = vmatpush1.bf16.msra.mxu0 0
    %1888 = vmatprep.subr.bf16.mxu0 0
    %1889 = vmatpush1.bf16.msra.mxu0 0
    %1890 = vmatprep.subr.bf16.mxu0 0
    %1891 = vmatpush1.bf16.msra.mxu0 0
    %1892 = vmatprep.mubr.bf16.mxu0 0
    %1893 = vmatmul.mubr.bf16.gmra.mrb[0].mxu0 %v1859
    %v1894 = vpop.f32.mrb[0].mxu0
    %v1895 = vadd.f32 0.0, %v1894
    %v1896 = vpop.f32.mrb[0].mxu0
    %v1897 = vadd.f32 0.0, %v1896
    %v1898 = vpop.f32.mrb[0].mxu0
    %v1899 = vpop.f32.mrb[0].mxu0
    %1900 = vdwg.mxu0
    %1901 = vmatprep.subr.bf16.mxu0 %v1211
    %1902 = vmatpush1.bf16.msra.mxu0 %v1210
    %1903 = vmatprep.subr.bf16.mxu0 %v1215
    %1904 = vmatpush1.bf16.msra.mxu0 %v1214
    %1905 = vmatprep.subr.bf16.mxu0 %v1219
    %1906 = vmatpush1.bf16.msra.mxu0 %v1218
    %1907 = vmatprep.subr.bf16.mxu0 %v1223
    %1908 = vmatpush1.bf16.msra.mxu0 %v1222
    %1909 = vmatprep.subr.bf16.mxu0 %v1227
    %1910 = vmatpush1.bf16.msra.mxu0 %v1226
    %1911 = vmatprep.subr.bf16.mxu0 %v1231
    %1912 = vmatpush1.bf16.msra.mxu0 %v1230
    %1913 = vmatprep.subr.bf16.mxu0 %v1235
    %1914 = vmatpush1.bf16.msra.mxu0 %v1234
    %1915 = vmatprep.subr.bf16.mxu0 %v1239
    %1916 = vmatpush1.bf16.msra.mxu0 %v1238
    %1917 = vmatprep.subr.bf16.mxu0 0
    %1918 = vmatpush1.bf16.msra.mxu0 0
    %1919 = vmatprep.subr.bf16.mxu0 0
    %1920 = vmatpush1.bf16.msra.mxu0 0
    %1921 = vmatprep.subr.bf16.mxu0 0
    %1922 = vmatpush1.bf16.msra.mxu0 0
    %1923 = vmatprep.subr.bf16.mxu0 0
    %1924 = vmatpush1.bf16.msra.mxu0 0
    %1925 = vmatprep.subr.bf16.mxu0 0
    %1926 = vmatpush1.bf16.msra.mxu0 0
    %1927 = vmatprep.subr.bf16.mxu0 0
    %1928 = vmatpush1.bf16.msra.mxu0 0
    %1929 = vmatprep.subr.bf16.mxu0 0
    %1930 = vmatpush1.bf16.msra.mxu0 0
    %1931 = vmatprep.subr.bf16.mxu0 0
    %1932 = vmatpush1.bf16.msra.mxu0 0
    %1933 = vmatprep.mubr.bf16.mxu0 0
    %1934 = vmatmul.mubr.bf16.gmra.mrb[0].mxu0 %v1859
    %v1935 = vpop.f32.mrb[0].mxu0
    %v1936 = vadd.f32 0.0, %v1935
    %v1937 = vpop.f32.mrb[0].mxu0
    %v1938 = vadd.f32 0.0, %v1937
    %v1939 = vpop.f32.mrb[0].mxu0
    %v1940 = vpop.f32.mrb[0].mxu0
    %1941 = vdwg.mxu0
    %v1946 = vcombine.low %v1895, %v1897
    %v1947 = vcombine.low %v1936, %v1938
    %v1949 = vunpack.c.l.s4 1966171168
    %v1950 = vunpack.c.0.s8 %v1949
    %v1951 = vlaneseq
    %v1952 = vshrl.u32 %v1951, 7
    %v1953 = vsub.s32 %v1950, %v1952
    %v1954 = vrot.slane %v1946, %v1953
    %v1956 = vunpack.c.l.s4 1966171168
    %v1957 = vunpack.c.0.s8 %v1956
    %v1958 = vlaneseq
    %v1959 = vshrl.u32 %v1958, 7
    %v1960 = vsub.s32 %v1957, %v1959
    %v1961 = vrot.slane %v1947, %v1960
    %v1962 = vcombine.low %v1954, %v1961
    %v1964 = vunpack.c.l.s4 1966171168
    %v1965 = vunpack.c.0.s8 %v1964
    %v1966 = vlaneseq
    %v1967 = vshrl.u32 %v1966, 7
    %v1968 = vsub.s32 %v1965, %v1967
    %v1969 = vrot.slane %v1962, %v1968
    %v1971 = vadd.f32 %v1858, %v1969
    %v1972 = vxor.u32 %v1971, 2147483648
    %v1973 = vmul.f32 %v1972, 1.442695
    %v1974 = vpow.pop %v1973
    %v1975 = vadd.f32 %v1974, 1.0
    %v1976 = vrcp.pop %v1975
    %v1977 = vmul.f32 1.0, %v1976
    %v1979 = vrot.slane %v1971, 1
    %v1981 = vxor.u32 %v1979, 2147483648
    %v1982 = vmul.f32 %v1981, 1.442695
    %v1983 = vpow.pop %v1982
    %v1984 = vadd.f32 %v1983, 1.0
    %v1985 = vrcp.pop %v1984
    %v1986 = vmul.f32 1.0, %v1985
    %v1987 = vrot.slane %v1971, 2
    %v1989 = vtanh.pop %v1987
    %v1990 = vrot.slane %v1971, 3
    %v1992 = vxor.u32 %v1990, 2147483648
    %v1993 = vmul.f32 %v1992, 1.442695
    %v1994 = vpow.pop %v1993
    %v1995 = vadd.f32 %v1994, 1.0
    %v1996 = vrcp.pop %v1995
    %v1997 = vmul.f32 1.0, %v1996
    %v1998 = vmul.f32 %v1986, %v1853
    %v1999 = vmul.f32 %v1977, %v1989
    %v2000 = vadd.f32 %v1998, %v1999
    %v2001 = vtanh.pop %v2000
    %v2002 = vmul.f32 %v1997, %v2001
    %2003 = vst [vmem:[#allocation3 + $0x4] sm:$0x1] %v2002
    %s2004 = scalar_lea.vmem [#allocation2], 5
    %v2005 = vld [vmem:[%s2004] ss:$8 sm:$0xf]
    %v2006 = vpack.c.bf16 %v2002, %v2002
    %2007 = vmatprep.subr.bf16.mxu0 %v1209
    %2008 = vmatpush1.bf16.msra.mxu0 %v1208
    %2009 = vmatprep.subr.bf16.mxu0 %v1213
    %2010 = vmatpush1.bf16.msra.mxu0 %v1212
    %2011 = vmatprep.subr.bf16.mxu0 %v1217
    %2012 = vmatpush1.bf16.msra.mxu0 %v1216
    %2013 = vmatprep.subr.bf16.mxu0 %v1221
    %2014 = vmatpush1.bf16.msra.mxu0 %v1220
    %2015 = vmatprep.subr.bf16.mxu0 %v1225
    %2016 = vmatpush1.bf16.msra.mxu0 %v1224
    %2017 = vmatprep.subr.bf16.mxu0 %v1229
    %2018 = vmatpush1.bf16.msra.mxu0 %v1228
    %2019 = vmatprep.subr.bf16.mxu0 %v1233
    %2020 = vmatpush1.bf16.msra.mxu0 %v1232
    %2021 = vmatprep.subr.bf16.mxu0 %v1237
    %2022 = vmatpush1.bf16.msra.mxu0 %v1236
    %2023 = vmatprep.subr.bf16.mxu0 0
    %2024 = vmatpush1.bf16.msra.mxu0 0
    %2025 = vmatprep.subr.bf16.mxu0 0
    %2026 = vmatpush1.bf16.msra.mxu0 0
    %2027 = vmatprep.subr.bf16.mxu0 0
    %2028 = vmatpush1.bf16.msra.mxu0 0
    %2029 = vmatprep.subr.bf16.mxu0 0
    %2030 = vmatpush1.bf16.msra.mxu0 0
    %2031 = vmatprep.subr.bf16.mxu0 0
    %2032 = vmatpush1.bf16.msra.mxu0 0
    %2033 = vmatprep.subr.bf16.mxu0 0
    %2034 = vmatpush1.bf16.msra.mxu0 0
    %2035 = vmatprep.subr.bf16.mxu0 0
    %2036 = vmatpush1.bf16.msra.mxu0 0
    %2037 = vmatprep.subr.bf16.mxu0 0
    %2038 = vmatpush1.bf16.msra.mxu0 0
    %2039 = vmatprep.mubr.bf16.mxu0 0
    %2040 = vmatmul.mubr.bf16.gmra.mrb[0].mxu0 %v2006
    %v2041 = vpop.f32.mrb[0].mxu0
    %v2042 = vadd.f32 0.0, %v2041
    %v2043 = vpop.f32.mrb[0].mxu0
    %v2044 = vadd.f32 0.0, %v2043
    %v2045 = vpop.f32.mrb[0].mxu0
    %v2046 = vpop.f32.mrb[0].mxu0
    %2047 = vdwg.mxu0
    %2048 = vmatprep.subr.bf16.mxu0 %v1211
    %2049 = vmatpush1.bf16.msra.mxu0 %v1210
    %2050 = vmatprep.subr.bf16.mxu0 %v1215
    %2051 = vmatpush1.bf16.msra.mxu0 %v1214
    %2052 = vmatprep.subr.bf16.mxu0 %v1219
    %2053 = vmatpush1.bf16.msra.mxu0 %v1218
    %2054 = vmatprep.subr.bf16.mxu0 %v1223
    %2055 = vmatpush1.bf16.msra.mxu0 %v1222
    %2056 = vmatprep.subr.bf16.mxu0 %v1227
    %2057 = vmatpush1.bf16.msra.mxu0 %v1226
    %2058 = vmatprep.subr.bf16.mxu0 %v1231
    %2059 = vmatpush1.bf16.msra.mxu0 %v1230
    %2060 = vmatprep.subr.bf16.mxu0 %v1235
    %2061 = vmatpush1.bf16.msra.mxu0 %v1234
    %2062 = vmatprep.subr.bf16.mxu0 %v1239
    %2063 = vmatpush1.bf16.msra.mxu0 %v1238
    %2064 = vmatprep.subr.bf16.mxu0 0
    %2065 = vmatpush1.bf16.msra.mxu0 0
    %2066 = vmatprep.subr.bf16.mxu0 0
    %2067 = vmatpush1.bf16.msra.mxu0 0
    %2068 = vmatprep.subr.bf16.mxu0 0
    %2069 = vmatpush1.bf16.msra.mxu0 0
    %2070 = vmatprep.subr.bf16.mxu0 0
    %2071 = vmatpush1.bf16.msra.mxu0 0
    %2072 = vmatprep.subr.bf16.mxu0 0
    %2073 = vmatpush1.bf16.msra.mxu0 0
    %2074 = vmatprep.subr.bf16.mxu0 0
    %2075 = vmatpush1.bf16.msra.mxu0 0
    %2076 = vmatprep.subr.bf16.mxu0 0
    %2077 = vmatpush1.bf16.msra.mxu0 0
    %2078 = vmatprep.subr.bf16.mxu0 0
    %2079 = vmatpush1.bf16.msra.mxu0 0
    %2080 = vmatprep.mubr.bf16.mxu0 0
    %2081 = vmatmul.mubr.bf16.gmra.mrb[0].mxu0 %v2006
    %v2082 = vpop.f32.mrb[0].mxu0
    %v2083 = vadd.f32 0.0, %v2082
    %v2084 = vpop.f32.mrb[0].mxu0
    %v2085 = vadd.f32 0.0, %v2084
    %v2086 = vpop.f32.mrb[0].mxu0
    %v2087 = vpop.f32.mrb[0].mxu0
    %2088 = vdwg.mxu0
    %v2093 = vcombine.low %v2042, %v2044
    %v2094 = vcombine.low %v2083, %v2085
    %v2096 = vunpack.c.l.s4 1966171168
    %v2097 = vunpack.c.0.s8 %v2096
    %v2098 = vlaneseq
    %v2099 = vshrl.u32 %v2098, 7
    %v2100 = vsub.s32 %v2097, %v2099
    %v2101 = vrot.slane %v2093, %v2100
    %v2103 = vunpack.c.l.s4 1966171168
    %v2104 = vunpack.c.0.s8 %v2103
    %v2105 = vlaneseq
    %v2106 = vshrl.u32 %v2105, 7
    %v2107 = vsub.s32 %v2104, %v2106
    %v2108 = vrot.slane %v2094, %v2107
    %v2109 = vcombine.low %v2101, %v2108
    %v2111 = vunpack.c.l.s4 1966171168
    %v2112 = vunpack.c.0.s8 %v2111
    %v2113 = vlaneseq
    %v2114 = vshrl.u32 %v2113, 7
    %v2115 = vsub.s32 %v2112, %v2114
    %v2116 = vrot.slane %v2109, %v2115
    %v2118 = vadd.f32 %v2005, %v2116
    %v2119 = vxor.u32 %v2118, 2147483648
    %v2120 = vmul.f32 %v2119, 1.442695
    %v2121 = vpow.pop %v2120
    %v2122 = vadd.f32 %v2121, 1.0
    %v2123 = vrcp.pop %v2122
    %v2124 = vmul.f32 1.0, %v2123
    %v2126 = vrot.slane %v2118, 1
    %v2128 = vxor.u32 %v2126, 2147483648
    %v2129 = vmul.f32 %v2128, 1.442695
    %v2130 = vpow.pop %v2129
    %v2131 = vadd.f32 %v2130, 1.0
    %v2132 = vrcp.pop %v2131
    %v2133 = vmul.f32 1.0, %v2132
    %v2134 = vrot.slane %v2118, 2
    %v2136 = vtanh.pop %v2134
    %v2137 = vrot.slane %v2118, 3
    %v2139 = vxor.u32 %v2137, 2147483648
    %v2140 = vmul.f32 %v2139, 1.442695
    %v2141 = vpow.pop %v2140
    %v2142 = vadd.f32 %v2141, 1.0
    %v2143 = vrcp.pop %v2142
    %v2144 = vmul.f32 1.0, %v2143
    %v2145 = vmul.f32 %v2133, %v2000
    %v2146 = vmul.f32 %v2124, %v2136
    %v2147 = vadd.f32 %v2145, %v2146
    %v2148 = vtanh.pop %v2147
    %v2149 = vmul.f32 %v2144, %v2148
    %2150 = vst [vmem:[#allocation3 + $0x5] sm:$0x1] %v2149
    %s2151 = scalar_lea.vmem [#allocation2], 6
    %v2152 = vld [vmem:[%s2151] ss:$8 sm:$0xf]
    %v2153 = vpack.c.bf16 %v2149, %v2149
    %2154 = vmatprep.subr.bf16.mxu0 %v1209
    %2155 = vmatpush1.bf16.msra.mxu0 %v1208
    %2156 = vmatprep.subr.bf16.mxu0 %v1213
    %2157 = vmatpush1.bf16.msra.mxu0 %v1212
    %2158 = vmatprep.subr.bf16.mxu0 %v1217
    %2159 = vmatpush1.bf16.msra.mxu0 %v1216
    %2160 = vmatprep.subr.bf16.mxu0 %v1221
    %2161 = vmatpush1.bf16.msra.mxu0 %v1220
    %2162 = vmatprep.subr.bf16.mxu0 %v1225
    %2163 = vmatpush1.bf16.msra.mxu0 %v1224
    %2164 = vmatprep.subr.bf16.mxu0 %v1229
    %2165 = vmatpush1.bf16.msra.mxu0 %v1228
    %2166 = vmatprep.subr.bf16.mxu0 %v1233
    %2167 = vmatpush1.bf16.msra.mxu0 %v1232
    %2168 = vmatprep.subr.bf16.mxu0 %v1237
    %2169 = vmatpush1.bf16.msra.mxu0 %v1236
    %2170 = vmatprep.subr.bf16.mxu0 0
    %2171 = vmatpush1.bf16.msra.mxu0 0
    %2172 = vmatprep.subr.bf16.mxu0 0
    %2173 = vmatpush1.bf16.msra.mxu0 0
    %2174 = vmatprep.subr.bf16.mxu0 0
    %2175 = vmatpush1.bf16.msra.mxu0 0
    %2176 = vmatprep.subr.bf16.mxu0 0
    %2177 = vmatpush1.bf16.msra.mxu0 0
    %2178 = vmatprep.subr.bf16.mxu0 0
    %2179 = vmatpush1.bf16.msra.mxu0 0
    %2180 = vmatprep.subr.bf16.mxu0 0
    %2181 = vmatpush1.bf16.msra.mxu0 0
    %2182 = vmatprep.subr.bf16.mxu0 0
    %2183 = vmatpush1.bf16.msra.mxu0 0
    %2184 = vmatprep.subr.bf16.mxu0 0
    %2185 = vmatpush1.bf16.msra.mxu0 0
    %2186 = vmatprep.mubr.bf16.mxu0 0
    %2187 = vmatmul.mubr.bf16.gmra.mrb[0].mxu0 %v2153
    %v2188 = vpop.f32.mrb[0].mxu0
    %v2189 = vadd.f32 0.0, %v2188
    %v2190 = vpop.f32.mrb[0].mxu0
    %v2191 = vadd.f32 0.0, %v2190
    %v2192 = vpop.f32.mrb[0].mxu0
    %v2193 = vpop.f32.mrb[0].mxu0
    %2194 = vdwg.mxu0
    %2195 = vmatprep.subr.bf16.mxu0 %v1211
    %2196 = vmatpush1.bf16.msra.mxu0 %v1210
    %2197 = vmatprep.subr.bf16.mxu0 %v1215
    %2198 = vmatpush1.bf16.msra.mxu0 %v1214
    %2199 = vmatprep.subr.bf16.mxu0 %v1219
    %2200 = vmatpush1.bf16.msra.mxu0 %v1218
    %2201 = vmatprep.subr.bf16.mxu0 %v1223
    %2202 = vmatpush1.bf16.msra.mxu0 %v1222
    %2203 = vmatprep.subr.bf16.mxu0 %v1227
    %2204 = vmatpush1.bf16.msra.mxu0 %v1226
    %2205 = vmatprep.subr.bf16.mxu0 %v1231
    %2206 = vmatpush1.bf16.msra.mxu0 %v1230
    %2207 = vmatprep.subr.bf16.mxu0 %v1235
    %2208 = vmatpush1.bf16.msra.mxu0 %v1234
    %2209 = vmatprep.subr.bf16.mxu0 %v1239
    %2210 = vmatpush1.bf16.msra.mxu0 %v1238
    %2211 = vmatprep.subr.bf16.mxu0 0
    %2212 = vmatpush1.bf16.msra.mxu0 0
    %2213 = vmatprep.subr.bf16.mxu0 0
    %2214 = vmatpush1.bf16.msra.mxu0 0
    %2215 = vmatprep.subr.bf16.mxu0 0
    %2216 = vmatpush1.bf16.msra.mxu0 0
    %2217 = vmatprep.subr.bf16.mxu0 0
    %2218 = vmatpush1.bf16.msra.mxu0 0
    %2219 = vmatprep.subr.bf16.mxu0 0
    %2220 = vmatpush1.bf16.msra.mxu0 0
    %2221 = vmatprep.subr.bf16.mxu0 0
    %2222 = vmatpush1.bf16.msra.mxu0 0
    %2223 = vmatprep.subr.bf16.mxu0 0
    %2224 = vmatpush1.bf16.msra.mxu0 0
    %2225 = vmatprep.subr.bf16.mxu0 0
    %2226 = vmatpush1.bf16.msra.mxu0 0
    %2227 = vmatprep.mubr.bf16.mxu0 0
    %2228 = vmatmul.mubr.bf16.gmra.mrb[0].mxu0 %v2153
    %v2229 = vpop.f32.mrb[0].mxu0
    %v2230 = vadd.f32 0.0, %v2229
    %v2231 = vpop.f32.mrb[0].mxu0
    %v2232 = vadd.f32 0.0, %v2231
    %v2233 = vpop.f32.mrb[0].mxu0
    %v2234 = vpop.f32.mrb[0].mxu0
    %2235 = vdwg.mxu0
    %v2240 = vcombine.low %v2189, %v2191
    %v2241 = vcombine.low %v2230, %v2232
    %v2243 = vunpack.c.l.s4 1966171168
    %v2244 = vunpack.c.0.s8 %v2243
    %v2245 = vlaneseq
    %v2246 = vshrl.u32 %v2245, 7
    %v2247 = vsub.s32 %v2244, %v2246
    %v2248 = vrot.slane %v2240, %v2247
    %v2250 = vunpack.c.l.s4 1966171168
    %v2251 = vunpack.c.0.s8 %v2250
    %v2252 = vlaneseq
    %v2253 = vshrl.u32 %v2252, 7
    %v2254 = vsub.s32 %v2251, %v2253
    %v2255 = vrot.slane %v2241, %v2254
    %v2256 = vcombine.low %v2248, %v2255
    %v2258 = vunpack.c.l.s4 1966171168
    %v2259 = vunpack.c.0.s8 %v2258
    %v2260 = vlaneseq
    %v2261 = vshrl.u32 %v2260, 7
    %v2262 = vsub.s32 %v2259, %v2261
    %v2263 = vrot.slane %v2256, %v2262
    %v2265 = vadd.f32 %v2152, %v2263
    %v2266 = vxor.u32 %v2265, 2147483648
    %v2267 = vmul.f32 %v2266, 1.442695
    %v2268 = vpow.pop %v2267
    %v2269 = vadd.f32 %v2268, 1.0
    %v2270 = vrcp.pop %v2269
    %v2271 = vmul.f32 1.0, %v2270
    %v2273 = vrot.slane %v2265, 1
    %v2275 = vxor.u32 %v2273, 2147483648
    %v2276 = vmul.f32 %v2275, 1.442695
    %v2277 = vpow.pop %v2276
    %v2278 = vadd.f32 %v2277, 1.0
    %v2279 = vrcp.pop %v2278
    %v2280 = vmul.f32 1.0, %v2279
    %v2281 = vrot.slane %v2265, 2
    %v2283 = vtanh.pop %v2281
    %v2284 = vrot.slane %v2265, 3
    %v2286 = vxor.u32 %v2284, 2147483648
    %v2287 = vmul.f32 %v2286, 1.442695
    %v2288 = vpow.pop %v2287
    %v2289 = vadd.f32 %v2288, 1.0
    %v2290 = vrcp.pop %v2289
    %v2291 = vmul.f32 1.0, %v2290
    %v2292 = vmul.f32 %v2280, %v2147
    %v2293 = vmul.f32 %v2271, %v2283
    %v2294 = vadd.f32 %v2292, %v2293
    %v2295 = vtanh.pop %v2294
    %v2296 = vmul.f32 %v2291, %v2295
    %2297 = vst [vmem:[#allocation3 + $0x6] sm:$0x1] %v2296
    %s2298 = scalar_lea.vmem [#allocation2], 7
    %v2299 = vld [vmem:[%s2298] ss:$8 sm:$0xf]
    %v2300 = vpack.c.bf16 %v2296, %v2296
    %2301 = vmatprep.subr.bf16.mxu0 %v1209
    %2302 = vmatpush1.bf16.msra.mxu0 %v1208
    %2303 = vmatprep.subr.bf16.mxu0 %v1213
    %2304 = vmatpush1.bf16.msra.mxu0 %v1212
    %2305 = vmatprep.subr.bf16.mxu0 %v1217
    %2306 = vmatpush1.bf16.msra.mxu0 %v1216
    %2307 = vmatprep.subr.bf16.mxu0 %v1221
    %2308 = vmatpush1.bf16.msra.mxu0 %v1220
    %2309 = vmatprep.subr.bf16.mxu0 %v1225
    %2310 = vmatpush1.bf16.msra.mxu0 %v1224
    %2311 = vmatprep.subr.bf16.mxu0 %v1229
    %2312 = vmatpush1.bf16.msra.mxu0 %v1228
    %2313 = vmatprep.subr.bf16.mxu0 %v1233
    %2314 = vmatpush1.bf16.msra.mxu0 %v1232
    %2315 = vmatprep.subr.bf16.mxu0 %v1237
    %2316 = vmatpush1.bf16.msra.mxu0 %v1236
    %2317 = vmatprep.subr.bf16.mxu0 0
    %2318 = vmatpush1.bf16.msra.mxu0 0
    %2319 = vmatprep.subr.bf16.mxu0 0
    %2320 = vmatpush1.bf16.msra.mxu0 0
    %2321 = vmatprep.subr.bf16.mxu0 0
    %2322 = vmatpush1.bf16.msra.mxu0 0
    %2323 = vmatprep.subr.bf16.mxu0 0
    %2324 = vmatpush1.bf16.msra.mxu0 0
    %2325 = vmatprep.subr.bf16.mxu0 0
    %2326 = vmatpush1.bf16.msra.mxu0 0
    %2327 = vmatprep.subr.bf16.mxu0 0
    %2328 = vmatpush1.bf16.msra.mxu0 0
    %2329 = vmatprep.subr.bf16.mxu0 0
    %2330 = vmatpush1.bf16.msra.mxu0 0
    %2331 = vmatprep.subr.bf16.mxu0 0
    %2332 = vmatpush1.bf16.msra.mxu0 0
    %2333 = vmatprep.mubr.bf16.mxu0 0
    %2334 = vmatmul.mubr.bf16.gmra.mrb[0].mxu0 %v2300
    %v2335 = vpop.f32.mrb[0].mxu0
    %v2336 = vadd.f32 0.0, %v2335
    %v2337 = vpop.f32.mrb[0].mxu0
    %v2338 = vadd.f32 0.0, %v2337
    %v2339 = vpop.f32.mrb[0].mxu0
    %v2340 = vpop.f32.mrb[0].mxu0
    %2341 = vdwg.mxu0
    %2342 = vmatprep.subr.bf16.mxu0 %v1211
    %2343 = vmatpush1.bf16.msra.mxu0 %v1210
    %2344 = vmatprep.subr.bf16.mxu0 %v1215
    %2345 = vmatpush1.bf16.msra.mxu0 %v1214
    %2346 = vmatprep.subr.bf16.mxu0 %v1219
    %2347 = vmatpush1.bf16.msra.mxu0 %v1218
    %2348 = vmatprep.subr.bf16.mxu0 %v1223
    %2349 = vmatpush1.bf16.msra.mxu0 %v1222
    %2350 = vmatprep.subr.bf16.mxu0 %v1227
    %2351 = vmatpush1.bf16.msra.mxu0 %v1226
    %2352 = vmatprep.subr.bf16.mxu0 %v1231
    %2353 = vmatpush1.bf16.msra.mxu0 %v1230
    %2354 = vmatprep.subr.bf16.mxu0 %v1235
    %2355 = vmatpush1.bf16.msra.mxu0 %v1234
    %2356 = vmatprep.subr.bf16.mxu0 %v1239
    %2357 = vmatpush1.bf16.msra.mxu0 %v1238
    %2358 = vmatprep.subr.bf16.mxu0 0
    %2359 = vmatpush1.bf16.msra.mxu0 0
    %2360 = vmatprep.subr.bf16.mxu0 0
    %2361 = vmatpush1.bf16.msra.mxu0 0
    %2362 = vmatprep.subr.bf16.mxu0 0
    %2363 = vmatpush1.bf16.msra.mxu0 0
    %2364 = vmatprep.subr.bf16.mxu0 0
    %2365 = vmatpush1.bf16.msra.mxu0 0
    %2366 = vmatprep.subr.bf16.mxu0 0
    %2367 = vmatpush1.bf16.msra.mxu0 0
    %2368 = vmatprep.subr.bf16.mxu0 0
    %2369 = vmatpush1.bf16.msra.mxu0 0
    %2370 = vmatprep.subr.bf16.mxu0 0
    %2371 = vmatpush1.bf16.msra.mxu0 0
    %2372 = vmatprep.subr.bf16.mxu0 0
    %2373 = vmatpush1.bf16.msra.mxu0 0
    %2374 = vmatprep.mubr.bf16.mxu0 0
    %2375 = vmatmul.mubr.bf16.gmra.mrb[0].mxu0 %v2300
    %v2376 = vpop.f32.mrb[0].mxu0
    %v2377 = vadd.f32 0.0, %v2376
    %v2378 = vpop.f32.mrb[0].mxu0
    %v2379 = vadd.f32 0.0, %v2378
    %v2380 = vpop.f32.mrb[0].mxu0
    %v2381 = vpop.f32.mrb[0].mxu0
    %2382 = vdwg.mxu0
    %v2387 = vcombine.low %v2336, %v2338
    %v2388 = vcombine.low %v2377, %v2379
    %v2390 = vunpack.c.l.s4 1966171168
    %v2391 = vunpack.c.0.s8 %v2390
    %v2392 = vlaneseq
    %v2393 = vshrl.u32 %v2392, 7
    %v2394 = vsub.s32 %v2391, %v2393
    %v2395 = vrot.slane %v2387, %v2394
    %v2397 = vunpack.c.l.s4 1966171168
    %v2398 = vunpack.c.0.s8 %v2397
    %v2399 = vlaneseq
    %v2400 = vshrl.u32 %v2399, 7
    %v2401 = vsub.s32 %v2398, %v2400
    %v2402 = vrot.slane %v2388, %v2401
    %v2403 = vcombine.low %v2395, %v2402
    %v2405 = vunpack.c.l.s4 1966171168
    %v2406 = vunpack.c.0.s8 %v2405
    %v2407 = vlaneseq
    %v2408 = vshrl.u32 %v2407, 7
    %v2409 = vsub.s32 %v2406, %v2408
    %v2410 = vrot.slane %v2403, %v2409
    %v2412 = vadd.f32 %v2299, %v2410
    %v2413 = vxor.u32 %v2412, 2147483648
    %v2414 = vmul.f32 %v2413, 1.442695
    %v2415 = vpow.pop %v2414
    %v2416 = vadd.f32 %v2415, 1.0
    %v2417 = vrcp.pop %v2416
    %v2418 = vmul.f32 1.0, %v2417
    %v2420 = vrot.slane %v2412, 1
    %v2422 = vxor.u32 %v2420, 2147483648
    %v2423 = vmul.f32 %v2422, 1.442695
    %v2424 = vpow.pop %v2423
    %v2425 = vadd.f32 %v2424, 1.0
    %v2426 = vrcp.pop %v2425
    %v2427 = vmul.f32 1.0, %v2426
    %v2428 = vrot.slane %v2412, 2
    %v2430 = vtanh.pop %v2428
    %v2431 = vrot.slane %v2412, 3
    %v2433 = vxor.u32 %v2431, 2147483648
    %v2434 = vmul.f32 %v2433, 1.442695
    %v2435 = vpow.pop %v2434
    %v2436 = vadd.f32 %v2435, 1.0
    %v2437 = vrcp.pop %v2436
    %v2438 = vmul.f32 1.0, %v2437
    %v2439 = vmul.f32 %v2427, %v2294
    %v2440 = vmul.f32 %v2418, %v2430
    %v2441 = vadd.f32 %v2439, %v2440
    %v2442 = vtanh.pop %v2441
    %v2443 = vmul.f32 %v2438, %v2442
    %2444 = vst [vmem:[#allocation3 + $0x7] sm:$0x1] %v2443
    %v2445 = vld [vmem:[#allocation3] sm:$0xff]
    %v2446 = vpack.c.bf16 %v2445, %v2445
    %v2447 = vld [vmem:[#allocation10] sm:$0xff]
    %v2448 = vld [vmem:[#allocation10 + $0x8] sm:$0xff]
    %v2449 = vld [vmem:[#allocation10 + $0x10] sm:$0xff]
    %v2450 = vld [vmem:[#allocation10 + $0x18] sm:$0xff]
    %v2451 = vld [vmem:[#allocation10 + $0x20] sm:$0xff]
    %v2452 = vld [vmem:[#allocation10 + $0x28] sm:$0xff]
    %v2453 = vld [vmem:[#allocation10 + $0x30] sm:$0xff]
    %v2454 = vld [vmem:[#allocation10 + $0x38] sm:$0xff]
    %v2455 = vld [vmem:[#allocation10 + $0x40] sm:$0xff]
    %v2456 = vld [vmem:[#allocation10 + $0x48] sm:$0xff]
    %v2457 = vld [vmem:[#allocation10 + $0x50] sm:$0xff]
    %v2458 = vld [vmem:[#allocation10 + $0x58] sm:$0xff]
    %v2459 = vld [vmem:[#allocation10 + $0x60] sm:$0xff]
    %v2460 = vld [vmem:[#allocation10 + $0x68] sm:$0xff]
    %v2461 = vld [vmem:[#allocation10 + $0x70] sm:$0xff]
    %v2462 = vld [vmem:[#allocation10 + $0x78] sm:$0xff]
    %v2463 = vld [vmem:[#allocation10 + $0x80] sm:$0xff]
    %v2464 = vld [vmem:[#allocation10 + $0x88] sm:$0xff]
    %v2465 = vld [vmem:[#allocation10 + $0x90] sm:$0xff]
    %v2466 = vld [vmem:[#allocation10 + $0x98] sm:$0xff]
    %v2467 = vld [vmem:[#allocation10 + $0xa0] sm:$0xff]
    %v2468 = vld [vmem:[#allocation10 + $0xa8] sm:$0xff]
    %v2469 = vld [vmem:[#allocation10 + $0xb0] sm:$0xff]
    %v2470 = vld [vmem:[#allocation10 + $0xb8] sm:$0xff]
    %v2471 = vld [vmem:[#allocation10 + $0xc0] sm:$0xff]
    %v2472 = vld [vmem:[#allocation10 + $0xc8] sm:$0xff]
    %v2473 = vld [vmem:[#allocation10 + $0xd0] sm:$0xff]
    %v2474 = vld [vmem:[#allocation10 + $0xd8] sm:$0xff]
    %v2475 = vld [vmem:[#allocation10 + $0xe0] sm:$0xff]
    %v2476 = vld [vmem:[#allocation10 + $0xe8] sm:$0xff]
    %v2477 = vld [vmem:[#allocation10 + $0xf0] sm:$0xff]
    %v2478 = vld [vmem:[#allocation10 + $0xf8] sm:$0xff]
    %v2479 = vld [vmem:[%s6] sm:$0xf]
    %v2481 = vlaneseq
    %v2482 = vshrl.u32 %v2481, 7
    %v2483 = vsub.s32 0, %v2482
    %v2484 = vrot.slane %v2479, %v2483
    %v2485 = vlaneseq
    %v2486 = vshrl.u32 %v2485, 7
    %v2487 = vsub.s32 1, %v2486
    %v2488 = vrot.slane %v2479, %v2487
    %v2489 = vlaneseq
    %v2490 = vshrl.u32 %v2489, 7
    %v2491 = vsub.s32 2, %v2490
    %v2492 = vrot.slane %v2479, %v2491
    %v2493 = vlaneseq
    %v2494 = vshrl.u32 %v2493, 7
    %v2495 = vsub.s32 3, %v2494
    %v2496 = vrot.slane %v2479, %v2495
    %v2533 = vunpack.c.l.b16 %v2447
    %v2534 = vunpack.c.h.b16 %v2447
    %v2535 = vunpack.c.l.b16 %v2448
    %v2536 = vunpack.c.h.b16 %v2448
    %v2537 = vunpack.c.l.b16 %v2449
    %v2538 = vunpack.c.h.b16 %v2449
    %v2539 = vunpack.c.l.b16 %v2450
    %v2540 = vunpack.c.h.b16 %v2450
    %v2541 = vunpack.c.l.b16 %v2451
    %v2542 = vunpack.c.h.b16 %v2451
    %v2543 = vunpack.c.l.b16 %v2452
    %v2544 = vunpack.c.h.b16 %v2452
    %v2545 = vunpack.c.l.b16 %v2453
    %v2546 = vunpack.c.h.b16 %v2453
    %v2547 = vunpack.c.l.b16 %v2454
    %v2548 = vunpack.c.h.b16 %v2454
    %v2549 = vunpack.c.l.b16 %v2455
    %v2550 = vunpack.c.h.b16 %v2455
    %v2551 = vunpack.c.l.b16 %v2456
    %v2552 = vunpack.c.h.b16 %v2456
    %v2553 = vunpack.c.l.b16 %v2457
    %v2554 = vunpack.c.h.b16 %v2457
    %v2555 = vunpack.c.l.b16 %v2458
    %v2556 = vunpack.c.h.b16 %v2458
    %v2557 = vunpack.c.l.b16 %v2459
    %v2558 = vunpack.c.h.b16 %v2459
    %v2559 = vunpack.c.l.b16 %v2460
    %v2560 = vunpack.c.h.b16 %v2460
    %v2561 = vunpack.c.l.b16 %v2461
    %v2562 = vunpack.c.h.b16 %v2461
    %v2563 = vunpack.c.l.b16 %v2462
    %v2564 = vunpack.c.h.b16 %v2462
    %v2565 = vunpack.c.l.b16 %v2463
    %v2566 = vunpack.c.h.b16 %v2463
    %v2567 = vunpack.c.l.b16 %v2464
    %v2568 = vunpack.c.h.b16 %v2464
    %v2569 = vunpack.c.l.b16 %v2465
    %v2570 = vunpack.c.h.b16 %v2465
    %v2571 = vunpack.c.l.b16 %v2466
    %v2572 = vunpack.c.h.b16 %v2466
    %v2573 = vunpack.c.l.b16 %v2467
    %v2574 = vunpack.c.h.b16 %v2467
    %v2575 = vunpack.c.l.b16 %v2468
    %v2576 = vunpack.c.h.b16 %v2468
    %v2577 = vunpack.c.l.b16 %v2469
    %v2578 = vunpack.c.h.b16 %v2469
    %v2579 = vunpack.c.l.b16 %v2470
    %v2580 = vunpack.c.h.b16 %v2470
    %v2581 = vunpack.c.l.b16 %v2471
    %v2582 = vunpack.c.h.b16 %v2471
    %v2583 = vunpack.c.l.b16 %v2472
    %v2584 = vunpack.c.h.b16 %v2472
    %v2585 = vunpack.c.l.b16 %v2473
    %v2586 = vunpack.c.h.b16 %v2473
    %v2587 = vunpack.c.l.b16 %v2474
    %v2588 = vunpack.c.h.b16 %v2474
    %v2589 = vunpack.c.l.b16 %v2475
    %v2590 = vunpack.c.h.b16 %v2475
    %v2591 = vunpack.c.l.b16 %v2476
    %v2592 = vunpack.c.h.b16 %v2476
    %v2593 = vunpack.c.l.b16 %v2477
    %v2594 = vunpack.c.h.b16 %v2477
    %v2595 = vunpack.c.l.b16 %v2478
    %v2596 = vunpack.c.h.b16 %v2478
    %v2597 = vpack.c.b16 %v2537, %v2533
    %v2598 = vpack.c.b16 %v2538, %v2534
    %v2599 = vpack.c.b16 %v2539, %v2535
    %v2600 = vpack.c.b16 %v2540, %v2536
    %v2601 = vpack.c.b16 %v2545, %v2541
    %v2602 = vpack.c.b16 %v2546, %v2542
    %v2603 = vpack.c.b16 %v2547, %v2543
    %v2604 = vpack.c.b16 %v2548, %v2544
    %v2605 = vpack.c.b16 %v2553, %v2549
    %v2606 = vpack.c.b16 %v2554, %v2550
    %v2607 = vpack.c.b16 %v2555, %v2551
    %v2608 = vpack.c.b16 %v2556, %v2552
    %v2609 = vpack.c.b16 %v2561, %v2557
    %v2610 = vpack.c.b16 %v2562, %v2558
    %v2611 = vpack.c.b16 %v2563, %v2559
    %v2612 = vpack.c.b16 %v2564, %v2560
    %v2613 = vpack.c.b16 %v2569, %v2565
    %v2614 = vpack.c.b16 %v2570, %v2566
    %v2615 = vpack.c.b16 %v2571, %v2567
    %v2616 = vpack.c.b16 %v2572, %v2568
    %v2617 = vpack.c.b16 %v2577, %v2573
    %v2618 = vpack.c.b16 %v2578, %v2574
    %v2619 = vpack.c.b16 %v2579, %v2575
    %v2620 = vpack.c.b16 %v2580, %v2576
    %v2621 = vpack.c.b16 %v2585, %v2581
    %v2622 = vpack.c.b16 %v2586, %v2582
    %v2623 = vpack.c.b16 %v2587, %v2583
    %v2624 = vpack.c.b16 %v2588, %v2584
    %v2625 = vpack.c.b16 %v2593, %v2589
    %v2626 = vpack.c.b16 %v2594, %v2590
    %v2627 = vpack.c.b16 %v2595, %v2591
    %v2628 = vpack.c.b16 %v2596, %v2592
    %2661 = vmatprep.subr.bf16.mxu0 %v2598
    %2662 = vmatpush1.bf16.msra.mxu0 %v2597
    %2663 = vmatprep.subr.bf16.mxu0 %v2602
    %2664 = vmatpush1.bf16.msra.mxu0 %v2601
    %2665 = vmatprep.subr.bf16.mxu0 %v2606
    %2666 = vmatpush1.bf16.msra.mxu0 %v2605
    %2667 = vmatprep.subr.bf16.mxu0 %v2610
    %2668 = vmatpush1.bf16.msra.mxu0 %v2609
    %2669 = vmatprep.subr.bf16.mxu0 %v2614
    %2670 = vmatpush1.bf16.msra.mxu0 %v2613
    %2671 = vmatprep.subr.bf16.mxu0 %v2618
    %2672 = vmatpush1.bf16.msra.mxu0 %v2617
    %2673 = vmatprep.subr.bf16.mxu0 %v2622
    %2674 = vmatpush1.bf16.msra.mxu0 %v2621
    %2675 = vmatprep.subr.bf16.mxu0 %v2626
    %2676 = vmatpush1.bf16.msra.mxu0 %v2625
    %2677 = vmatprep.subr.bf16.mxu0 0
    %2678 = vmatpush1.bf16.msra.mxu0 0
    %2679 = vmatprep.subr.bf16.mxu0 0
    %2680 = vmatpush1.bf16.msra.mxu0 0
    %2681 = vmatprep.subr.bf16.mxu0 0
    %2682 = vmatpush1.bf16.msra.mxu0 0
    %2683 = vmatprep.subr.bf16.mxu0 0
    %2684 = vmatpush1.bf16.msra.mxu0 0
    %2685 = vmatprep.subr.bf16.mxu0 0
    %2686 = vmatpush1.bf16.msra.mxu0 0
    %2687 = vmatprep.subr.bf16.mxu0 0
    %2688 = vmatpush1.bf16.msra.mxu0 0
    %2689 = vmatprep.subr.bf16.mxu0 0
    %2690 = vmatpush1.bf16.msra.mxu0 0
    %2691 = vmatprep.subr.bf16.mxu0 0
    %2692 = vmatpush1.bf16.msra.mxu0 0
    %2693 = vmatprep.mubr.bf16.mxu0 0
    %2694 = vmatmul.mubr.bf16.gmra.mrb[0].mxu0 %v2446
    %v2695 = vpop.f32.mrb[0].mxu0
    %v2696 = vadd.f32 %v2484, %v2695
    %v2697 = vpop.f32.mrb[0].mxu0
    %v2698 = vadd.f32 %v2488, %v2697
    %v2699 = vpop.f32.mrb[0].mxu0
    %v2700 = vpop.f32.mrb[0].mxu0
    %2701 = vdwg.mxu0
    %2702 = vmatprep.subr.bf16.mxu0 %v2600
    %2703 = vmatpush1.bf16.msra.mxu0 %v2599
    %2704 = vmatprep.subr.bf16.mxu0 %v2604
    %2705 = vmatpush1.bf16.msra.mxu0 %v2603
    %2706 = vmatprep.subr.bf16.mxu0 %v2608
    %2707 = vmatpush1.bf16.msra.mxu0 %v2607
    %2708 = vmatprep.subr.bf16.mxu0 %v2612
    %2709 = vmatpush1.bf16.msra.mxu0 %v2611
    %2710 = vmatprep.subr.bf16.mxu0 %v2616
    %2711 = vmatpush1.bf16.msra.mxu0 %v2615
    %2712 = vmatprep.subr.bf16.mxu0 %v2620
    %2713 = vmatpush1.bf16.msra.mxu0 %v2619
    %2714 = vmatprep.subr.bf16.mxu0 %v2624
    %2715 = vmatpush1.bf16.msra.mxu0 %v2623
    %2716 = vmatprep.subr.bf16.mxu0 %v2628
    %2717 = vmatpush1.bf16.msra.mxu0 %v2627
    %2718 = vmatprep.subr.bf16.mxu0 0
    %2719 = vmatpush1.bf16.msra.mxu0 0
    %2720 = vmatprep.subr.bf16.mxu0 0
    %2721 = vmatpush1.bf16.msra.mxu0 0
    %2722 = vmatprep.subr.bf16.mxu0 0
    %2723 = vmatpush1.bf16.msra.mxu0 0
    %2724 = vmatprep.subr.bf16.mxu0 0
    %2725 = vmatpush1.bf16.msra.mxu0 0
    %2726 = vmatprep.subr.bf16.mxu0 0
    %2727 = vmatpush1.bf16.msra.mxu0 0
    %2728 = vmatprep.subr.bf16.mxu0 0
    %2729 = vmatpush1.bf16.msra.mxu0 0
    %2730 = vmatprep.subr.bf16.mxu0 0
    %2731 = vmatpush1.bf16.msra.mxu0 0
    %2732 = vmatprep.subr.bf16.mxu0 0
    %2733 = vmatpush1.bf16.msra.mxu0 0
    %2734 = vmatprep.mubr.bf16.mxu0 0
    %2735 = vmatmul.mubr.bf16.gmra.mrb[0].mxu0 %v2446
    %v2736 = vpop.f32.mrb[0].mxu0
    %v2737 = vadd.f32 %v2492, %v2736
    %v2738 = vpop.f32.mrb[0].mxu0
    %v2739 = vadd.f32 %v2496, %v2738
    %v2740 = vpop.f32.mrb[0].mxu0
    %v2741 = vpop.f32.mrb[0].mxu0
    %2742 = vdwg.mxu0
    %2743 = vst [vmem:[#allocation2] sm:$0xff] %v2696
    %2744 = vst [vmem:[#allocation2 + $0x8] sm:$0xff] %v2698
    %2745 = vst [vmem:[#allocation2 + $0x10] sm:$0xff] %v2737
    %2746 = vst [vmem:[#allocation2 + $0x18] sm:$0xff] %v2739
    %v2747 = vld [vmem:[#allocation12] sm:$0xff]
    %v2748 = vld [vmem:[#allocation12 + $0x8] sm:$0xff]
    %v2749 = vld [vmem:[#allocation12 + $0x10] sm:$0xff]
    %v2750 = vld [vmem:[#allocation12 + $0x18] sm:$0xff]
    %v2751 = vld [vmem:[#allocation12 + $0x20] sm:$0xff]
    %v2752 = vld [vmem:[#allocation12 + $0x28] sm:$0xff]
    %v2753 = vld [vmem:[#allocation12 + $0x30] sm:$0xff]
    %v2754 = vld [vmem:[#allocation12 + $0x38] sm:$0xff]
    %v2755 = vld [vmem:[#allocation12 + $0x40] sm:$0xff]
    %v2756 = vld [vmem:[#allocation12 + $0x48] sm:$0xff]
    %v2757 = vld [vmem:[#allocation12 + $0x50] sm:$0xff]
    %v2758 = vld [vmem:[#allocation12 + $0x58] sm:$0xff]
    %v2759 = vld [vmem:[#allocation12 + $0x60] sm:$0xff]
    %v2760 = vld [vmem:[#allocation12 + $0x68] sm:$0xff]
    %v2761 = vld [vmem:[#allocation12 + $0x70] sm:$0xff]
    %v2762 = vld [vmem:[#allocation12 + $0x78] sm:$0xff]
    %v2763 = vld [vmem:[#allocation12 + $0x80] sm:$0xff]
    %v2764 = vld [vmem:[#allocation12 + $0x88] sm:$0xff]
    %v2765 = vld [vmem:[#allocation12 + $0x90] sm:$0xff]
    %v2766 = vld [vmem:[#allocation12 + $0x98] sm:$0xff]
    %v2767 = vld [vmem:[#allocation12 + $0xa0] sm:$0xff]
    %v2768 = vld [vmem:[#allocation12 + $0xa8] sm:$0xff]
    %v2769 = vld [vmem:[#allocation12 + $0xb0] sm:$0xff]
    %v2770 = vld [vmem:[#allocation12 + $0xb8] sm:$0xff]
    %v2771 = vld [vmem:[#allocation12 + $0xc0] sm:$0xff]
    %v2772 = vld [vmem:[#allocation12 + $0xc8] sm:$0xff]
    %v2773 = vld [vmem:[#allocation12 + $0xd0] sm:$0xff]
    %v2774 = vld [vmem:[#allocation12 + $0xd8] sm:$0xff]
    %v2775 = vld [vmem:[#allocation12 + $0xe0] sm:$0xff]
    %v2776 = vld [vmem:[#allocation12 + $0xe8] sm:$0xff]
    %v2777 = vld [vmem:[#allocation12 + $0xf0] sm:$0xff]
    %v2778 = vld [vmem:[#allocation12 + $0xf8] sm:$0xff]
    %v2779 = vld [vmem:[#allocation2] ss:$8 sm:$0xf]
    %v2812 = vunpack.c.l.b16 %v2747
    %v2813 = vunpack.c.h.b16 %v2747
    %v2814 = vunpack.c.l.b16 %v2748
    %v2815 = vunpack.c.h.b16 %v2748
    %v2816 = vunpack.c.l.b16 %v2749
    %v2817 = vunpack.c.h.b16 %v2749
    %v2818 = vunpack.c.l.b16 %v2750
    %v2819 = vunpack.c.h.b16 %v2750
    %v2820 = vunpack.c.l.b16 %v2751
    %v2821 = vunpack.c.h.b16 %v2751
    %v2822 = vunpack.c.l.b16 %v2752
    %v2823 = vunpack.c.h.b16 %v2752
    %v2824 = vunpack.c.l.b16 %v2753
    %v2825 = vunpack.c.h.b16 %v2753
    %v2826 = vunpack.c.l.b16 %v2754
    %v2827 = vunpack.c.h.b16 %v2754
    %v2828 = vunpack.c.l.b16 %v2755
    %v2829 = vunpack.c.h.b16 %v2755
    %v2830 = vunpack.c.l.b16 %v2756
    %v2831 = vunpack.c.h.b16 %v2756
    %v2832 = vunpack.c.l.b16 %v2757
    %v2833 = vunpack.c.h.b16 %v2757
    %v2834 = vunpack.c.l.b16 %v2758
    %v2835 = vunpack.c.h.b16 %v2758
    %v2836 = vunpack.c.l.b16 %v2759
    %v2837 = vunpack.c.h.b16 %v2759
    %v2838 = vunpack.c.l.b16 %v2760
    %v2839 = vunpack.c.h.b16 %v2760
    %v2840 = vunpack.c.l.b16 %v2761
    %v2841 = vunpack.c.h.b16 %v2761
    %v2842 = vunpack.c.l.b16 %v2762
    %v2843 = vunpack.c.h.b16 %v2762
    %v2844 = vunpack.c.l.b16 %v2763
    %v2845 = vunpack.c.h.b16 %v2763
    %v2846 = vunpack.c.l.b16 %v2764
    %v2847 = vunpack.c.h.b16 %v2764
    %v2848 = vunpack.c.l.b16 %v2765
    %v2849 = vunpack.c.h.b16 %v2765
    %v2850 = vunpack.c.l.b16 %v2766
    %v2851 = vunpack.c.h.b16 %v2766
    %v2852 = vunpack.c.l.b16 %v2767
    %v2853 = vunpack.c.h.b16 %v2767
    %v2854 = vunpack.c.l.b16 %v2768
    %v2855 = vunpack.c.h.b16 %v2768
    %v2856 = vunpack.c.l.b16 %v2769
    %v2857 = vunpack.c.h.b16 %v2769
    %v2858 = vunpack.c.l.b16 %v2770
    %v2859 = vunpack.c.h.b16 %v2770
    %v2860 = vunpack.c.l.b16 %v2771
    %v2861 = vunpack.c.h.b16 %v2771
    %v2862 = vunpack.c.l.b16 %v2772
    %v2863 = vunpack.c.h.b16 %v2772
    %v2864 = vunpack.c.l.b16 %v2773
    %v2865 = vunpack.c.h.b16 %v2773
    %v2866 = vunpack.c.l.b16 %v2774
    %v2867 = vunpack.c.h.b16 %v2774
    %v2868 = vunpack.c.l.b16 %v2775
    %v2869 = vunpack.c.h.b16 %v2775
    %v2870 = vunpack.c.l.b16 %v2776
    %v2871 = vunpack.c.h.b16 %v2776
    %v2872 = vunpack.c.l.b16 %v2777
    %v2873 = vunpack.c.h.b16 %v2777
    %v2874 = vunpack.c.l.b16 %v2778
    %v2875 = vunpack.c.h.b16 %v2778
    %v2876 = vpack.c.b16 %v2816, %v2812
    %v2877 = vpack.c.b16 %v2817, %v2813
    %v2878 = vpack.c.b16 %v2818, %v2814
    %v2879 = vpack.c.b16 %v2819, %v2815
    %v2880 = vpack.c.b16 %v2824, %v2820
    %v2881 = vpack.c.b16 %v2825, %v2821
    %v2882 = vpack.c.b16 %v2826, %v2822
    %v2883 = vpack.c.b16 %v2827, %v2823
    %v2884 = vpack.c.b16 %v2832, %v2828
    %v2885 = vpack.c.b16 %v2833, %v2829
    %v2886 = vpack.c.b16 %v2834, %v2830
    %v2887 = vpack.c.b16 %v2835, %v2831
    %v2888 = vpack.c.b16 %v2840, %v2836
    %v2889 = vpack.c.b16 %v2841, %v2837
    %v2890 = vpack.c.b16 %v2842, %v2838
    %v2891 = vpack.c.b16 %v2843, %v2839
    %v2892 = vpack.c.b16 %v2848, %v2844
    %v2893 = vpack.c.b16 %v2849, %v2845
    %v2894 = vpack.c.b16 %v2850, %v2846
    %v2895 = vpack.c.b16 %v2851, %v2847
    %v2896 = vpack.c.b16 %v2856, %v2852
    %v2897 = vpack.c.b16 %v2857, %v2853
    %v2898 = vpack.c.b16 %v2858, %v2854
    %v2899 = vpack.c.b16 %v2859, %v2855
    %v2900 = vpack.c.b16 %v2864, %v2860
    %v2901 = vpack.c.b16 %v2865, %v2861
    %v2902 = vpack.c.b16 %v2866, %v2862
    %v2903 = vpack.c.b16 %v2867, %v2863
    %v2904 = vpack.c.b16 %v2872, %v2868
    %v2905 = vpack.c.b16 %v2873, %v2869
    %v2906 = vpack.c.b16 %v2874, %v2870
    %v2907 = vpack.c.b16 %v2875, %v2871
    %2940 = vmatprep.subr.bf16.mxu0 %v2877
    %2941 = vmatpush1.bf16.msra.mxu0 %v2876
    %2942 = vmatprep.subr.bf16.mxu0 %v2881
    %2943 = vmatpush1.bf16.msra.mxu0 %v2880
    %2944 = vmatprep.subr.bf16.mxu0 %v2885
    %2945 = vmatpush1.bf16.msra.mxu0 %v2884
    %2946 = vmatprep.subr.bf16.mxu0 %v2889
    %2947 = vmatpush1.bf16.msra.mxu0 %v2888
    %2948 = vmatprep.subr.bf16.mxu0 %v2893
    %2949 = vmatpush1.bf16.msra.mxu0 %v2892
    %2950 = vmatprep.subr.bf16.mxu0 %v2897
    %2951 = vmatpush1.bf16.msra.mxu0 %v2896
    %2952 = vmatprep.subr.bf16.mxu0 %v2901
    %2953 = vmatpush1.bf16.msra.mxu0 %v2900
    %2954 = vmatprep.subr.bf16.mxu0 %v2905
    %2955 = vmatpush1.bf16.msra.mxu0 %v2904
    %2956 = vmatprep.subr.bf16.mxu0 0
    %2957 = vmatpush1.bf16.msra.mxu0 0
    %2958 = vmatprep.subr.bf16.mxu0 0
    %2959 = vmatpush1.bf16.msra.mxu0 0
    %2960 = vmatprep.subr.bf16.mxu0 0
    %2961 = vmatpush1.bf16.msra.mxu0 0
    %2962 = vmatprep.subr.bf16.mxu0 0
    %2963 = vmatpush1.bf16.msra.mxu0 0
    %2964 = vmatprep.subr.bf16.mxu0 0
    %2965 = vmatpush1.bf16.msra.mxu0 0
    %2966 = vmatprep.subr.bf16.mxu0 0
    %2967 = vmatpush1.bf16.msra.mxu0 0
    %2968 = vmatprep.subr.bf16.mxu0 0
    %2969 = vmatpush1.bf16.msra.mxu0 0
    %2970 = vmatprep.subr.bf16.mxu0 0
    %2971 = vmatpush1.bf16.msra.mxu0 0
    %2972 = vmatprep.mubr.bf16.mxu0 0
    %2973 = vmatmul.mubr.bf16.gmra.mrb[0].mxu0 0
    %v2974 = vpop.f32.mrb[0].mxu0
    %v2975 = vadd.f32 0.0, %v2974
    %v2976 = vpop.f32.mrb[0].mxu0
    %v2977 = vadd.f32 0.0, %v2976
    %v2978 = vpop.f32.mrb[0].mxu0
    %v2979 = vpop.f32.mrb[0].mxu0
    %2980 = vdwg.mxu0
    %2981 = vmatprep.subr.bf16.mxu0 %v2879
    %2982 = vmatpush1.bf16.msra.mxu0 %v2878
    %2983 = vmatprep.subr.bf16.mxu0 %v2883
    %2984 = vmatpush1.bf16.msra.mxu0 %v2882
    %2985 = vmatprep.subr.bf16.mxu0 %v2887
    %2986 = vmatpush1.bf16.msra.mxu0 %v2886
    %2987 = vmatprep.subr.bf16.mxu0 %v2891
    %2988 = vmatpush1.bf16.msra.mxu0 %v2890
    %2989 = vmatprep.subr.bf16.mxu0 %v2895
    %2990 = vmatpush1.bf16.msra.mxu0 %v2894
    %2991 = vmatprep.subr.bf16.mxu0 %v2899
    %2992 = vmatpush1.bf16.msra.mxu0 %v2898
    %2993 = vmatprep.subr.bf16.mxu0 %v2903
    %2994 = vmatpush1.bf16.msra.mxu0 %v2902
    %2995 = vmatprep.subr.bf16.mxu0 %v2907
    %2996 = vmatpush1.bf16.msra.mxu0 %v2906
    %2997 = vmatprep.subr.bf16.mxu0 0
    %2998 = vmatpush1.bf16.msra.mxu0 0
    %2999 = vmatprep.subr.bf16.mxu0 0
    %3000 = vmatpush1.bf16.msra.mxu0 0
    %3001 = vmatprep.subr.bf16.mxu0 0
    %3002 = vmatpush1.bf16.msra.mxu0 0
    %3003 = vmatprep.subr.bf16.mxu0 0
    %3004 = vmatpush1.bf16.msra.mxu0 0
    %3005 = vmatprep.subr.bf16.mxu0 0
    %3006 = vmatpush1.bf16.msra.mxu0 0
    %3007 = vmatprep.subr.bf16.mxu0 0
    %3008 = vmatpush1.bf16.msra.mxu0 0
    %3009 = vmatprep.subr.bf16.mxu0 0
    %3010 = vmatpush1.bf16.msra.mxu0 0
    %3011 = vmatprep.subr.bf16.mxu0 0
    %3012 = vmatpush1.bf16.msra.mxu0 0
    %3013 = vmatprep.mubr.bf16.mxu0 0
    %3014 = vmatmul.mubr.bf16.gmra.mrb[0].mxu0 0
    %v3015 = vpop.f32.mrb[0].mxu0
    %v3016 = vadd.f32 0.0, %v3015
    %v3017 = vpop.f32.mrb[0].mxu0
    %v3018 = vadd.f32 0.0, %v3017
    %v3019 = vpop.f32.mrb[0].mxu0
    %v3020 = vpop.f32.mrb[0].mxu0
    %3021 = vdwg.mxu0
    %v3026 = vcombine.low %v2975, %v2977
    %v3027 = vcombine.low %v3016, %v3018
    %v3029 = vunpack.c.l.s4 1966171168
    %v3030 = vunpack.c.0.s8 %v3029
    %v3031 = vlaneseq
    %v3032 = vshrl.u32 %v3031, 7
    %v3033 = vsub.s32 %v3030, %v3032
    %v3034 = vrot.slane %v3026, %v3033
    %v3036 = vunpack.c.l.s4 1966171168
    %v3037 = vunpack.c.0.s8 %v3036
    %v3038 = vlaneseq
    %v3039 = vshrl.u32 %v3038, 7
    %v3040 = vsub.s32 %v3037, %v3039
    %v3041 = vrot.slane %v3027, %v3040
    %v3042 = vcombine.low %v3034, %v3041
    %v3044 = vunpack.c.l.s4 1966171168
    %v3045 = vunpack.c.0.s8 %v3044
    %v3046 = vlaneseq
    %v3047 = vshrl.u32 %v3046, 7
    %v3048 = vsub.s32 %v3045, %v3047
    %v3049 = vrot.slane %v3042, %v3048
    %v3051 = vadd.f32 %v2779, %v3049
    %v3052 = vxor.u32 %v3051, 2147483648
    %v3053 = vmul.f32 %v3052, 1.442695
    %v3054 = vpow.pop %v3053
    %v3055 = vadd.f32 %v3054, 1.0
    %v3056 = vrcp.pop %v3055
    %v3057 = vmul.f32 1.0, %v3056
    %v3059 = vrot.slane %v3051, 1
    %v3061 = vxor.u32 %v3059, 2147483648
    %v3062 = vmul.f32 %v3061, 1.442695
    %v3063 = vpow.pop %v3062
    %v3064 = vadd.f32 %v3063, 1.0
    %v3065 = vrcp.pop %v3064
    %v3066 = vmul.f32 1.0, %v3065
    %v3067 = vrot.slane %v3051, 2
    %v3069 = vtanh.pop %v3067
    %v3070 = vrot.slane %v3051, 3
    %v3072 = vxor.u32 %v3070, 2147483648
    %v3073 = vmul.f32 %v3072, 1.442695
    %v3074 = vpow.pop %v3073
    %v3075 = vadd.f32 %v3074, 1.0
    %v3076 = vrcp.pop %v3075
    %v3077 = vmul.f32 1.0, %v3076
    %v3078 = vmul.f32 %v3066, 0.0
    %v3079 = vmul.f32 %v3057, %v3069
    %v3080 = vadd.f32 %v3078, %v3079
    %v3081 = vtanh.pop %v3080
    %v3082 = vmul.f32 %v3077, %v3081
    %3083 = vst [vmem:[#allocation4] sm:$0x1] %v3082
    %v3084 = vld [vmem:[%s1416] ss:$8 sm:$0xf]
    %v3085 = vpack.c.bf16 %v3082, %v3082
    %3086 = vmatprep.subr.bf16.mxu0 %v2877
    %3087 = vmatpush1.bf16.msra.mxu0 %v2876
    %3088 = vmatprep.subr.bf16.mxu0 %v2881
    %3089 = vmatpush1.bf16.msra.mxu0 %v2880
    %3090 = vmatprep.subr.bf16.mxu0 %v2885
    %3091 = vmatpush1.bf16.msra.mxu0 %v2884
    %3092 = vmatprep.subr.bf16.mxu0 %v2889
    %3093 = vmatpush1.bf16.msra.mxu0 %v2888
    %3094 = vmatprep.subr.bf16.mxu0 %v2893
    %3095 = vmatpush1.bf16.msra.mxu0 %v2892
    %3096 = vmatprep.subr.bf16.mxu0 %v2897
    %3097 = vmatpush1.bf16.msra.mxu0 %v2896
    %3098 = vmatprep.subr.bf16.mxu0 %v2901
    %3099 = vmatpush1.bf16.msra.mxu0 %v2900
    %3100 = vmatprep.subr.bf16.mxu0 %v2905
    %3101 = vmatpush1.bf16.msra.mxu0 %v2904
    %3102 = vmatprep.subr.bf16.mxu0 0
    %3103 = vmatpush1.bf16.msra.mxu0 0
    %3104 = vmatprep.subr.bf16.mxu0 0
    %3105 = vmatpush1.bf16.msra.mxu0 0
    %3106 = vmatprep.subr.bf16.mxu0 0
    %3107 = vmatpush1.bf16.msra.mxu0 0
    %3108 = vmatprep.subr.bf16.mxu0 0
    %3109 = vmatpush1.bf16.msra.mxu0 0
    %3110 = vmatprep.subr.bf16.mxu0 0
    %3111 = vmatpush1.bf16.msra.mxu0 0
    %3112 = vmatprep.subr.bf16.mxu0 0
    %3113 = vmatpush1.bf16.msra.mxu0 0
    %3114 = vmatprep.subr.bf16.mxu0 0
    %3115 = vmatpush1.bf16.msra.mxu0 0
    %3116 = vmatprep.subr.bf16.mxu0 0
    %3117 = vmatpush1.bf16.msra.mxu0 0
    %3118 = vmatprep.mubr.bf16.mxu0 0
    %3119 = vmatmul.mubr.bf16.gmra.mrb[0].mxu0 %v3085
    %v3120 = vpop.f32.mrb[0].mxu0
    %v3121 = vadd.f32 0.0, %v3120
    %v3122 = vpop.f32.mrb[0].mxu0
    %v3123 = vadd.f32 0.0, %v3122
    %v3124 = vpop.f32.mrb[0].mxu0
    %v3125 = vpop.f32.mrb[0].mxu0
    %3126 = vdwg.mxu0
    %3127 = vmatprep.subr.bf16.mxu0 %v2879
    %3128 = vmatpush1.bf16.msra.mxu0 %v2878
    %3129 = vmatprep.subr.bf16.mxu0 %v2883
    %3130 = vmatpush1.bf16.msra.mxu0 %v2882
    %3131 = vmatprep.subr.bf16.mxu0 %v2887
    %3132 = vmatpush1.bf16.msra.mxu0 %v2886
    %3133 = vmatprep.subr.bf16.mxu0 %v2891
    %3134 = vmatpush1.bf16.msra.mxu0 %v2890
    %3135 = vmatprep.subr.bf16.mxu0 %v2895
    %3136 = vmatpush1.bf16.msra.mxu0 %v2894
    %3137 = vmatprep.subr.bf16.mxu0 %v2899
    %3138 = vmatpush1.bf16.msra.mxu0 %v2898
    %3139 = vmatprep.subr.bf16.mxu0 %v2903
    %3140 = vmatpush1.bf16.msra.mxu0 %v2902
    %3141 = vmatprep.subr.bf16.mxu0 %v2907
    %3142 = vmatpush1.bf16.msra.mxu0 %v2906
    %3143 = vmatprep.subr.bf16.mxu0 0
    %3144 = vmatpush1.bf16.msra.mxu0 0
    %3145 = vmatprep.subr.bf16.mxu0 0
    %3146 = vmatpush1.bf16.msra.mxu0 0
    %3147 = vmatprep.subr.bf16.mxu0 0
    %3148 = vmatpush1.bf16.msra.mxu0 0
    %3149 = vmatprep.subr.bf16.mxu0 0
    %3150 = vmatpush1.bf16.msra.mxu0 0
    %3151 = vmatprep.subr.bf16.mxu0 0
    %3152 = vmatpush1.bf16.msra.mxu0 0
    %3153 = vmatprep.subr.bf16.mxu0 0
    %3154 = vmatpush1.bf16.msra.mxu0 0
    %3155 = vmatprep.subr.bf16.mxu0 0
    %3156 = vmatpush1.bf16.msra.mxu0 0
    %3157 = vmatprep.subr.bf16.mxu0 0
    %3158 = vmatpush1.bf16.msra.mxu0 0
    %3159 = vmatprep.mubr.bf16.mxu0 0
    %3160 = vmatmul.mubr.bf16.gmra.mrb[0].mxu0 %v3085
    %v3161 = vpop.f32.mrb[0].mxu0
    %v3162 = vadd.f32 0.0, %v3161
    %v3163 = vpop.f32.mrb[0].mxu0
    %v3164 = vadd.f32 0.0, %v3163
    %v3165 = vpop.f32.mrb[0].mxu0
    %v3166 = vpop.f32.mrb[0].mxu0
    %3167 = vdwg.mxu0
    %v3172 = vcombine.low %v3121, %v3123
    %v3173 = vcombine.low %v3162, %v3164
    %v3175 = vunpack.c.l.s4 1966171168
    %v3176 = vunpack.c.0.s8 %v3175
    %v3177 = vlaneseq
    %v3178 = vshrl.u32 %v3177, 7
    %v3179 = vsub.s32 %v3176, %v3178
    %v3180 = vrot.slane %v3172, %v3179
    %v3182 = vunpack.c.l.s4 1966171168
    %v3183 = vunpack.c.0.s8 %v3182
    %v3184 = vlaneseq
    %v3185 = vshrl.u32 %v3184, 7
    %v3186 = vsub.s32 %v3183, %v3185
    %v3187 = vrot.slane %v3173, %v3186
    %v3188 = vcombine.low %v3180, %v3187
    %v3190 = vunpack.c.l.s4 1966171168
    %v3191 = vunpack.c.0.s8 %v3190
    %v3192 = vlaneseq
    %v3193 = vshrl.u32 %v3192, 7
    %v3194 = vsub.s32 %v3191, %v3193
    %v3195 = vrot.slane %v3188, %v3194
    %v3197 = vadd.f32 %v3084, %v3195
    %v3198 = vxor.u32 %v3197, 2147483648
    %v3199 = vmul.f32 %v3198, 1.442695
    %v3200 = vpow.pop %v3199
    %v3201 = vadd.f32 %v3200, 1.0
    %v3202 = vrcp.pop %v3201
    %v3203 = vmul.f32 1.0, %v3202
    %v3205 = vrot.slane %v3197, 1
    %v3207 = vxor.u32 %v3205, 2147483648
    %v3208 = vmul.f32 %v3207, 1.442695
    %v3209 = vpow.pop %v3208
    %v3210 = vadd.f32 %v3209, 1.0
    %v3211 = vrcp.pop %v3210
    %v3212 = vmul.f32 1.0, %v3211
    %v3213 = vrot.slane %v3197, 2
    %v3215 = vtanh.pop %v3213
    %v3216 = vrot.slane %v3197, 3
    %v3218 = vxor.u32 %v3216, 2147483648
    %v3219 = vmul.f32 %v3218, 1.442695
    %v3220 = vpow.pop %v3219
    %v3221 = vadd.f32 %v3220, 1.0
    %v3222 = vrcp.pop %v3221
    %v3223 = vmul.f32 1.0, %v3222
    %v3224 = vmul.f32 %v3212, %v3080
    %v3225 = vmul.f32 %v3203, %v3215
    %v3226 = vadd.f32 %v3224, %v3225
    %v3227 = vtanh.pop %v3226
    %v3228 = vmul.f32 %v3223, %v3227
    %3229 = vst [vmem:[#allocation4 + $0x1] sm:$0x1] %v3228
    %v3230 = vld [vmem:[%s1563] ss:$8 sm:$0xf]
    %v3231 = vpack.c.bf16 %v3228, %v3228
    %3232 = vmatprep.subr.bf16.mxu0 %v2877
    %3233 = vmatpush1.bf16.msra.mxu0 %v2876
    %3234 = vmatprep.subr.bf16.mxu0 %v2881
    %3235 = vmatpush1.bf16.msra.mxu0 %v2880
    %3236 = vmatprep.subr.bf16.mxu0 %v2885
    %3237 = vmatpush1.bf16.msra.mxu0 %v2884
    %3238 = vmatprep.subr.bf16.mxu0 %v2889
    %3239 = vmatpush1.bf16.msra.mxu0 %v2888
    %3240 = vmatprep.subr.bf16.mxu0 %v2893
    %3241 = vmatpush1.bf16.msra.mxu0 %v2892
    %3242 = vmatprep.subr.bf16.mxu0 %v2897
    %3243 = vmatpush1.bf16.msra.mxu0 %v2896
    %3244 = vmatprep.subr.bf16.mxu0 %v2901
    %3245 = vmatpush1.bf16.msra.mxu0 %v2900
    %3246 = vmatprep.subr.bf16.mxu0 %v2905
    %3247 = vmatpush1.bf16.msra.mxu0 %v2904
    %3248 = vmatprep.subr.bf16.mxu0 0
    %3249 = vmatpush1.bf16.msra.mxu0 0
    %3250 = vmatprep.subr.bf16.mxu0 0
    %3251 = vmatpush1.bf16.msra.mxu0 0
    %3252 = vmatprep.subr.bf16.mxu0 0
    %3253 = vmatpush1.bf16.msra.mxu0 0
    %3254 = vmatprep.subr.bf16.mxu0 0
    %3255 = vmatpush1.bf16.msra.mxu0 0
    %3256 = vmatprep.subr.bf16.mxu0 0
    %3257 = vmatpush1.bf16.msra.mxu0 0
    %3258 = vmatprep.subr.bf16.mxu0 0
    %3259 = vmatpush1.bf16.msra.mxu0 0
    %3260 = vmatprep.subr.bf16.mxu0 0
    %3261 = vmatpush1.bf16.msra.mxu0 0
    %3262 = vmatprep.subr.bf16.mxu0 0
    %3263 = vmatpush1.bf16.msra.mxu0 0
    %3264 = vmatprep.mubr.bf16.mxu0 0
    %3265 = vmatmul.mubr.bf16.gmra.mrb[0].mxu0 %v3231
    %v3266 = vpop.f32.mrb[0].mxu0
    %v3267 = vadd.f32 0.0, %v3266
    %v3268 = vpop.f32.mrb[0].mxu0
    %v3269 = vadd.f32 0.0, %v3268
    %v3270 = vpop.f32.mrb[0].mxu0
    %v3271 = vpop.f32.mrb[0].mxu0
    %3272 = vdwg.mxu0
    %3273 = vmatprep.subr.bf16.mxu0 %v2879
    %3274 = vmatpush1.bf16.msra.mxu0 %v2878
    %3275 = vmatprep.subr.bf16.mxu0 %v2883
    %3276 = vmatpush1.bf16.msra.mxu0 %v2882
    %3277 = vmatprep.subr.bf16.mxu0 %v2887
    %3278 = vmatpush1.bf16.msra.mxu0 %v2886
    %3279 = vmatprep.subr.bf16.mxu0 %v2891
    %3280 = vmatpush1.bf16.msra.mxu0 %v2890
    %3281 = vmatprep.subr.bf16.mxu0 %v2895
    %3282 = vmatpush1.bf16.msra.mxu0 %v2894
    %3283 = vmatprep.subr.bf16.mxu0 %v2899
    %3284 = vmatpush1.bf16.msra.mxu0 %v2898
    %3285 = vmatprep.subr.bf16.mxu0 %v2903
    %3286 = vmatpush1.bf16.msra.mxu0 %v2902
    %3287 = vmatprep.subr.bf16.mxu0 %v2907
    %3288 = vmatpush1.bf16.msra.mxu0 %v2906
    %3289 = vmatprep.subr.bf16.mxu0 0
    %3290 = vmatpush1.bf16.msra.mxu0 0
    %3291 = vmatprep.subr.bf16.mxu0 0
    %3292 = vmatpush1.bf16.msra.mxu0 0
    %3293 = vmatprep.subr.bf16.mxu0 0
    %3294 = vmatpush1.bf16.msra.mxu0 0
    %3295 = vmatprep.subr.bf16.mxu0 0
    %3296 = vmatpush1.bf16.msra.mxu0 0
    %3297 = vmatprep.subr.bf16.mxu0 0
    %3298 = vmatpush1.bf16.msra.mxu0 0
    %3299 = vmatprep.subr.bf16.mxu0 0
    %3300 = vmatpush1.bf16.msra.mxu0 0
    %3301 = vmatprep.subr.bf16.mxu0 0
    %3302 = vmatpush1.bf16.msra.mxu0 0
    %3303 = vmatprep.subr.bf16.mxu0 0
    %3304 = vmatpush1.bf16.msra.mxu0 0
    %3305 = vmatprep.mubr.bf16.mxu0 0
    %3306 = vmatmul.mubr.bf16.gmra.mrb[0].mxu0 %v3231
    %v3307 = vpop.f32.mrb[0].mxu0
    %v3308 = vadd.f32 0.0, %v3307
    %v3309 = vpop.f32.mrb[0].mxu0
    %v3310 = vadd.f32 0.0, %v3309
    %v3311 = vpop.f32.mrb[0].mxu0
    %v3312 = vpop.f32.mrb[0].mxu0
    %3313 = vdwg.mxu0
    %v3318 = vcombine.low %v3267, %v3269
    %v3319 = vcombine.low %v3308, %v3310
    %v3321 = vunpack.c.l.s4 1966171168
    %v3322 = vunpack.c.0.s8 %v3321
    %v3323 = vlaneseq
    %v3324 = vshrl.u32 %v3323, 7
    %v3325 = vsub.s32 %v3322, %v3324
    %v3326 = vrot.slane %v3318, %v3325
    %v3328 = vunpack.c.l.s4 1966171168
    %v3329 = vunpack.c.0.s8 %v3328
    %v3330 = vlaneseq
    %v3331 = vshrl.u32 %v3330, 7
    %v3332 = vsub.s32 %v3329, %v3331
    %v3333 = vrot.slane %v3319, %v3332
    %v3334 = vcombine.low %v3326, %v3333
    %v3336 = vunpack.c.l.s4 1966171168
    %v3337 = vunpack.c.0.s8 %v3336
    %v3338 = vlaneseq
    %v3339 = vshrl.u32 %v3338, 7
    %v3340 = vsub.s32 %v3337, %v3339
    %v3341 = vrot.slane %v3334, %v3340
    %v3343 = vadd.f32 %v3230, %v3341
    %v3344 = vxor.u32 %v3343, 2147483648
    %v3345 = vmul.f32 %v3344, 1.442695
    %v3346 = vpow.pop %v3345
    %v3347 = vadd.f32 %v3346, 1.0
    %v3348 = vrcp.pop %v3347
    %v3349 = vmul.f32 1.0, %v3348
    %v3351 = vrot.slane %v3343, 1
    %v3353 = vxor.u32 %v3351, 2147483648
    %v3354 = vmul.f32 %v3353, 1.442695
    %v3355 = vpow.pop %v3354
    %v3356 = vadd.f32 %v3355, 1.0
    %v3357 = vrcp.pop %v3356
    %v3358 = vmul.f32 1.0, %v3357
    %v3359 = vrot.slane %v3343, 2
    %v3361 = vtanh.pop %v3359
    %v3362 = vrot.slane %v3343, 3
    %v3364 = vxor.u32 %v3362, 2147483648
    %v3365 = vmul.f32 %v3364, 1.442695
    %v3366 = vpow.pop %v3365
    %v3367 = vadd.f32 %v3366, 1.0
    %v3368 = vrcp.pop %v3367
    %v3369 = vmul.f32 1.0, %v3368
    %v3370 = vmul.f32 %v3358, %v3226
    %v3371 = vmul.f32 %v3349, %v3361
    %v3372 = vadd.f32 %v3370, %v3371
    %v3373 = vtanh.pop %v3372
    %v3374 = vmul.f32 %v3369, %v3373
    %3375 = vst [vmem:[#allocation4 + $0x2] sm:$0x1] %v3374
    %v3376 = vld [vmem:[%s1710] ss:$8 sm:$0xf]
    %v3377 = vpack.c.bf16 %v3374, %v3374
    %3378 = vmatprep.subr.bf16.mxu0 %v2877
    %3379 = vmatpush1.bf16.msra.mxu0 %v2876
    %3380 = vmatprep.subr.bf16.mxu0 %v2881
    %3381 = vmatpush1.bf16.msra.mxu0 %v2880
    %3382 = vmatprep.subr.bf16.mxu0 %v2885
    %3383 = vmatpush1.bf16.msra.mxu0 %v2884
    %3384 = vmatprep.subr.bf16.mxu0 %v2889
    %3385 = vmatpush1.bf16.msra.mxu0 %v2888
    %3386 = vmatprep.subr.bf16.mxu0 %v2893
    %3387 = vmatpush1.bf16.msra.mxu0 %v2892
    %3388 = vmatprep.subr.bf16.mxu0 %v2897
    %3389 = vmatpush1.bf16.msra.mxu0 %v2896
    %3390 = vmatprep.subr.bf16.mxu0 %v2901
    %3391 = vmatpush1.bf16.msra.mxu0 %v2900
    %3392 = vmatprep.subr.bf16.mxu0 %v2905
    %3393 = vmatpush1.bf16.msra.mxu0 %v2904
    %3394 = vmatprep.subr.bf16.mxu0 0
    %3395 = vmatpush1.bf16.msra.mxu0 0
    %3396 = vmatprep.subr.bf16.mxu0 0
    %3397 = vmatpush1.bf16.msra.mxu0 0
    %3398 = vmatprep.subr.bf16.mxu0 0
    %3399 = vmatpush1.bf16.msra.mxu0 0
    %3400 = vmatprep.subr.bf16.mxu0 0
    %3401 = vmatpush1.bf16.msra.mxu0 0
    %3402 = vmatprep.subr.bf16.mxu0 0
    %3403 = vmatpush1.bf16.msra.mxu0 0
    %3404 = vmatprep.subr.bf16.mxu0 0
    %3405 = vmatpush1.bf16.msra.mxu0 0
    %3406 = vmatprep.subr.bf16.mxu0 0
    %3407 = vmatpush1.bf16.msra.mxu0 0
    %3408 = vmatprep.subr.bf16.mxu0 0
    %3409 = vmatpush1.bf16.msra.mxu0 0
    %3410 = vmatprep.mubr.bf16.mxu0 0
    %3411 = vmatmul.mubr.bf16.gmra.mrb[0].mxu0 %v3377
    %v3412 = vpop.f32.mrb[0].mxu0
    %v3413 = vadd.f32 0.0, %v3412
    %v3414 = vpop.f32.mrb[0].mxu0
    %v3415 = vadd.f32 0.0, %v3414
    %v3416 = vpop.f32.mrb[0].mxu0
    %v3417 = vpop.f32.mrb[0].mxu0
    %3418 = vdwg.mxu0
    %3419 = vmatprep.subr.bf16.mxu0 %v2879
    %3420 = vmatpush1.bf16.msra.mxu0 %v2878
    %3421 = vmatprep.subr.bf16.mxu0 %v2883
    %3422 = vmatpush1.bf16.msra.mxu0 %v2882
    %3423 = vmatprep.subr.bf16.mxu0 %v2887
    %3424 = vmatpush1.bf16.msra.mxu0 %v2886
    %3425 = vmatprep.subr.bf16.mxu0 %v2891
    %3426 = vmatpush1.bf16.msra.mxu0 %v2890
    %3427 = vmatprep.subr.bf16.mxu0 %v2895
    %3428 = vmatpush1.bf16.msra.mxu0 %v2894
    %3429 = vmatprep.subr.bf16.mxu0 %v2899
    %3430 = vmatpush1.bf16.msra.mxu0 %v2898
    %3431 = vmatprep.subr.bf16.mxu0 %v2903
    %3432 = vmatpush1.bf16.msra.mxu0 %v2902
    %3433 = vmatprep.subr.bf16.mxu0 %v2907
    %3434 = vmatpush1.bf16.msra.mxu0 %v2906
    %3435 = vmatprep.subr.bf16.mxu0 0
    %3436 = vmatpush1.bf16.msra.mxu0 0
    %3437 = vmatprep.subr.bf16.mxu0 0
    %3438 = vmatpush1.bf16.msra.mxu0 0
    %3439 = vmatprep.subr.bf16.mxu0 0
    %3440 = vmatpush1.bf16.msra.mxu0 0
    %3441 = vmatprep.subr.bf16.mxu0 0
    %3442 = vmatpush1.bf16.msra.mxu0 0
    %3443 = vmatprep.subr.bf16.mxu0 0
    %3444 = vmatpush1.bf16.msra.mxu0 0
    %3445 = vmatprep.subr.bf16.mxu0 0
    %3446 = vmatpush1.bf16.msra.mxu0 0
    %3447 = vmatprep.subr.bf16.mxu0 0
    %3448 = vmatpush1.bf16.msra.mxu0 0
    %3449 = vmatprep.subr.bf16.mxu0 0
    %3450 = vmatpush1.bf16.msra.mxu0 0
    %3451 = vmatprep.mubr.bf16.mxu0 0
    %3452 = vmatmul.mubr.bf16.gmra.mrb[0].mxu0 %v3377
    %v3453 = vpop.f32.mrb[0].mxu0
    %v3454 = vadd.f32 0.0, %v3453
    %v3455 = vpop.f32.mrb[0].mxu0
    %v3456 = vadd.f32 0.0, %v3455
    %v3457 = vpop.f32.mrb[0].mxu0
    %v3458 = vpop.f32.mrb[0].mxu0
    %3459 = vdwg.mxu0
    %v3464 = vcombine.low %v3413, %v3415
    %v3465 = vcombine.low %v3454, %v3456
    %v3467 = vunpack.c.l.s4 1966171168
    %v3468 = vunpack.c.0.s8 %v3467
    %v3469 = vlaneseq
    %v3470 = vshrl.u32 %v3469, 7
    %v3471 = vsub.s32 %v3468, %v3470
    %v3472 = vrot.slane %v3464, %v3471
    %v3474 = vunpack.c.l.s4 1966171168
    %v3475 = vunpack.c.0.s8 %v3474
    %v3476 = vlaneseq
    %v3477 = vshrl.u32 %v3476, 7
    %v3478 = vsub.s32 %v3475, %v3477
    %v3479 = vrot.slane %v3465, %v3478
    %v3480 = vcombine.low %v3472, %v3479
    %v3482 = vunpack.c.l.s4 1966171168
    %v3483 = vunpack.c.0.s8 %v3482
    %v3484 = vlaneseq
    %v3485 = vshrl.u32 %v3484, 7
    %v3486 = vsub.s32 %v3483, %v3485
    %v3487 = vrot.slane %v3480, %v3486
    %v3489 = vadd.f32 %v3376, %v3487
    %v3490 = vxor.u32 %v3489, 2147483648
    %v3491 = vmul.f32 %v3490, 1.442695
    %v3492 = vpow.pop %v3491
    %v3493 = vadd.f32 %v3492, 1.0
    %v3494 = vrcp.pop %v3493
    %v3495 = vmul.f32 1.0, %v3494
    %v3497 = vrot.slane %v3489, 1
    %v3499 = vxor.u32 %v3497, 2147483648
    %v3500 = vmul.f32 %v3499, 1.442695
    %v3501 = vpow.pop %v3500
    %v3502 = vadd.f32 %v3501, 1.0
    %v3503 = vrcp.pop %v3502
    %v3504 = vmul.f32 1.0, %v3503
    %v3505 = vrot.slane %v3489, 2
    %v3507 = vtanh.pop %v3505
    %v3508 = vrot.slane %v3489, 3
    %v3510 = vxor.u32 %v3508, 2147483648
    %v3511 = vmul.f32 %v3510, 1.442695
    %v3512 = vpow.pop %v3511
    %v3513 = vadd.f32 %v3512, 1.0
    %v3514 = vrcp.pop %v3513
    %v3515 = vmul.f32 1.0, %v3514
    %v3516 = vmul.f32 %v3504, %v3372
    %v3517 = vmul.f32 %v3495, %v3507
    %v3518 = vadd.f32 %v3516, %v3517
    %v3519 = vtanh.pop %v3518
    %v3520 = vmul.f32 %v3515, %v3519
    %3521 = vst [vmem:[#allocation4 + $0x3] sm:$0x1] %v3520
    %v3522 = vld [vmem:[%s1857] ss:$8 sm:$0xf]
    %v3523 = vpack.c.bf16 %v3520, %v3520
    %3524 = vmatprep.subr.bf16.mxu0 %v2877
    %3525 = vmatpush1.bf16.msra.mxu0 %v2876
    %3526 = vmatprep.subr.bf16.mxu0 %v2881
    %3527 = vmatpush1.bf16.msra.mxu0 %v2880
    %3528 = vmatprep.subr.bf16.mxu0 %v2885
    %3529 = vmatpush1.bf16.msra.mxu0 %v2884
    %3530 = vmatprep.subr.bf16.mxu0 %v2889
    %3531 = vmatpush1.bf16.msra.mxu0 %v2888
    %3532 = vmatprep.subr.bf16.mxu0 %v2893
    %3533 = vmatpush1.bf16.msra.mxu0 %v2892
    %3534 = vmatprep.subr.bf16.mxu0 %v2897
    %3535 = vmatpush1.bf16.msra.mxu0 %v2896
    %3536 = vmatprep.subr.bf16.mxu0 %v2901
    %3537 = vmatpush1.bf16.msra.mxu0 %v2900
    %3538 = vmatprep.subr.bf16.mxu0 %v2905
    %3539 = vmatpush1.bf16.msra.mxu0 %v2904
    %3540 = vmatprep.subr.bf16.mxu0 0
    %3541 = vmatpush1.bf16.msra.mxu0 0
    %3542 = vmatprep.subr.bf16.mxu0 0
    %3543 = vmatpush1.bf16.msra.mxu0 0
    %3544 = vmatprep.subr.bf16.mxu0 0
    %3545 = vmatpush1.bf16.msra.mxu0 0
    %3546 = vmatprep.subr.bf16.mxu0 0
    %3547 = vmatpush1.bf16.msra.mxu0 0
    %3548 = vmatprep.subr.bf16.mxu0 0
    %3549 = vmatpush1.bf16.msra.mxu0 0
    %3550 = vmatprep.subr.bf16.mxu0 0
    %3551 = vmatpush1.bf16.msra.mxu0 0
    %3552 = vmatprep.subr.bf16.mxu0 0
    %3553 = vmatpush1.bf16.msra.mxu0 0
    %3554 = vmatprep.subr.bf16.mxu0 0
    %3555 = vmatpush1.bf16.msra.mxu0 0
    %3556 = vmatprep.mubr.bf16.mxu0 0
    %3557 = vmatmul.mubr.bf16.gmra.mrb[0].mxu0 %v3523
    %v3558 = vpop.f32.mrb[0].mxu0
    %v3559 = vadd.f32 0.0, %v3558
    %v3560 = vpop.f32.mrb[0].mxu0
    %v3561 = vadd.f32 0.0, %v3560
    %v3562 = vpop.f32.mrb[0].mxu0
    %v3563 = vpop.f32.mrb[0].mxu0
    %3564 = vdwg.mxu0
    %3565 = vmatprep.subr.bf16.mxu0 %v2879
    %3566 = vmatpush1.bf16.msra.mxu0 %v2878
    %3567 = vmatprep.subr.bf16.mxu0 %v2883
    %3568 = vmatpush1.bf16.msra.mxu0 %v2882
    %3569 = vmatprep.subr.bf16.mxu0 %v2887
    %3570 = vmatpush1.bf16.msra.mxu0 %v2886
    %3571 = vmatprep.subr.bf16.mxu0 %v2891
    %3572 = vmatpush1.bf16.msra.mxu0 %v2890
    %3573 = vmatprep.subr.bf16.mxu0 %v2895
    %3574 = vmatpush1.bf16.msra.mxu0 %v2894
    %3575 = vmatprep.subr.bf16.mxu0 %v2899
    %3576 = vmatpush1.bf16.msra.mxu0 %v2898
    %3577 = vmatprep.subr.bf16.mxu0 %v2903
    %3578 = vmatpush1.bf16.msra.mxu0 %v2902
    %3579 = vmatprep.subr.bf16.mxu0 %v2907
    %3580 = vmatpush1.bf16.msra.mxu0 %v2906
    %3581 = vmatprep.subr.bf16.mxu0 0
    %3582 = vmatpush1.bf16.msra.mxu0 0
    %3583 = vmatprep.subr.bf16.mxu0 0
    %3584 = vmatpush1.bf16.msra.mxu0 0
    %3585 = vmatprep.subr.bf16.mxu0 0
    %3586 = vmatpush1.bf16.msra.mxu0 0
    %3587 = vmatprep.subr.bf16.mxu0 0
    %3588 = vmatpush1.bf16.msra.mxu0 0
    %3589 = vmatprep.subr.bf16.mxu0 0
    %3590 = vmatpush1.bf16.msra.mxu0 0
    %3591 = vmatprep.subr.bf16.mxu0 0
    %3592 = vmatpush1.bf16.msra.mxu0 0
    %3593 = vmatprep.subr.bf16.mxu0 0
    %3594 = vmatpush1.bf16.msra.mxu0 0
    %3595 = vmatprep.subr.bf16.mxu0 0
    %3596 = vmatpush1.bf16.msra.mxu0 0
    %3597 = vmatprep.mubr.bf16.mxu0 0
    %3598 = vmatmul.mubr.bf16.gmra.mrb[0].mxu0 %v3523
    %v3599 = vpop.f32.mrb[0].mxu0
    %v3600 = vadd.f32 0.0, %v3599
    %v3601 = vpop.f32.mrb[0].mxu0
    %v3602 = vadd.f32 0.0, %v3601
    %v3603 = vpop.f32.mrb[0].mxu0
    %v3604 = vpop.f32.mrb[0].mxu0
    %3605 = vdwg.mxu0
    %v3610 = vcombine.low %v3559, %v3561
    %v3611 = vcombine.low %v3600, %v3602
    %v3613 = vunpack.c.l.s4 1966171168
    %v3614 = vunpack.c.0.s8 %v3613
    %v3615 = vlaneseq
    %v3616 = vshrl.u32 %v3615, 7
    %v3617 = vsub.s32 %v3614, %v3616
    %v3618 = vrot.slane %v3610, %v3617
    %v3620 = vunpack.c.l.s4 1966171168
    %v3621 = vunpack.c.0.s8 %v3620
    %v3622 = vlaneseq
    %v3623 = vshrl.u32 %v3622, 7
    %v3624 = vsub.s32 %v3621, %v3623
    %v3625 = vrot.slane %v3611, %v3624
    %v3626 = vcombine.low %v3618, %v3625
    %v3628 = vunpack.c.l.s4 1966171168
    %v3629 = vunpack.c.0.s8 %v3628
    %v3630 = vlaneseq
    %v3631 = vshrl.u32 %v3630, 7
    %v3632 = vsub.s32 %v3629, %v3631
    %v3633 = vrot.slane %v3626, %v3632
    %v3635 = vadd.f32 %v3522, %v3633
    %v3636 = vxor.u32 %v3635, 2147483648
    %v3637 = vmul.f32 %v3636, 1.442695
    %v3638 = vpow.pop %v3637
    %v3639 = vadd.f32 %v3638, 1.0
    %v3640 = vrcp.pop %v3639
    %v3641 = vmul.f32 1.0, %v3640
    %v3643 = vrot.slane %v3635, 1
    %v3645 = vxor.u32 %v3643, 2147483648
    %v3646 = vmul.f32 %v3645, 1.442695
    %v3647 = vpow.pop %v3646
    %v3648 = vadd.f32 %v3647, 1.0
    %v3649 = vrcp.pop %v3648
    %v3650 = vmul.f32 1.0, %v3649
    %v3651 = vrot.slane %v3635, 2
    %v3653 = vtanh.pop %v3651
    %v3654 = vrot.slane %v3635, 3
    %v3656 = vxor.u32 %v3654, 2147483648
    %v3657 = vmul.f32 %v3656, 1.442695
    %v3658 = vpow.pop %v3657
    %v3659 = vadd.f32 %v3658, 1.0
    %v3660 = vrcp.pop %v3659
    %v3661 = vmul.f32 1.0, %v3660
    %v3662 = vmul.f32 %v3650, %v3518
    %v3663 = vmul.f32 %v3641, %v3653
    %v3664 = vadd.f32 %v3662, %v3663
    %v3665 = vtanh.pop %v3664
    %v3666 = vmul.f32 %v3661, %v3665
    %3667 = vst [vmem:[#allocation4 + $0x4] sm:$0x1] %v3666
    %v3668 = vld [vmem:[%s2004] ss:$8 sm:$0xf]
    %v3669 = vpack.c.bf16 %v3666, %v3666
    %3670 = vmatprep.subr.bf16.mxu0 %v2877
    %3671 = vmatpush1.bf16.msra.mxu0 %v2876
    %3672 = vmatprep.subr.bf16.mxu0 %v2881
    %3673 = vmatpush1.bf16.msra.mxu0 %v2880
    %3674 = vmatprep.subr.bf16.mxu0 %v2885
    %3675 = vmatpush1.bf16.msra.mxu0 %v2884
    %3676 = vmatprep.subr.bf16.mxu0 %v2889
    %3677 = vmatpush1.bf16.msra.mxu0 %v2888
    %3678 = vmatprep.subr.bf16.mxu0 %v2893
    %3679 = vmatpush1.bf16.msra.mxu0 %v2892
    %3680 = vmatprep.subr.bf16.mxu0 %v2897
    %3681 = vmatpush1.bf16.msra.mxu0 %v2896
    %3682 = vmatprep.subr.bf16.mxu0 %v2901
    %3683 = vmatpush1.bf16.msra.mxu0 %v2900
    %3684 = vmatprep.subr.bf16.mxu0 %v2905
    %3685 = vmatpush1.bf16.msra.mxu0 %v2904
    %3686 = vmatprep.subr.bf16.mxu0 0
    %3687 = vmatpush1.bf16.msra.mxu0 0
    %3688 = vmatprep.subr.bf16.mxu0 0
    %3689 = vmatpush1.bf16.msra.mxu0 0
    %3690 = vmatprep.subr.bf16.mxu0 0
    %3691 = vmatpush1.bf16.msra.mxu0 0
    %3692 = vmatprep.subr.bf16.mxu0 0
    %3693 = vmatpush1.bf16.msra.mxu0 0
    %3694 = vmatprep.subr.bf16.mxu0 0
    %3695 = vmatpush1.bf16.msra.mxu0 0
    %3696 = vmatprep.subr.bf16.mxu0 0
    %3697 = vmatpush1.bf16.msra.mxu0 0
    %3698 = vmatprep.subr.bf16.mxu0 0
    %3699 = vmatpush1.bf16.msra.mxu0 0
    %3700 = vmatprep.subr.bf16.mxu0 0
    %3701 = vmatpush1.bf16.msra.mxu0 0
    %3702 = vmatprep.mubr.bf16.mxu0 0
    %3703 = vmatmul.mubr.bf16.gmra.mrb[0].mxu0 %v3669
    %v3704 = vpop.f32.mrb[0].mxu0
    %v3705 = vadd.f32 0.0, %v3704
    %v3706 = vpop.f32.mrb[0].mxu0
    %v3707 = vadd.f32 0.0, %v3706
    %v3708 = vpop.f32.mrb[0].mxu0
    %v3709 = vpop.f32.mrb[0].mxu0
    %3710 = vdwg.mxu0
    %3711 = vmatprep.subr.bf16.mxu0 %v2879
    %3712 = vmatpush1.bf16.msra.mxu0 %v2878
    %3713 = vmatprep.subr.bf16.mxu0 %v2883
    %3714 = vmatpush1.bf16.msra.mxu0 %v2882
    %3715 = vmatprep.subr.bf16.mxu0 %v2887
    %3716 = vmatpush1.bf16.msra.mxu0 %v2886
    %3717 = vmatprep.subr.bf16.mxu0 %v2891
    %3718 = vmatpush1.bf16.msra.mxu0 %v2890
    %3719 = vmatprep.subr.bf16.mxu0 %v2895
    %3720 = vmatpush1.bf16.msra.mxu0 %v2894
    %3721 = vmatprep.subr.bf16.mxu0 %v2899
    %3722 = vmatpush1.bf16.msra.mxu0 %v2898
    %3723 = vmatprep.subr.bf16.mxu0 %v2903
    %3724 = vmatpush1.bf16.msra.mxu0 %v2902
    %3725 = vmatprep.subr.bf16.mxu0 %v2907
    %3726 = vmatpush1.bf16.msra.mxu0 %v2906
    %3727 = vmatprep.subr.bf16.mxu0 0
    %3728 = vmatpush1.bf16.msra.mxu0 0
    %3729 = vmatprep.subr.bf16.mxu0 0
    %3730 = vmatpush1.bf16.msra.mxu0 0
    %3731 = vmatprep.subr.bf16.mxu0 0
    %3732 = vmatpush1.bf16.msra.mxu0 0
    %3733 = vmatprep.subr.bf16.mxu0 0
    %3734 = vmatpush1.bf16.msra.mxu0 0
    %3735 = vmatprep.subr.bf16.mxu0 0
    %3736 = vmatpush1.bf16.msra.mxu0 0
    %3737 = vmatprep.subr.bf16.mxu0 0
    %3738 = vmatpush1.bf16.msra.mxu0 0
    %3739 = vmatprep.subr.bf16.mxu0 0
    %3740 = vmatpush1.bf16.msra.mxu0 0
    %3741 = vmatprep.subr.bf16.mxu0 0
    %3742 = vmatpush1.bf16.msra.mxu0 0
    %3743 = vmatprep.mubr.bf16.mxu0 0
    %3744 = vmatmul.mubr.bf16.gmra.mrb[0].mxu0 %v3669
    %v3745 = vpop.f32.mrb[0].mxu0
    %v3746 = vadd.f32 0.0, %v3745
    %v3747 = vpop.f32.mrb[0].mxu0
    %v3748 = vadd.f32 0.0, %v3747
    %v3749 = vpop.f32.mrb[0].mxu0
    %v3750 = vpop.f32.mrb[0].mxu0
    %3751 = vdwg.mxu0
    %v3756 = vcombine.low %v3705, %v3707
    %v3757 = vcombine.low %v3746, %v3748
    %v3759 = vunpack.c.l.s4 1966171168
    %v3760 = vunpack.c.0.s8 %v3759
    %v3761 = vlaneseq
    %v3762 = vshrl.u32 %v3761, 7
    %v3763 = vsub.s32 %v3760, %v3762
    %v3764 = vrot.slane %v3756, %v3763
    %v3766 = vunpack.c.l.s4 1966171168
    %v3767 = vunpack.c.0.s8 %v3766
    %v3768 = vlaneseq
    %v3769 = vshrl.u32 %v3768, 7
    %v3770 = vsub.s32 %v3767, %v3769
    %v3771 = vrot.slane %v3757, %v3770
    %v3772 = vcombine.low %v3764, %v3771
    %v3774 = vunpack.c.l.s4 1966171168
    %v3775 = vunpack.c.0.s8 %v3774
    %v3776 = vlaneseq
    %v3777 = vshrl.u32 %v3776, 7
    %v3778 = vsub.s32 %v3775, %v3777
    %v3779 = vrot.slane %v3772, %v3778
    %v3781 = vadd.f32 %v3668, %v3779
    %v3782 = vxor.u32 %v3781, 2147483648
    %v3783 = vmul.f32 %v3782, 1.442695
    %v3784 = vpow.pop %v3783
    %v3785 = vadd.f32 %v3784, 1.0
    %v3786 = vrcp.pop %v3785
    %v3787 = vmul.f32 1.0, %v3786
    %v3789 = vrot.slane %v3781, 1
    %v3791 = vxor.u32 %v3789, 2147483648
    %v3792 = vmul.f32 %v3791, 1.442695
    %v3793 = vpow.pop %v3792
    %v3794 = vadd.f32 %v3793, 1.0
    %v3795 = vrcp.pop %v3794
    %v3796 = vmul.f32 1.0, %v3795
    %v3797 = vrot.slane %v3781, 2
    %v3799 = vtanh.pop %v3797
    %v3800 = vrot.slane %v3781, 3
    %v3802 = vxor.u32 %v3800, 2147483648
    %v3803 = vmul.f32 %v3802, 1.442695
    %v3804 = vpow.pop %v3803
    %v3805 = vadd.f32 %v3804, 1.0
    %v3806 = vrcp.pop %v3805
    %v3807 = vmul.f32 1.0, %v3806
    %v3808 = vmul.f32 %v3796, %v3664
    %v3809 = vmul.f32 %v3787, %v3799
    %v3810 = vadd.f32 %v3808, %v3809
    %v3811 = vtanh.pop %v3810
    %v3812 = vmul.f32 %v3807, %v3811
    %3813 = vst [vmem:[#allocation4 + $0x5] sm:$0x1] %v3812
    %v3814 = vld [vmem:[%s2151] ss:$8 sm:$0xf]
    %v3815 = vpack.c.bf16 %v3812, %v3812
    %3816 = vmatprep.subr.bf16.mxu0 %v2877
    %3817 = vmatpush1.bf16.msra.mxu0 %v2876
    %3818 = vmatprep.subr.bf16.mxu0 %v2881
    %3819 = vmatpush1.bf16.msra.mxu0 %v2880
    %3820 = vmatprep.subr.bf16.mxu0 %v2885
    %3821 = vmatpush1.bf16.msra.mxu0 %v2884
    %3822 = vmatprep.subr.bf16.mxu0 %v2889
    %3823 = vmatpush1.bf16.msra.mxu0 %v2888
    %3824 = vmatprep.subr.bf16.mxu0 %v2893
    %3825 = vmatpush1.bf16.msra.mxu0 %v2892
    %3826 = vmatprep.subr.bf16.mxu0 %v2897
    %3827 = vmatpush1.bf16.msra.mxu0 %v2896
    %3828 = vmatprep.subr.bf16.mxu0 %v2901
    %3829 = vmatpush1.bf16.msra.mxu0 %v2900
    %3830 = vmatprep.subr.bf16.mxu0 %v2905
    %3831 = vmatpush1.bf16.msra.mxu0 %v2904
    %3832 = vmatprep.subr.bf16.mxu0 0
    %3833 = vmatpush1.bf16.msra.mxu0 0
    %3834 = vmatprep.subr.bf16.mxu0 0
    %3835 = vmatpush1.bf16.msra.mxu0 0
    %3836 = vmatprep.subr.bf16.mxu0 0
    %3837 = vmatpush1.bf16.msra.mxu0 0
    %3838 = vmatprep.subr.bf16.mxu0 0
    %3839 = vmatpush1.bf16.msra.mxu0 0
    %3840 = vmatprep.subr.bf16.mxu0 0
    %3841 = vmatpush1.bf16.msra.mxu0 0
    %3842 = vmatprep.subr.bf16.mxu0 0
    %3843 = vmatpush1.bf16.msra.mxu0 0
    %3844 = vmatprep.subr.bf16.mxu0 0
    %3845 = vmatpush1.bf16.msra.mxu0 0
    %3846 = vmatprep.subr.bf16.mxu0 0
    %3847 = vmatpush1.bf16.msra.mxu0 0
    %3848 = vmatprep.mubr.bf16.mxu0 0
    %3849 = vmatmul.mubr.bf16.gmra.mrb[0].mxu0 %v3815
    %v3850 = vpop.f32.mrb[0].mxu0
    %v3851 = vadd.f32 0.0, %v3850
    %v3852 = vpop.f32.mrb[0].mxu0
    %v3853 = vadd.f32 0.0, %v3852
    %v3854 = vpop.f32.mrb[0].mxu0
    %v3855 = vpop.f32.mrb[0].mxu0
    %3856 = vdwg.mxu0
    %3857 = vmatprep.subr.bf16.mxu0 %v2879
    %3858 = vmatpush1.bf16.msra.mxu0 %v2878
    %3859 = vmatprep.subr.bf16.mxu0 %v2883
    %3860 = vmatpush1.bf16.msra.mxu0 %v2882
    %3861 = vmatprep.subr.bf16.mxu0 %v2887
    %3862 = vmatpush1.bf16.msra.mxu0 %v2886
    %3863 = vmatprep.subr.bf16.mxu0 %v2891
    %3864 = vmatpush1.bf16.msra.mxu0 %v2890
    %3865 = vmatprep.subr.bf16.mxu0 %v2895
    %3866 = vmatpush1.bf16.msra.mxu0 %v2894
    %3867 = vmatprep.subr.bf16.mxu0 %v2899
    %3868 = vmatpush1.bf16.msra.mxu0 %v2898
    %3869 = vmatprep.subr.bf16.mxu0 %v2903
    %3870 = vmatpush1.bf16.msra.mxu0 %v2902
    %3871 = vmatprep.subr.bf16.mxu0 %v2907
    %3872 = vmatpush1.bf16.msra.mxu0 %v2906
    %3873 = vmatprep.subr.bf16.mxu0 0
    %3874 = vmatpush1.bf16.msra.mxu0 0
    %3875 = vmatprep.subr.bf16.mxu0 0
    %3876 = vmatpush1.bf16.msra.mxu0 0
    %3877 = vmatprep.subr.bf16.mxu0 0
    %3878 = vmatpush1.bf16.msra.mxu0 0
    %3879 = vmatprep.subr.bf16.mxu0 0
    %3880 = vmatpush1.bf16.msra.mxu0 0
    %3881 = vmatprep.subr.bf16.mxu0 0
    %3882 = vmatpush1.bf16.msra.mxu0 0
    %3883 = vmatprep.subr.bf16.mxu0 0
    %3884 = vmatpush1.bf16.msra.mxu0 0
    %3885 = vmatprep.subr.bf16.mxu0 0
    %3886 = vmatpush1.bf16.msra.mxu0 0
    %3887 = vmatprep.subr.bf16.mxu0 0
    %3888 = vmatpush1.bf16.msra.mxu0 0
    %3889 = vmatprep.mubr.bf16.mxu0 0
    %3890 = vmatmul.mubr.bf16.gmra.mrb[0].mxu0 %v3815
    %v3891 = vpop.f32.mrb[0].mxu0
    %v3892 = vadd.f32 0.0, %v3891
    %v3893 = vpop.f32.mrb[0].mxu0
    %v3894 = vadd.f32 0.0, %v3893
    %v3895 = vpop.f32.mrb[0].mxu0
    %v3896 = vpop.f32.mrb[0].mxu0
    %3897 = vdwg.mxu0
    %v3902 = vcombine.low %v3851, %v3853
    %v3903 = vcombine.low %v3892, %v3894
    %v3905 = vunpack.c.l.s4 1966171168
    %v3906 = vunpack.c.0.s8 %v3905
    %v3907 = vlaneseq
    %v3908 = vshrl.u32 %v3907, 7
    %v3909 = vsub.s32 %v3906, %v3908
    %v3910 = vrot.slane %v3902, %v3909
    %v3912 = vunpack.c.l.s4 1966171168
    %v3913 = vunpack.c.0.s8 %v3912
    %v3914 = vlaneseq
    %v3915 = vshrl.u32 %v3914, 7
    %v3916 = vsub.s32 %v3913, %v3915
    %v3917 = vrot.slane %v3903, %v3916
    %v3918 = vcombine.low %v3910, %v3917
    %v3920 = vunpack.c.l.s4 1966171168
    %v3921 = vunpack.c.0.s8 %v3920
    %v3922 = vlaneseq
    %v3923 = vshrl.u32 %v3922, 7
    %v3924 = vsub.s32 %v3921, %v3923
    %v3925 = vrot.slane %v3918, %v3924
    %v3927 = vadd.f32 %v3814, %v3925
    %v3928 = vxor.u32 %v3927, 2147483648
    %v3929 = vmul.f32 %v3928, 1.442695
    %v3930 = vpow.pop %v3929
    %v3931 = vadd.f32 %v3930, 1.0
    %v3932 = vrcp.pop %v3931
    %v3933 = vmul.f32 1.0, %v3932
    %v3935 = vrot.slane %v3927, 1
    %v3937 = vxor.u32 %v3935, 2147483648
    %v3938 = vmul.f32 %v3937, 1.442695
    %v3939 = vpow.pop %v3938
    %v3940 = vadd.f32 %v3939, 1.0
    %v3941 = vrcp.pop %v3940
    %v3942 = vmul.f32 1.0, %v3941
    %v3943 = vrot.slane %v3927, 2
    %v3945 = vtanh.pop %v3943
    %v3946 = vrot.slane %v3927, 3
    %v3948 = vxor.u32 %v3946, 2147483648
    %v3949 = vmul.f32 %v3948, 1.442695
    %v3950 = vpow.pop %v3949
    %v3951 = vadd.f32 %v3950, 1.0
    %v3952 = vrcp.pop %v3951
    %v3953 = vmul.f32 1.0, %v3952
    %v3954 = vmul.f32 %v3942, %v3810
    %v3955 = vmul.f32 %v3933, %v3945
    %v3956 = vadd.f32 %v3954, %v3955
    %v3957 = vtanh.pop %v3956
    %v3958 = vmul.f32 %v3953, %v3957
    %3959 = vst [vmem:[#allocation4 + $0x6] sm:$0x1] %v3958
    %v3960 = vld [vmem:[%s2298] ss:$8 sm:$0xf]
    %v3961 = vpack.c.bf16 %v3958, %v3958
    %3962 = vmatprep.subr.bf16.mxu0 %v2877
    %3963 = vmatpush1.bf16.msra.mxu0 %v2876
    %3964 = vmatprep.subr.bf16.mxu0 %v2881
    %3965 = vmatpush1.bf16.msra.mxu0 %v2880
    %3966 = vmatprep.subr.bf16.mxu0 %v2885
    %3967 = vmatpush1.bf16.msra.mxu0 %v2884
    %3968 = vmatprep.subr.bf16.mxu0 %v2889
    %3969 = vmatpush1.bf16.msra.mxu0 %v2888
    %3970 = vmatprep.subr.bf16.mxu0 %v2893
    %3971 = vmatpush1.bf16.msra.mxu0 %v2892
    %3972 = vmatprep.subr.bf16.mxu0 %v2897
    %3973 = vmatpush1.bf16.msra.mxu0 %v2896
    %3974 = vmatprep.subr.bf16.mxu0 %v2901
    %3975 = vmatpush1.bf16.msra.mxu0 %v2900
    %3976 = vmatprep.subr.bf16.mxu0 %v2905
    %3977 = vmatpush1.bf16.msra.mxu0 %v2904
    %3978 = vmatprep.subr.bf16.mxu0 0
    %3979 = vmatpush1.bf16.msra.mxu0 0
    %3980 = vmatprep.subr.bf16.mxu0 0
    %3981 = vmatpush1.bf16.msra.mxu0 0
    %3982 = vmatprep.subr.bf16.mxu0 0
    %3983 = vmatpush1.bf16.msra.mxu0 0
    %3984 = vmatprep.subr.bf16.mxu0 0
    %3985 = vmatpush1.bf16.msra.mxu0 0
    %3986 = vmatprep.subr.bf16.mxu0 0
    %3987 = vmatpush1.bf16.msra.mxu0 0
    %3988 = vmatprep.subr.bf16.mxu0 0
    %3989 = vmatpush1.bf16.msra.mxu0 0
    %3990 = vmatprep.subr.bf16.mxu0 0
    %3991 = vmatpush1.bf16.msra.mxu0 0
    %3992 = vmatprep.subr.bf16.mxu0 0
    %3993 = vmatpush1.bf16.msra.mxu0 0
    %3994 = vmatprep.mubr.bf16.mxu0 0
    %3995 = vmatmul.mubr.bf16.gmra.mrb[0].mxu0 %v3961
    %v3996 = vpop.f32.mrb[0].mxu0
    %v3997 = vadd.f32 0.0, %v3996
    %v3998 = vpop.f32.mrb[0].mxu0
    %v3999 = vadd.f32 0.0, %v3998
    %v4000 = vpop.f32.mrb[0].mxu0
    %v4001 = vpop.f32.mrb[0].mxu0
    %4002 = vdwg.mxu0
    %4003 = vmatprep.subr.bf16.mxu0 %v2879
    %4004 = vmatpush1.bf16.msra.mxu0 %v2878
    %4005 = vmatprep.subr.bf16.mxu0 %v2883
    %4006 = vmatpush1.bf16.msra.mxu0 %v2882
    %4007 = vmatprep.subr.bf16.mxu0 %v2887
    %4008 = vmatpush1.bf16.msra.mxu0 %v2886
    %4009 = vmatprep.subr.bf16.mxu0 %v2891
    %4010 = vmatpush1.bf16.msra.mxu0 %v2890
    %4011 = vmatprep.subr.bf16.mxu0 %v2895
    %4012 = vmatpush1.bf16.msra.mxu0 %v2894
    %4013 = vmatprep.subr.bf16.mxu0 %v2899
    %4014 = vmatpush1.bf16.msra.mxu0 %v2898
    %4015 = vmatprep.subr.bf16.mxu0 %v2903
    %4016 = vmatpush1.bf16.msra.mxu0 %v2902
    %4017 = vmatprep.subr.bf16.mxu0 %v2907
    %4018 = vmatpush1.bf16.msra.mxu0 %v2906
    %4019 = vmatprep.subr.bf16.mxu0 0
    %4020 = vmatpush1.bf16.msra.mxu0 0
    %4021 = vmatprep.subr.bf16.mxu0 0
    %4022 = vmatpush1.bf16.msra.mxu0 0
    %4023 = vmatprep.subr.bf16.mxu0 0
    %4024 = vmatpush1.bf16.msra.mxu0 0
    %4025 = vmatprep.subr.bf16.mxu0 0
    %4026 = vmatpush1.bf16.msra.mxu0 0
    %4027 = vmatprep.subr.bf16.mxu0 0
    %4028 = vmatpush1.bf16.msra.mxu0 0
    %4029 = vmatprep.subr.bf16.mxu0 0
    %4030 = vmatpush1.bf16.msra.mxu0 0
    %4031 = vmatprep.subr.bf16.mxu0 0
    %4032 = vmatpush1.bf16.msra.mxu0 0
    %4033 = vmatprep.subr.bf16.mxu0 0
    %4034 = vmatpush1.bf16.msra.mxu0 0
    %4035 = vmatprep.mubr.bf16.mxu0 0
    %4036 = vmatmul.mubr.bf16.gmra.mrb[0].mxu0 %v3961
    %v4037 = vpop.f32.mrb[0].mxu0
    %v4038 = vadd.f32 0.0, %v4037
    %v4039 = vpop.f32.mrb[0].mxu0
    %v4040 = vadd.f32 0.0, %v4039
    %v4041 = vpop.f32.mrb[0].mxu0
    %v4042 = vpop.f32.mrb[0].mxu0
    %4043 = vdwg.mxu0
    %v4048 = vcombine.low %v3997, %v3999
    %v4049 = vcombine.low %v4038, %v4040
    %v4051 = vunpack.c.l.s4 1966171168
    %v4052 = vunpack.c.0.s8 %v4051
    %v4053 = vlaneseq
    %v4054 = vshrl.u32 %v4053, 7
    %v4055 = vsub.s32 %v4052, %v4054
    %v4056 = vrot.slane %v4048, %v4055
    %v4058 = vunpack.c.l.s4 1966171168
    %v4059 = vunpack.c.0.s8 %v4058
    %v4060 = vlaneseq
    %v4061 = vshrl.u32 %v4060, 7
    %v4062 = vsub.s32 %v4059, %v4061
    %v4063 = vrot.slane %v4049, %v4062
    %v4064 = vcombine.low %v4056, %v4063
    %v4066 = vunpack.c.l.s4 1966171168
    %v4067 = vunpack.c.0.s8 %v4066
    %v4068 = vlaneseq
    %v4069 = vshrl.u32 %v4068, 7
    %v4070 = vsub.s32 %v4067, %v4069
    %v4071 = vrot.slane %v4064, %v4070
    %v4073 = vadd.f32 %v3960, %v4071
    %v4074 = vxor.u32 %v4073, 2147483648
    %v4075 = vmul.f32 %v4074, 1.442695
    %v4076 = vpow.pop %v4075
    %v4077 = vadd.f32 %v4076, 1.0
    %v4078 = vrcp.pop %v4077
    %v4079 = vmul.f32 1.0, %v4078
    %v4081 = vrot.slane %v4073, 1
    %v4083 = vxor.u32 %v4081, 2147483648
    %v4084 = vmul.f32 %v4083, 1.442695
    %v4085 = vpow.pop %v4084
    %v4086 = vadd.f32 %v4085, 1.0
    %v4087 = vrcp.pop %v4086
    %v4088 = vmul.f32 1.0, %v4087
    %v4089 = vrot.slane %v4073, 2
    %v4091 = vtanh.pop %v4089
    %v4092 = vrot.slane %v4073, 3
    %v4094 = vxor.u32 %v4092, 2147483648
    %v4095 = vmul.f32 %v4094, 1.442695
    %v4096 = vpow.pop %v4095
    %v4097 = vadd.f32 %v4096, 1.0
    %v4098 = vrcp.pop %v4097
    %v4099 = vmul.f32 1.0, %v4098
    %v4100 = vmul.f32 %v4088, %v3956
    %v4101 = vmul.f32 %v4079, %v4091
    %v4102 = vadd.f32 %v4100, %v4101
    %v4103 = vtanh.pop %v4102
    %v4104 = vmul.f32 %v4099, %v4103
    %4105 = vst [vmem:[#allocation4 + $0x7] sm:$0x1] %v4104
    %v4106 = vld [vmem:[#allocation4] sm:$0xff]
    %v4107 = vpack.c.bf16 %v4106, %v4106
    %v4108 = vld [vmem:[#allocation13] sm:$0xf]
    %v4109 = vld [vmem:[#allocation13 + $0x4] sm:$0xf]
    %v4110 = vld [vmem:[#allocation13 + $0x8] sm:$0xf]
    %v4111 = vld [vmem:[#allocation13 + $0xc] sm:$0xf]
    %v4112 = vld [vmem:[#allocation13 + $0x10] sm:$0xf]
    %v4113 = vld [vmem:[#allocation13 + $0x14] sm:$0xf]
    %v4114 = vld [vmem:[#allocation13 + $0x18] sm:$0xf]
    %v4115 = vld [vmem:[#allocation13 + $0x1c] sm:$0xf]
    %v4116 = vld [vmem:[#allocation13 + $0x20] sm:$0xf]
    %v4117 = vld [vmem:[#allocation13 + $0x24] sm:$0xf]
    %v4118 = vld [vmem:[#allocation13 + $0x28] sm:$0xf]
    %v4119 = vld [vmem:[#allocation13 + $0x2c] sm:$0xf]
    %v4120 = vld [vmem:[#allocation13 + $0x30] sm:$0xf]
    %v4121 = vld [vmem:[#allocation13 + $0x34] sm:$0xf]
    %v4122 = vld [vmem:[#allocation13 + $0x38] sm:$0xf]
    %v4123 = vld [vmem:[#allocation13 + $0x3c] sm:$0xf]
    %v4124 = vld [vmem:[%s8] sm:$0x1]
    %v4126 = vlaneseq
    %v4127 = vshrl.u32 %v4126, 7
    %v4128 = vsub.s32 0, %v4127
    %v4129 = vrot.slane %v4124, %v4128
    %v4147 = vunpack.c.l.b16 %v4108
    %v4148 = vunpack.c.l.b16 %v4109
    %v4149 = vunpack.c.l.b16 %v4110
    %v4150 = vunpack.c.l.b16 %v4111
    %v4151 = vunpack.c.l.b16 %v4112
    %v4152 = vunpack.c.l.b16 %v4113
    %v4153 = vunpack.c.l.b16 %v4114
    %v4154 = vunpack.c.l.b16 %v4115
    %v4155 = vunpack.c.l.b16 %v4116
    %v4156 = vunpack.c.l.b16 %v4117
    %v4157 = vunpack.c.l.b16 %v4118
    %v4158 = vunpack.c.l.b16 %v4119
    %v4159 = vunpack.c.l.b16 %v4120
    %v4160 = vunpack.c.l.b16 %v4121
    %v4161 = vunpack.c.l.b16 %v4122
    %v4162 = vunpack.c.l.b16 %v4123
    %v4163 = vpack.c.b16 %v4148, %v4147
    %v4164 = vpack.c.b16 %v4150, %v4149
    %v4165 = vpack.c.b16 %v4152, %v4151
    %v4166 = vpack.c.b16 %v4154, %v4153
    %v4167 = vpack.c.b16 %v4156, %v4155
    %v4168 = vpack.c.b16 %v4158, %v4157
    %v4169 = vpack.c.b16 %v4160, %v4159
    %v4170 = vpack.c.b16 %v4162, %v4161
    %4179 = vmatprep.subr.bf16.mxu0 0
    %4180 = vmatpush1.bf16.msra.mxu0 %v4163
    %4181 = vmatprep.subr.bf16.mxu0 0
    %4182 = vmatpush1.bf16.msra.mxu0 %v4164
    %4183 = vmatprep.subr.bf16.mxu0 0
    %4184 = vmatpush1.bf16.msra.mxu0 %v4165
    %4185 = vmatprep.subr.bf16.mxu0 0
    %4186 = vmatpush1.bf16.msra.mxu0 %v4166
    %4187 = vmatprep.subr.bf16.mxu0 0
    %4188 = vmatpush1.bf16.msra.mxu0 %v4167
    %4189 = vmatprep.subr.bf16.mxu0 0
    %4190 = vmatpush1.bf16.msra.mxu0 %v4168
    %4191 = vmatprep.subr.bf16.mxu0 0
    %4192 = vmatpush1.bf16.msra.mxu0 %v4169
    %4193 = vmatprep.subr.bf16.mxu0 0
    %4194 = vmatpush1.bf16.msra.mxu0 %v4170
    %4195 = vmatprep.subr.bf16.mxu0 0
    %4196 = vmatpush1.bf16.msra.mxu0 0
    %4197 = vmatprep.subr.bf16.mxu0 0
    %4198 = vmatpush1.bf16.msra.mxu0 0
    %4199 = vmatprep.subr.bf16.mxu0 0
    %4200 = vmatpush1.bf16.msra.mxu0 0
    %4201 = vmatprep.subr.bf16.mxu0 0
    %4202 = vmatpush1.bf16.msra.mxu0 0
    %4203 = vmatprep.subr.bf16.mxu0 0
    %4204 = vmatpush1.bf16.msra.mxu0 0
    %4205 = vmatprep.subr.bf16.mxu0 0
    %4206 = vmatpush1.bf16.msra.mxu0 0
    %4207 = vmatprep.subr.bf16.mxu0 0
    %4208 = vmatpush1.bf16.msra.mxu0 0
    %4209 = vmatprep.subr.bf16.mxu0 0
    %4210 = vmatpush1.bf16.msra.mxu0 0
    %4211 = vmatprep.mubr.bf16.mxu0 0
    %4212 = vmatmul.mubr.bf16.gmra.mrb[0].mxu0 %v4107
    %v4213 = vpop.f32.mrb[0].mxu0
    %v4214 = vadd.f32 %v4129, %v4213
    %v4215 = vpop.f32.mrb[0].mxu0
    %v4216 = vpop.f32.mrb[0].mxu0
    %v4217 = vpop.f32.mrb[0].mxu0
    %4218 = vdwg.mxu0
    %4219 = vst [vmem:[%s9] sm:$0xff] %v4214
    // Predicated region
    $region62: #{rnn_model_forward.1} parent=1 // pred_check
      _
    $region63: #{rnn_model_forward.1} parent=1 // pred_check_branch
      %4221 = sbr.rel (0) target = $region65
    $region64: #{rnn_model_forward.1} parent=1 // pred_region
      _
    $region65: #{rnn_model_forward.1} parent=1 // pred_fallthru
      _
    // Predicated region
    $region66: #{rnn_model_forward.1} parent=1 // pred_check
      _
    $region67: #{rnn_model_forward.1} parent=1 // pred_check_branch
      %4223 = sbr.rel (0) target = $region69
    $region68: #{rnn_model_forward.1} parent=1 // pred_region
      _
    $region69: #{rnn_model_forward.1} parent=1 // pred_fallthru
      _
    %4224 = vsyncpa [#allocation6], 1
    %4225 = vsyncpa [#allocation8], 1
    %4226 = vsyncpa [#allocation11], 1
    %4227 = vsyncpa [#allocation14], 1

</llo_original>
